<compile_context>
chip_gen: v6e
topology: v6e:2x2x1
jax: 0.10.0
libtpu: 0.0.40
codegen_flags: <defaults>
</compile_context>

<pallas_src>
import functools
import math

import jax
import jax.numpy as jnp
from jax.experimental import pallas as pl
from jax.experimental.pallas import tpu as pltpu


CENTROID_SCALE = 0.1
BIAS_SCALE = 1.0
OBJ_SCALE = 0.5
HEAD_PAD = 128          # centroid occupies lanes [0:3] of a 128-wide chunk so
                        # the bias slice starts lane-aligned at 128.


# ---------------------------------------------------------------------------
# Fused decoder kernel: 3 MXU matmuls + per-vertex elementwise epilogue.
#   x_ref      (B, D_in)        f32
#   w1/w2/wh   bf16 weights (resident in VMEM), b1/b2/bh f32 row-vectors
#   sign/logit (1, 3*nv)        f32 (channel-first, precomputed from template)
#   out_ref    (B, 3*nv)        f32 channel-first flat vertices
# ---------------------------------------------------------------------------
def _decoder_kernel(x_ref, w1_ref, b1_ref, w2_ref, b2_ref, wh_ref, bh_ref,
                    sign_ref, logit_ref, out_ref, *, nv, head_pad):
    cdt = w1_ref.dtype  # MXU compute dtype (bf16)

    # fc1 + relu  (f32 accumulation on the MXU)
    h = jnp.dot(x_ref[...].astype(cdt), w1_ref[...],
                preferred_element_type=jnp.float32)
    h = jnp.maximum(h + b1_ref[...], 0.0)

    # fc2 + relu
    h = jnp.dot(h.astype(cdt), w2_ref[...],
                preferred_element_type=jnp.float32)
    h = jnp.maximum(h + b2_ref[...], 0.0)

    # fused centroid + bias head (scales already folded into wh/bh)
    head = jnp.dot(h.astype(cdt), wh_ref[...],
                   preferred_element_type=jnp.float32) + bh_ref[...]

    c3 = jnp.tanh(head[:, 0:3])                 # (B, 3)   tanh(centroid)
    bias = head[:, head_pad:]                   # (B, 3*nv) channel-first

    B = bias.shape[0]
    # Broadcast each centroid channel across its nv-wide lane chunk.
    c_full = jnp.concatenate(
        [jnp.broadcast_to(c3[:, i:i + 1], (B, nv)) for i in range(3)], axis=1)

    sign = sign_ref[...]                        # (1, 3*nv), values in {-1,0,+1}
    v = jax.nn.sigmoid(logit_ref[...] + bias) * sign
    # relu(v)*(1-c) - relu(-v)*(1+c)  ==  v * (1 - sign*c)   (sigmoid > 0)
    v = v * (1.0 - sign * c_full)
    out_ref[...] = ((v + c_full) * 0.5).astype(out_ref.dtype)


# ---------------------------------------------------------------------------
# One-time parameter preparation (outside the jitted forward).
# ---------------------------------------------------------------------------
def prepare_params(params, vertices_base, compute_dtype=jnp.bfloat16):
    nv = vertices_base.shape[0]
    d2 = params["wc"].shape[0]

    # Permute fc_bias columns to channel-first order: col ch*nv + v <- col v*3 + ch
    wb_cf = params["wb"].reshape(d2, nv, 3).transpose(0, 2, 1).reshape(d2, 3 * nv)
    bb_cf = params["bb"].reshape(nv, 3).T.reshape(3 * nv)

    # Fused head weight, with centroid/bias scales folded in.
    wh = jnp.zeros((d2, HEAD_PAD + 3 * nv), jnp.float32)
    wh = wh.at[:, :3].set(params["wc"] * CENTROID_SCALE)
    wh = wh.at[:, HEAD_PAD:].set(wb_cf * BIAS_SCALE)
    bh = jnp.zeros((HEAD_PAD + 3 * nv,), jnp.float32)
    bh = bh.at[:3].set(params["bc"] * CENTROID_SCALE)
    bh = bh.at[HEAD_PAD:].set(bb_cf * BIAS_SCALE)

    # Template-mesh constants (channel-first, flat).
    base = vertices_base * OBJ_SCALE
    sign_cf = jnp.sign(base).T.reshape(1, 3 * nv).astype(jnp.float32)
    babs = jnp.abs(base)
    logit_cf = jnp.log(babs / (1.0 - babs)).T.reshape(1, 3 * nv).astype(jnp.float32)

    return dict(
        w1=params["w1"].astype(compute_dtype),
        b1=params["b1"].reshape(1, -1).astype(jnp.float32),
        w2=params["w2"].astype(compute_dtype),
        b2=params["b2"].reshape(1, -1).astype(jnp.float32),
        wh=wh.astype(compute_dtype),
        bh=bh.reshape(1, -1).astype(jnp.float32),
        sign=sign_cf,
        logit=logit_cf,
    )


# ---------------------------------------------------------------------------
# Decoder forward (single pallas_call, no grid, everything VMEM-resident)
# ---------------------------------------------------------------------------
def decoder_forward(prep, faces, x):
    B = x.shape[0]
    nv = prep["sign"].shape[1] // 3
    head_pad = prep["wh"].shape[1] - 3 * nv

    vmem_spec = pl.BlockSpec(memory_space=pltpu.MemorySpace.VMEM)
    out_flat = pl.pallas_call(
        functools.partial(_decoder_kernel, nv=nv, head_pad=head_pad),
        out_shape=jax.ShapeDtypeStruct((B, 3 * nv), jnp.float32),
        in_specs=[vmem_spec] * 9,
        out_specs=vmem_spec,
        compiler_params=pltpu.CompilerParams(
            vmem_limit_bytes=32 * 1024 * 1024),
    )(x, prep["w1"], prep["b1"], prep["w2"], prep["b2"],
      prep["wh"], prep["bh"], prep["sign"], prep["logit"])

    # Tiny (B*nv*3 f32 ~ 3 KB) relayout back to the PyTorch (B, nv, 3) convention.
    vertices = out_flat.reshape(B, 3, nv).transpose(0, 2, 1)
    faces_b = jnp.broadcast_to(faces[None, :, :], (B,) + faces.shape)
    return vertices, faces_b


# ---------------------------------------------------------------------------
# Pure-JAX reference (mirrors the PyTorch module, f32 weights)
# ---------------------------------------------------------------------------
def decoder_reference(params, vertices_base, faces, x):
    B = x.shape[0]
    nv = vertices_base.shape[0]
    h = jax.nn.relu(x @ params["w1"] + params["b1"])
    h = jax.nn.relu(h @ params["w2"] + params["b2"])
    centroid = (h @ params["wc"] + params["bc"]) * CENTROID_SCALE
    bias = ((h @ params["wb"] + params["bb"]) * BIAS_SCALE).reshape(B, nv, 3)
    base = vertices_base * OBJ_SCALE
    sign = jnp.sign(base)
    base = jnp.abs(base)
    base = jnp.log(base / (1.0 - base))
    c = jnp.tanh(centroid)[:, None, :]
    scale_pos = 1.0 - c
    scale_neg = c + 1.0
    v = jax.nn.sigmoid(base + bias) * sign
    v = jax.nn.relu(v) * scale_pos - jax.nn.relu(-v) * scale_neg
    v = (v + c) * 0.5
    faces_b = jnp.broadcast_to(faces[None, :, :], (B,) + faces.shape)
    return v, faces_b


# ---------------------------------------------------------------------------
# main
# ---------------------------------------------------------------------------
if __name__ == "__main__":
    # small, module-consistent shapes
    B = 2
    DIM_IN = 256
    DIM_HIDDEN = [512, 1024]
    NV = 128          # template mesh vertices
    NF = 128          # template mesh faces

    key = jax.random.PRNGKey(0)
    k = jax.random.split(key, 8)

    def linear_init(kk, fan_in, fan_out):
        k1, k2 = jax.random.split(kk)
        bound = 1.0 / math.sqrt(fan_in)
        w = jax.random.uniform(k1, (fan_in, fan_out), jnp.float32, -bound, bound)
        b = jax.random.uniform(k2, (fan_out,), jnp.float32, -bound, bound)
        return w, b

    w1, b1 = linear_init(k[0], DIM_IN, DIM_HIDDEN[0])
    w2, b2 = linear_init(k[1], DIM_HIDDEN[0], DIM_HIDDEN[1])
    wc, bc = linear_init(k[2], DIM_HIDDEN[1], 3)
    wb, bb = linear_init(k[3], DIM_HIDDEN[1], NV * 3)
    params = dict(w1=w1, b1=b1, w2=w2, b2=b2, wc=wc, bc=bc, wb=wb, bb=bb)

    # synthetic template mesh (deterministic): |vertices_base * 0.5| in (0.05, 0.45)
    mag = jax.random.uniform(k[4], (NV, 3), jnp.float32, 0.1, 0.9)
    sgn = jnp.where(jax.random.bernoulli(k[5], 0.5, (NV, 3)), 1.0, -1.0)
    vertices_base = mag * sgn
    faces = jax.random.randint(k[6], (NF, 3), 0, NV, dtype=jnp.int32)

    x = jax.random.normal(k[7], (B, DIM_IN), jnp.float32)

    # one-time weight layout / dtype preparation (outside the jitted forward)
    prep = prepare_params(params, vertices_base)

    fwd = jax.jit(decoder_forward)
    vertices, faces_out = fwd(prep, faces, x)
    jax.block_until_ready((vertices, faces_out))

    v_ref, f_ref = jax.jit(decoder_reference)(params, vertices_base, faces, x)
    assert vertices.shape == (B, NV, 3) and faces_out.shape == (B, NF, 3)
    # bf16 weight streaming vs f32 reference: deviation is ~1e-3, well inside tol.
    assert jnp.allclose(vertices, v_ref, rtol=1e-2, atol=1e-2)
    assert jnp.array_equal(faces_out, f_ref)

    print("KERNEL_OK")
</pallas_src>

<mosaic_0001>
module attributes {stable_mosaic.version = 11 : i64} {
  func.func @_decoder_kernel(%arg0: memref<2x256xf32, #tpu.memory_space<vmem>>, %arg1: memref<256x512xbf16, #tpu.memory_space<vmem>>, %arg2: memref<1x512xf32, #tpu.memory_space<vmem>>, %arg3: memref<512x1024xbf16, #tpu.memory_space<vmem>>, %arg4: memref<1x1024xf32, #tpu.memory_space<vmem>>, %arg5: memref<1024x512xbf16, #tpu.memory_space<vmem>>, %arg6: memref<1x512xf32, #tpu.memory_space<vmem>>, %arg7: memref<1x384xf32, #tpu.memory_space<vmem>>, %arg8: memref<1x384xf32, #tpu.memory_space<vmem>>, %arg9: memref<2x384xf32, #tpu.memory_space<vmem>>) attributes {dimension_semantics = [], scalar_prefetch = 0 : i64, scratch_operands = 0 : i64, tpu.core_type = #tpu.core_type<tc>} {
    %c0 = arith.constant 0 : index
    %c0_0 = arith.constant 0 : index
    %0 = vector.load %arg0[%c0, %c0_0] : memref<2x256xf32, #tpu.memory_space<vmem>>, vector<2x256xf32>
    %1 = arith.truncf %0 : vector<2x256xf32> to vector<2x256xbf16>
    %c0_1 = arith.constant 0 : index
    %c0_2 = arith.constant 0 : index
    %2 = vector.load %arg1[%c0_1, %c0_2] : memref<256x512xbf16, #tpu.memory_space<vmem>>, vector<256x512xbf16>
    %cst = arith.constant dense<0.000000e+00> : vector<2x512xf32>
    %3 = tpu.matmul %1, %2, %cst {dimension_numbers = #tpu.dot_dimension_numbers<[1], [0], [0], [1], [0, 0, 1, 1], [], []>} : vector<2x256xbf16>, vector<256x512xbf16>, vector<2x512xf32> -> vector<2x512xf32>
    %c0_3 = arith.constant 0 : index
    %c0_4 = arith.constant 0 : index
    %4 = vector.load %arg2[%c0_3, %c0_4] : memref<1x512xf32, #tpu.memory_space<vmem>>, vector<1x512xf32>
    %5 = vector.broadcast %4 : vector<1x512xf32> to vector<2x512xf32>
    %6 = arith.addf %3, %5 : vector<2x512xf32>
    %cst_5 = arith.constant 0.000000e+00 : f32
    %7 = vector.broadcast %cst_5 : f32 to vector<2x512xf32>
    %8 = arith.maximumf %6, %7 : vector<2x512xf32>
    %9 = arith.truncf %8 : vector<2x512xf32> to vector<2x512xbf16>
    %c0_6 = arith.constant 0 : index
    %c0_7 = arith.constant 0 : index
    %10 = vector.load %arg3[%c0_6, %c0_7] : memref<512x1024xbf16, #tpu.memory_space<vmem>>, vector<512x1024xbf16>
    %cst_8 = arith.constant dense<0.000000e+00> : vector<2x1024xf32>
    %11 = tpu.matmul %9, %10, %cst_8 {dimension_numbers = #tpu.dot_dimension_numbers<[1], [0], [0], [1], [0, 0, 1, 1], [], []>} : vector<2x512xbf16>, vector<512x1024xbf16>, vector<2x1024xf32> -> vector<2x1024xf32>
    %c0_9 = arith.constant 0 : index
    %c0_10 = arith.constant 0 : index
    %12 = vector.load %arg4[%c0_9, %c0_10] : memref<1x1024xf32, #tpu.memory_space<vmem>>, vector<1x1024xf32>
    %13 = vector.broadcast %12 : vector<1x1024xf32> to vector<2x1024xf32>
    %14 = arith.addf %11, %13 : vector<2x1024xf32>
    %cst_11 = arith.constant 0.000000e+00 : f32
    %15 = vector.broadcast %cst_11 : f32 to vector<2x1024xf32>
    %16 = arith.maximumf %14, %15 : vector<2x1024xf32>
    %17 = arith.truncf %16 : vector<2x1024xf32> to vector<2x1024xbf16>
    %c0_12 = arith.constant 0 : index
    %c0_13 = arith.constant 0 : index
    %18 = vector.load %arg5[%c0_12, %c0_13] : memref<1024x512xbf16, #tpu.memory_space<vmem>>, vector<1024x512xbf16>
    %cst_14 = arith.constant dense<0.000000e+00> : vector<2x512xf32>
    %19 = tpu.matmul %17, %18, %cst_14 {dimension_numbers = #tpu.dot_dimension_numbers<[1], [0], [0], [1], [0, 0, 1, 1], [], []>} : vector<2x1024xbf16>, vector<1024x512xbf16>, vector<2x512xf32> -> vector<2x512xf32>
    %c0_15 = arith.constant 0 : index
    %c0_16 = arith.constant 0 : index
    %20 = vector.load %arg6[%c0_15, %c0_16] : memref<1x512xf32, #tpu.memory_space<vmem>>, vector<1x512xf32>
    %21 = vector.broadcast %20 : vector<1x512xf32> to vector<2x512xf32>
    %22 = arith.addf %19, %21 : vector<2x512xf32>
    %23 = vector.extract_strided_slice %22 {offsets = [0, 0], sizes = [2, 3], strides = [1, 1]} : vector<2x512xf32> to vector<2x3xf32>
    %24 = math.tanh %23 : vector<2x3xf32>
    %25 = vector.extract_strided_slice %22 {offsets = [0, 128], sizes = [2, 384], strides = [1, 1]} : vector<2x512xf32> to vector<2x384xf32>
    %26 = vector.extract_strided_slice %24 {offsets = [0, 0], sizes = [2, 1], strides = [1, 1]} : vector<2x3xf32> to vector<2x1xf32>
    %27 = vector.shape_cast %26 : vector<2x1xf32> to vector<2x1xf32>
    %28 = vector.broadcast %27 : vector<2x1xf32> to vector<2x128xf32>
    %29 = vector.extract_strided_slice %24 {offsets = [0, 1], sizes = [2, 1], strides = [1, 1]} : vector<2x3xf32> to vector<2x1xf32>
    %30 = vector.shape_cast %29 : vector<2x1xf32> to vector<2x1xf32>
    %31 = vector.broadcast %30 : vector<2x1xf32> to vector<2x128xf32>
    %32 = vector.extract_strided_slice %24 {offsets = [0, 2], sizes = [2, 1], strides = [1, 1]} : vector<2x3xf32> to vector<2x1xf32>
    %33 = vector.shape_cast %32 : vector<2x1xf32> to vector<2x1xf32>
    %34 = vector.broadcast %33 : vector<2x1xf32> to vector<2x128xf32>
    %35 = tpu.concatenate %28, %31, %34 in 1 : vector<2x128xf32>, vector<2x128xf32>, vector<2x128xf32> -> vector<2x384xf32>
    %c0_17 = arith.constant 0 : index
    %c0_18 = arith.constant 0 : index
    %36 = vector.load %arg7[%c0_17, %c0_18] : memref<1x384xf32, #tpu.memory_space<vmem>>, vector<1x384xf32>
    %c0_19 = arith.constant 0 : index
    %c0_20 = arith.constant 0 : index
    %37 = vector.load %arg8[%c0_19, %c0_20] : memref<1x384xf32, #tpu.memory_space<vmem>>, vector<1x384xf32>
    %38 = vector.broadcast %37 : vector<1x384xf32> to vector<2x384xf32>
    %39 = arith.addf %38, %25 : vector<2x384xf32>
    %40 = arith.negf %39 : vector<2x384xf32>
    %41 = math.exp %40 : vector<2x384xf32>
    %cst_21 = arith.constant 1.000000e+00 : f32
    %42 = vector.broadcast %cst_21 : f32 to vector<2x384xf32>
    %43 = arith.addf %42, %41 : vector<2x384xf32>
    %44 = arith.divf %42, %43 : vector<2x384xf32>
    %45 = vector.broadcast %36 : vector<1x384xf32> to vector<2x384xf32>
    %46 = arith.mulf %44, %45 : vector<2x384xf32>
    %47 = vector.broadcast %36 : vector<1x384xf32> to vector<2x384xf32>
    %48 = arith.mulf %47, %35 : vector<2x384xf32>
    %cst_22 = arith.constant 1.000000e+00 : f32
    %49 = vector.broadcast %cst_22 : f32 to vector<2x384xf32>
    %50 = arith.subf %49, %48 : vector<2x384xf32>
    %51 = arith.mulf %46, %50 : vector<2x384xf32>
    %52 = arith.addf %51, %35 : vector<2x384xf32>
    %cst_23 = arith.constant 5.000000e-01 : f32
    %53 = vector.broadcast %cst_23 : f32 to vector<2x384xf32>
    %54 = arith.mulf %52, %53 : vector<2x384xf32>
    %c0_24 = arith.constant 0 : index
    %c0_25 = arith.constant 0 : index
    %55 = vector.load %arg9[%c0_24, %c0_25] : memref<2x384xf32, #tpu.memory_space<vmem>>, vector<2x384xf32>
    tpu.vector_store %arg9[%c0_24, %c0_25], %54 {strides = array<i32>} : memref<2x384xf32, #tpu.memory_space<vmem>>, vector<2x384xf32>,
    return
  }
}

</mosaic_0001>

<llo_original>
// kernel: decoder_forward.1
$region0: #{decoder_forward.1}
  #allocation0 [shape = 'u32[]', space=smem, size = 0x4, offset = 0x4, fixed_abs, tag = 'smem constant byte address 0x4 - core index']
  #allocation1 [shape = 'u32[144,128]{1,0:T(1,128)}', space=vmem, size = 0x12000, scoped, tag = 'internal scratch']
  %s0 = inlined_call_operand.vmem [shape: f32[2,256], index: 0, kind: input, shape index: {}]
  %s1 = inlined_call_operand.hbm [shape: bf16[256,512], index: 1, kind: input, shape index: {}]
  %s2 = inlined_call_operand.hbm [shape: f32[1,512], index: 2, kind: input, shape index: {}]
  %s3 = inlined_call_operand.hbm [shape: bf16[512,1024], index: 3, kind: input, shape index: {}]
  %s4 = inlined_call_operand.hbm [shape: f32[1,1024], index: 4, kind: input, shape index: {}]
  %s5 = inlined_call_operand.hbm [shape: bf16[1024,512], index: 5, kind: input, shape index: {}]
  %s6 = inlined_call_operand.hbm [shape: f32[1,512], index: 6, kind: input, shape index: {}]
  %s7 = inlined_call_operand.vmem [shape: f32[1,384], index: 7, kind: input, shape index: {}]
  %s8 = inlined_call_operand.hbm [shape: f32[1,384], index: 8, kind: input, shape index: {}]
  %s9 = inlined_call_operand.vmem [shape: f32[2,384], index: 9, kind: output, shape index: {}]
  %s10 = sld [smem:[#allocation0]]
  $region74: #{decoder_forward.1} parent=0
    _
  %s12 = ssub.s32 1, %s10
  %s13 = scalar_select 0, %s12, %s10
  $region1: #{decoder_forward.1} parent=0
    #allocation2 [shape = 'u8[262144]{0}', space=vmem, size = 0x40000, scoped, tag = 'input window, operand 1, single buffered']
    #allocation3 [shape = 's32[1]{0}', space=sflag, size = 0x4, scoped, tag = 'scoped memory for decoder_forward.1']
    #allocation4 [shape = 'u8[2048]{0}', space=vmem, size = 0x800, scoped, tag = 'input window, operand 2, single buffered']
    #allocation5 [shape = 's32[1]{0}', space=sflag, size = 0x4, scoped, tag = 'scoped memory for decoder_forward.1']
    #allocation6 [shape = 'u8[1048576]{0}', space=vmem, size = 0x100000, scoped, tag = 'input window, operand 3, single buffered']
    #allocation7 [shape = 'u8[4096]{0}', space=vmem, size = 0x1000, scoped, tag = 'input window, operand 4, single buffered']
    #allocation8 [shape = 's32[1]{0}', space=sflag, size = 0x4, scoped, tag = 'scoped memory for decoder_forward.1']
    #allocation9 [shape = 'u8[1048576]{0}', space=vmem, size = 0x100000, scoped, tag = 'input window, operand 5, single buffered']
    #allocation10 [shape = 'u8[2048]{0}', space=vmem, size = 0x800, scoped, tag = 'input window, operand 6, single buffered']
    #allocation11 [shape = 's32[1]{0}', space=sflag, size = 0x4, scoped, tag = 'scoped memory for decoder_forward.1']
    #allocation12 [shape = 'u8[1536]{0}', space=vmem, size = 0x800, scoped, tag = 'input window, operand 8, single buffered']
    %14 = vsyncpa [#allocation3], 0
    %15 = vsyncpa [#allocation5], 0
    %16 = vsyncpa [#allocation8], 0
    %17 = vsyncpa [#allocation11], 0
    // Predicated region
    $region2: #{decoder_forward.1} parent=1 // pred_check
      _
    $region3: #{decoder_forward.1} parent=1 // pred_check_branch
      %19 = sbr.rel (0) target = $region5
    $region4: #{decoder_forward.1} parent=1 // pred_region
      _
    $region5: #{decoder_forward.1} parent=1 // pred_fallthru
      _
    // Predicated region
    $region6: #{decoder_forward.1} parent=1 // pred_check
      _
    $region7: #{decoder_forward.1} parent=1 // pred_check_branch
      %21 = sbr.rel (0) target = $region9
    $region8: #{decoder_forward.1} parent=1 // pred_region
      %s23 = ssub.s32 8192, 8192
      %24 = vsyncadd [#allocation3], %s23
      %s25 = sshll.u32 [#allocation2], 4
      %s26 = int_to_ptr.vmem [resolvable:$true] %s25
      %31 = dma.hbm_to_vmem [thread:$0]  %s1, 8192, %s26, [#allocation3], 256, 256, 16
    $region9: #{decoder_forward.1} parent=1 // pred_fallthru
      _
    // Predicated region
    $region10: #{decoder_forward.1} parent=1 // pred_check
      _
    $region11: #{decoder_forward.1} parent=1 // pred_check_branch
      %33 = sbr.rel (0) target = $region13
    $region12: #{decoder_forward.1} parent=1 // pred_region
      %s35 = ssub.s32 64, 64
      %36 = vsyncadd [#allocation5], %s35
      %s38 = sshll.u32 [#allocation4], 4
      %s39 = int_to_ptr.vmem [resolvable:$true] %s38
      %41 = dma.hbm_to_vmem [thread:$0]  %s2, 64, %s39, [#allocation5]
    $region13: #{decoder_forward.1} parent=1 // pred_fallthru
      _
    // Predicated region
    $region14: #{decoder_forward.1} parent=1 // pred_check
      _
    $region15: #{decoder_forward.1} parent=1 // pred_check_branch
      %43 = sbr.rel (0) target = $region17
    $region16: #{decoder_forward.1} parent=1 // pred_region
      %s45 = ssub.s32 32768, 32768
      %46 = vsyncadd [#allocation5], %s45
      %s47 = sshll.u32 [#allocation6], 4
      %s48 = int_to_ptr.vmem [resolvable:$true] %s47
      %53 = dma.hbm_to_vmem [thread:$0]  %s3, 32768, %s48, [#allocation5], 512, 512, 32
    $region17: #{decoder_forward.1} parent=1 // pred_fallthru
      _
    // Predicated region
    $region18: #{decoder_forward.1} parent=1 // pred_check
      _
    $region19: #{decoder_forward.1} parent=1 // pred_check_branch
      %55 = sbr.rel (0) target = $region21
    $region20: #{decoder_forward.1} parent=1 // pred_region
      %s57 = ssub.s32 128, 128
      %58 = vsyncadd [#allocation8], %s57
      %s60 = sshll.u32 [#allocation7], 4
      %s61 = int_to_ptr.vmem [resolvable:$true] %s60
      %63 = dma.hbm_to_vmem [thread:$0]  %s4, 128, %s61, [#allocation8]
    $region21: #{decoder_forward.1} parent=1 // pred_fallthru
      _
    // Predicated region
    $region22: #{decoder_forward.1} parent=1 // pred_check
      _
    $region23: #{decoder_forward.1} parent=1 // pred_check_branch
      %65 = sbr.rel (0) target = $region25
    $region24: #{decoder_forward.1} parent=1 // pred_region
      %s67 = ssub.s32 32768, 32768
      %68 = vsyncadd [#allocation8], %s67
      %s69 = sshll.u32 [#allocation9], 4
      %s70 = int_to_ptr.vmem [resolvable:$true] %s69
      %75 = dma.hbm_to_vmem [thread:$0]  %s5, 32768, %s70, [#allocation8], 256, 256, 16
    $region25: #{decoder_forward.1} parent=1 // pred_fallthru
      _
    // Predicated region
    $region26: #{decoder_forward.1} parent=1 // pred_check
      _
    $region27: #{decoder_forward.1} parent=1 // pred_check_branch
      %77 = sbr.rel (0) target = $region29
    $region28: #{decoder_forward.1} parent=1 // pred_region
      %s79 = ssub.s32 64, 64
      %80 = vsyncadd [#allocation11], %s79
      %s82 = sshll.u32 [#allocation10], 4
      %s83 = int_to_ptr.vmem [resolvable:$true] %s82
      %85 = dma.hbm_to_vmem [thread:$0]  %s6, 64, %s83, [#allocation11]
    $region29: #{decoder_forward.1} parent=1 // pred_fallthru
      _
    // Predicated region
    $region30: #{decoder_forward.1} parent=1 // pred_check
      _
    $region31: #{decoder_forward.1} parent=1 // pred_check_branch
      %87 = sbr.rel (0) target = $region33
    $region32: #{decoder_forward.1} parent=1 // pred_region
      _
    $region33: #{decoder_forward.1} parent=1 // pred_fallthru
      _
    // Predicated region
    $region34: #{decoder_forward.1} parent=1 // pred_check
      _
    $region35: #{decoder_forward.1} parent=1 // pred_check_branch
      %89 = sbr.rel (0) target = $region37
    $region36: #{decoder_forward.1} parent=1 // pred_region
      %s91 = ssub.s32 48, 48
      %92 = vsyncadd [#allocation11], %s91
      %s94 = sshll.u32 [#allocation12], 4
      %s95 = int_to_ptr.vmem [resolvable:$true] %s94
      %97 = dma.hbm_to_vmem [thread:$0]  %s8, 48, %s95, [#allocation11]
    $region37: #{decoder_forward.1} parent=1 // pred_fallthru
      _
    // Predicated region
    $region38: #{decoder_forward.1} parent=1 // pred_check
      _
    $region39: #{decoder_forward.1} parent=1 // pred_check_branch
      %99 = sbr.rel (0) target = $region41
    $region40: #{decoder_forward.1} parent=1 // pred_region
      %100 = dma.done [#allocation3], 8192
    $region41: #{decoder_forward.1} parent=1 // pred_fallthru
      _
    // Predicated region
    $region42: #{decoder_forward.1} parent=1 // pred_check
      _
    $region43: #{decoder_forward.1} parent=1 // pred_check_branch
      %102 = sbr.rel (0) target = $region45
    $region44: #{decoder_forward.1} parent=1 // pred_region
      %103 = dma.done [#allocation5], 64
    $region45: #{decoder_forward.1} parent=1 // pred_fallthru
      _
    // Predicated region
    $region46: #{decoder_forward.1} parent=1 // pred_check
      _
    $region47: #{decoder_forward.1} parent=1 // pred_check_branch
      %105 = sbr.rel (0) target = $region49
    $region48: #{decoder_forward.1} parent=1 // pred_region
      %106 = dma.done [#allocation5], 32768
    $region49: #{decoder_forward.1} parent=1 // pred_fallthru
      _
    // Predicated region
    $region50: #{decoder_forward.1} parent=1 // pred_check
      _
    $region51: #{decoder_forward.1} parent=1 // pred_check_branch
      %108 = sbr.rel (0) target = $region53
    $region52: #{decoder_forward.1} parent=1 // pred_region
      %109 = dma.done [#allocation8], 128
    $region53: #{decoder_forward.1} parent=1 // pred_fallthru
      _
    // Predicated region
    $region54: #{decoder_forward.1} parent=1 // pred_check
      _
    $region55: #{decoder_forward.1} parent=1 // pred_check_branch
      %111 = sbr.rel (0) target = $region57
    $region56: #{decoder_forward.1} parent=1 // pred_region
      %112 = dma.done [#allocation8], 32768
    $region57: #{decoder_forward.1} parent=1 // pred_fallthru
      _
    // Predicated region
    $region58: #{decoder_forward.1} parent=1 // pred_check
      _
    $region59: #{decoder_forward.1} parent=1 // pred_check_branch
      %114 = sbr.rel (0) target = $region61
    $region60: #{decoder_forward.1} parent=1 // pred_region
      %115 = dma.done [#allocation11], 64
    $region61: #{decoder_forward.1} parent=1 // pred_fallthru
      _
    // Predicated region
    $region62: #{decoder_forward.1} parent=1 // pred_check
      _
    $region63: #{decoder_forward.1} parent=1 // pred_check_branch
      %117 = sbr.rel (0) target = $region65
    $region64: #{decoder_forward.1} parent=1 // pred_region
      %118 = dma.done [#allocation11], 48
    $region65: #{decoder_forward.1} parent=1 // pred_fallthru
      _
    %v119 = vld [vmem:[%s0] sm:$0xf]
    %v122 = vunpack.c.l.s4 1983009808
    %v123 = vunpack.c.0.s8 %v122
    %v124 = vlaneseq
    %v125 = vshrl.u32 %v124, 7
    %v126 = vsub.s32 %v123, %v125
    %v127 = vrot.slane %v119, %v126
    %v128 = vcombine.high %v127, %v127
    %v131 = vpack.c.bf16 %v127, %v127
    %v132 = vpack.c.bf16 %v128, %v128
    %v133 = vld [vmem:[#allocation2] sm:$0xff]
    %v134 = vld [vmem:[#allocation2 + $0x8] sm:$0xff]
    %v135 = vld [vmem:[#allocation2 + $0x10] sm:$0xff]
    %v136 = vld [vmem:[#allocation2 + $0x18] sm:$0xff]
    %v137 = vld [vmem:[#allocation2 + $0x20] sm:$0xff]
    %v138 = vld [vmem:[#allocation2 + $0x28] sm:$0xff]
    %v139 = vld [vmem:[#allocation2 + $0x30] sm:$0xff]
    %v140 = vld [vmem:[#allocation2 + $0x38] sm:$0xff]
    %v141 = vld [vmem:[#allocation2 + $0x40] sm:$0xff]
    %v142 = vld [vmem:[#allocation2 + $0x48] sm:$0xff]
    %v143 = vld [vmem:[#allocation2 + $0x50] sm:$0xff]
    %v144 = vld [vmem:[#allocation2 + $0x58] sm:$0xff]
    %v145 = vld [vmem:[#allocation2 + $0x60] sm:$0xff]
    %v146 = vld [vmem:[#allocation2 + $0x68] sm:$0xff]
    %v147 = vld [vmem:[#allocation2 + $0x70] sm:$0xff]
    %v148 = vld [vmem:[#allocation2 + $0x78] sm:$0xff]
    %v149 = vld [vmem:[#allocation2 + $0x80] sm:$0xff]
    %v150 = vld [vmem:[#allocation2 + $0x88] sm:$0xff]
    %v151 = vld [vmem:[#allocation2 + $0x90] sm:$0xff]
    %v152 = vld [vmem:[#allocation2 + $0x98] sm:$0xff]
    %v153 = vld [vmem:[#allocation2 + $0xa0] sm:$0xff]
    %v154 = vld [vmem:[#allocation2 + $0xa8] sm:$0xff]
    %v155 = vld [vmem:[#allocation2 + $0xb0] sm:$0xff]
    %v156 = vld [vmem:[#allocation2 + $0xb8] sm:$0xff]
    %v157 = vld [vmem:[#allocation2 + $0xc0] sm:$0xff]
    %v158 = vld [vmem:[#allocation2 + $0xc8] sm:$0xff]
    %v159 = vld [vmem:[#allocation2 + $0xd0] sm:$0xff]
    %v160 = vld [vmem:[#allocation2 + $0xd8] sm:$0xff]
    %v161 = vld [vmem:[#allocation2 + $0xe0] sm:$0xff]
    %v162 = vld [vmem:[#allocation2 + $0xe8] sm:$0xff]
    %v163 = vld [vmem:[#allocation2 + $0xf0] sm:$0xff]
    %v164 = vld [vmem:[#allocation2 + $0xf8] sm:$0xff]
    %v165 = vld [vmem:[#allocation2 + $0x100] sm:$0xff]
    %v166 = vld [vmem:[#allocation2 + $0x108] sm:$0xff]
    %v167 = vld [vmem:[#allocation2 + $0x110] sm:$0xff]
    %v168 = vld [vmem:[#allocation2 + $0x118] sm:$0xff]
    %v169 = vld [vmem:[#allocation2 + $0x120] sm:$0xff]
    %v170 = vld [vmem:[#allocation2 + $0x128] sm:$0xff]
    %v171 = vld [vmem:[#allocation2 + $0x130] sm:$0xff]
    %v172 = vld [vmem:[#allocation2 + $0x138] sm:$0xff]
    %v173 = vld [vmem:[#allocation2 + $0x140] sm:$0xff]
    %v174 = vld [vmem:[#allocation2 + $0x148] sm:$0xff]
    %v175 = vld [vmem:[#allocation2 + $0x150] sm:$0xff]
    %v176 = vld [vmem:[#allocation2 + $0x158] sm:$0xff]
    %v177 = vld [vmem:[#allocation2 + $0x160] sm:$0xff]
    %v178 = vld [vmem:[#allocation2 + $0x168] sm:$0xff]
    %v179 = vld [vmem:[#allocation2 + $0x170] sm:$0xff]
    %v180 = vld [vmem:[#allocation2 + $0x178] sm:$0xff]
    %v181 = vld [vmem:[#allocation2 + $0x180] sm:$0xff]
    %v182 = vld [vmem:[#allocation2 + $0x188] sm:$0xff]
    %v183 = vld [vmem:[#allocation2 + $0x190] sm:$0xff]
    %v184 = vld [vmem:[#allocation2 + $0x198] sm:$0xff]
    %v185 = vld [vmem:[#allocation2 + $0x1a0] sm:$0xff]
    %v186 = vld [vmem:[#allocation2 + $0x1a8] sm:$0xff]
    %v187 = vld [vmem:[#allocation2 + $0x1b0] sm:$0xff]
    %v188 = vld [vmem:[#allocation2 + $0x1b8] sm:$0xff]
    %v189 = vld [vmem:[#allocation2 + $0x1c0] sm:$0xff]
    %v190 = vld [vmem:[#allocation2 + $0x1c8] sm:$0xff]
    %v191 = vld [vmem:[#allocation2 + $0x1d0] sm:$0xff]
    %v192 = vld [vmem:[#allocation2 + $0x1d8] sm:$0xff]
    %v193 = vld [vmem:[#allocation2 + $0x1e0] sm:$0xff]
    %v194 = vld [vmem:[#allocation2 + $0x1e8] sm:$0xff]
    %v195 = vld [vmem:[#allocation2 + $0x1f0] sm:$0xff]
    %v196 = vld [vmem:[#allocation2 + $0x1f8] sm:$0xff]
    %v197 = vld [vmem:[#allocation4] sm:$0xf]
    %v199 = vlaneseq
    %v200 = vshrl.u32 %v199, 7
    %v201 = vsub.s32 0, %v200
    %v202 = vrot.slane %v197, %v201
    %v203 = vlaneseq
    %v204 = vshrl.u32 %v203, 7
    %v205 = vsub.s32 1, %v204
    %v206 = vrot.slane %v197, %v205
    %v207 = vlaneseq
    %v208 = vshrl.u32 %v207, 7
    %v209 = vsub.s32 2, %v208
    %v210 = vrot.slane %v197, %v209
    %v211 = vlaneseq
    %v212 = vshrl.u32 %v211, 7
    %v213 = vsub.s32 3, %v212
    %v214 = vrot.slane %v197, %v213
    %v283 = vunpack.c.l.b16 %v133
    %v284 = vunpack.c.h.b16 %v133
    %v285 = vunpack.c.l.b16 %v134
    %v286 = vunpack.c.h.b16 %v134
    %v287 = vunpack.c.l.b16 %v135
    %v288 = vunpack.c.h.b16 %v135
    %v289 = vunpack.c.l.b16 %v136
    %v290 = vunpack.c.h.b16 %v136
    %v291 = vunpack.c.l.b16 %v137
    %v292 = vunpack.c.h.b16 %v137
    %v293 = vunpack.c.l.b16 %v138
    %v294 = vunpack.c.h.b16 %v138
    %v295 = vunpack.c.l.b16 %v139
    %v296 = vunpack.c.h.b16 %v139
    %v297 = vunpack.c.l.b16 %v140
    %v298 = vunpack.c.h.b16 %v140
    %v299 = vunpack.c.l.b16 %v141
    %v300 = vunpack.c.h.b16 %v141
    %v301 = vunpack.c.l.b16 %v142
    %v302 = vunpack.c.h.b16 %v142
    %v303 = vunpack.c.l.b16 %v143
    %v304 = vunpack.c.h.b16 %v143
    %v305 = vunpack.c.l.b16 %v144
    %v306 = vunpack.c.h.b16 %v144
    %v307 = vunpack.c.l.b16 %v145
    %v308 = vunpack.c.h.b16 %v145
    %v309 = vunpack.c.l.b16 %v146
    %v310 = vunpack.c.h.b16 %v146
    %v311 = vunpack.c.l.b16 %v147
    %v312 = vunpack.c.h.b16 %v147
    %v313 = vunpack.c.l.b16 %v148
    %v314 = vunpack.c.h.b16 %v148
    %v315 = vunpack.c.l.b16 %v149
    %v316 = vunpack.c.h.b16 %v149
    %v317 = vunpack.c.l.b16 %v150
    %v318 = vunpack.c.h.b16 %v150
    %v319 = vunpack.c.l.b16 %v151
    %v320 = vunpack.c.h.b16 %v151
    %v321 = vunpack.c.l.b16 %v152
    %v322 = vunpack.c.h.b16 %v152
    %v323 = vunpack.c.l.b16 %v153
    %v324 = vunpack.c.h.b16 %v153
    %v325 = vunpack.c.l.b16 %v154
    %v326 = vunpack.c.h.b16 %v154
    %v327 = vunpack.c.l.b16 %v155
    %v328 = vunpack.c.h.b16 %v155
    %v329 = vunpack.c.l.b16 %v156
    %v330 = vunpack.c.h.b16 %v156
    %v331 = vunpack.c.l.b16 %v157
    %v332 = vunpack.c.h.b16 %v157
    %v333 = vunpack.c.l.b16 %v158
    %v334 = vunpack.c.h.b16 %v158
    %v335 = vunpack.c.l.b16 %v159
    %v336 = vunpack.c.h.b16 %v159
    %v337 = vunpack.c.l.b16 %v160
    %v338 = vunpack.c.h.b16 %v160
    %v339 = vunpack.c.l.b16 %v161
    %v340 = vunpack.c.h.b16 %v161
    %v341 = vunpack.c.l.b16 %v162
    %v342 = vunpack.c.h.b16 %v162
    %v343 = vunpack.c.l.b16 %v163
    %v344 = vunpack.c.h.b16 %v163
    %v345 = vunpack.c.l.b16 %v164
    %v346 = vunpack.c.h.b16 %v164
    %v347 = vunpack.c.l.b16 %v165
    %v348 = vunpack.c.h.b16 %v165
    %v349 = vunpack.c.l.b16 %v166
    %v350 = vunpack.c.h.b16 %v166
    %v351 = vunpack.c.l.b16 %v167
    %v352 = vunpack.c.h.b16 %v167
    %v353 = vunpack.c.l.b16 %v168
    %v354 = vunpack.c.h.b16 %v168
    %v355 = vunpack.c.l.b16 %v169
    %v356 = vunpack.c.h.b16 %v169
    %v357 = vunpack.c.l.b16 %v170
    %v358 = vunpack.c.h.b16 %v170
    %v359 = vunpack.c.l.b16 %v171
    %v360 = vunpack.c.h.b16 %v171
    %v361 = vunpack.c.l.b16 %v172
    %v362 = vunpack.c.h.b16 %v172
    %v363 = vunpack.c.l.b16 %v173
    %v364 = vunpack.c.h.b16 %v173
    %v365 = vunpack.c.l.b16 %v174
    %v366 = vunpack.c.h.b16 %v174
    %v367 = vunpack.c.l.b16 %v175
    %v368 = vunpack.c.h.b16 %v175
    %v369 = vunpack.c.l.b16 %v176
    %v370 = vunpack.c.h.b16 %v176
    %v371 = vunpack.c.l.b16 %v177
    %v372 = vunpack.c.h.b16 %v177
    %v373 = vunpack.c.l.b16 %v178
    %v374 = vunpack.c.h.b16 %v178
    %v375 = vunpack.c.l.b16 %v179
    %v376 = vunpack.c.h.b16 %v179
    %v377 = vunpack.c.l.b16 %v180
    %v378 = vunpack.c.h.b16 %v180
    %v379 = vunpack.c.l.b16 %v181
    %v380 = vunpack.c.h.b16 %v181
    %v381 = vunpack.c.l.b16 %v182
    %v382 = vunpack.c.h.b16 %v182
    %v383 = vunpack.c.l.b16 %v183
    %v384 = vunpack.c.h.b16 %v183
    %v385 = vunpack.c.l.b16 %v184
    %v386 = vunpack.c.h.b16 %v184
    %v387 = vunpack.c.l.b16 %v185
    %v388 = vunpack.c.h.b16 %v185
    %v389 = vunpack.c.l.b16 %v186
    %v390 = vunpack.c.h.b16 %v186
    %v391 = vunpack.c.l.b16 %v187
    %v392 = vunpack.c.h.b16 %v187
    %v393 = vunpack.c.l.b16 %v188
    %v394 = vunpack.c.h.b16 %v188
    %v395 = vunpack.c.l.b16 %v189
    %v396 = vunpack.c.h.b16 %v189
    %v397 = vunpack.c.l.b16 %v190
    %v398 = vunpack.c.h.b16 %v190
    %v399 = vunpack.c.l.b16 %v191
    %v400 = vunpack.c.h.b16 %v191
    %v401 = vunpack.c.l.b16 %v192
    %v402 = vunpack.c.h.b16 %v192
    %v403 = vunpack.c.l.b16 %v193
    %v404 = vunpack.c.h.b16 %v193
    %v405 = vunpack.c.l.b16 %v194
    %v406 = vunpack.c.h.b16 %v194
    %v407 = vunpack.c.l.b16 %v195
    %v408 = vunpack.c.h.b16 %v195
    %v409 = vunpack.c.l.b16 %v196
    %v410 = vunpack.c.h.b16 %v196
    %v411 = vpack.c.b16 %v287, %v283
    %v412 = vpack.c.b16 %v288, %v284
    %v413 = vpack.c.b16 %v289, %v285
    %v414 = vpack.c.b16 %v290, %v286
    %v415 = vpack.c.b16 %v295, %v291
    %v416 = vpack.c.b16 %v296, %v292
    %v417 = vpack.c.b16 %v297, %v293
    %v418 = vpack.c.b16 %v298, %v294
    %v419 = vpack.c.b16 %v303, %v299
    %v420 = vpack.c.b16 %v304, %v300
    %v421 = vpack.c.b16 %v305, %v301
    %v422 = vpack.c.b16 %v306, %v302
    %v423 = vpack.c.b16 %v311, %v307
    %v424 = vpack.c.b16 %v312, %v308
    %v425 = vpack.c.b16 %v313, %v309
    %v426 = vpack.c.b16 %v314, %v310
    %v427 = vpack.c.b16 %v319, %v315
    %v428 = vpack.c.b16 %v320, %v316
    %v429 = vpack.c.b16 %v321, %v317
    %v430 = vpack.c.b16 %v322, %v318
    %v431 = vpack.c.b16 %v327, %v323
    %v432 = vpack.c.b16 %v328, %v324
    %v433 = vpack.c.b16 %v329, %v325
    %v434 = vpack.c.b16 %v330, %v326
    %v435 = vpack.c.b16 %v335, %v331
    %v436 = vpack.c.b16 %v336, %v332
    %v437 = vpack.c.b16 %v337, %v333
    %v438 = vpack.c.b16 %v338, %v334
    %v439 = vpack.c.b16 %v343, %v339
    %v440 = vpack.c.b16 %v344, %v340
    %v441 = vpack.c.b16 %v345, %v341
    %v442 = vpack.c.b16 %v346, %v342
    %v443 = vpack.c.b16 %v351, %v347
    %v444 = vpack.c.b16 %v352, %v348
    %v445 = vpack.c.b16 %v353, %v349
    %v446 = vpack.c.b16 %v354, %v350
    %v447 = vpack.c.b16 %v359, %v355
    %v448 = vpack.c.b16 %v360, %v356
    %v449 = vpack.c.b16 %v361, %v357
    %v450 = vpack.c.b16 %v362, %v358
    %v451 = vpack.c.b16 %v367, %v363
    %v452 = vpack.c.b16 %v368, %v364
    %v453 = vpack.c.b16 %v369, %v365
    %v454 = vpack.c.b16 %v370, %v366
    %v455 = vpack.c.b16 %v375, %v371
    %v456 = vpack.c.b16 %v376, %v372
    %v457 = vpack.c.b16 %v377, %v373
    %v458 = vpack.c.b16 %v378, %v374
    %v459 = vpack.c.b16 %v383, %v379
    %v460 = vpack.c.b16 %v384, %v380
    %v461 = vpack.c.b16 %v385, %v381
    %v462 = vpack.c.b16 %v386, %v382
    %v463 = vpack.c.b16 %v391, %v387
    %v464 = vpack.c.b16 %v392, %v388
    %v465 = vpack.c.b16 %v393, %v389
    %v466 = vpack.c.b16 %v394, %v390
    %v467 = vpack.c.b16 %v399, %v395
    %v468 = vpack.c.b16 %v400, %v396
    %v469 = vpack.c.b16 %v401, %v397
    %v470 = vpack.c.b16 %v402, %v398
    %v471 = vpack.c.b16 %v407, %v403
    %v472 = vpack.c.b16 %v408, %v404
    %v473 = vpack.c.b16 %v409, %v405
    %v474 = vpack.c.b16 %v410, %v406
    %539 = vmatprep.subr.bf16.mxu0 %v440
    %540 = vmatpush1.bf16.msra.mxu0 %v439
    %541 = vmatprep.subr.bf16.mxu0 %v436
    %542 = vmatpush1.bf16.msra.mxu0 %v435
    %543 = vmatprep.subr.bf16.mxu0 %v432
    %544 = vmatpush1.bf16.msra.mxu0 %v431
    %545 = vmatprep.subr.bf16.mxu0 %v428
    %546 = vmatpush1.bf16.msra.mxu0 %v427
    %547 = vmatprep.subr.bf16.mxu0 %v424
    %548 = vmatpush1.bf16.msra.mxu0 %v423
    %549 = vmatprep.subr.bf16.mxu0 %v420
    %550 = vmatpush1.bf16.msra.mxu0 %v419
    %551 = vmatprep.subr.bf16.mxu0 %v416
    %552 = vmatpush1.bf16.msra.mxu0 %v415
    %553 = vmatprep.subr.bf16.mxu0 %v412
    %554 = vmatpush1.bf16.msra.mxu0 %v411
    %555 = vmatprep.subr.bf16.mxu0 %v472
    %556 = vmatpush2.bf16.msra.mxu0 %v471
    %557 = vmatprep.subr.bf16.mxu0 %v468
    %558 = vmatpush2.bf16.msra.mxu0 %v467
    %559 = vmatprep.subr.bf16.mxu0 %v464
    %560 = vmatpush2.bf16.msra.mxu0 %v463
    %561 = vmatprep.subr.bf16.mxu0 %v460
    %562 = vmatpush2.bf16.msra.mxu0 %v459
    %563 = vmatprep.subr.bf16.mxu0 %v456
    %564 = vmatpush2.bf16.msra.mxu0 %v455
    %565 = vmatprep.subr.bf16.mxu0 %v452
    %566 = vmatpush2.bf16.msra.mxu0 %v451
    %567 = vmatprep.subr.bf16.mxu0 %v448
    %568 = vmatpush2.bf16.msra.mxu0 %v447
    %569 = vmatprep.subr.bf16.mxu0 %v444
    %570 = vmatpush2.bf16.msra.mxu0 %v443
    %571 = vmatprep.mubr.bf16.mxu0 %v132
    %572 = vmatmul.mubr.bf16.gmra.mxu0 %v131
    %v573 = vpop.f32.mrf.mxu0
    %v574 = vadd.f32 %v202, %v573
    %v575 = vpop.f32.mrf.mxu0
    %v576 = vadd.f32 %v206, %v575
    %v577 = vpop.f32.mrf.mxu0
    %v578 = vpop.f32.mrf.mxu0
    %579 = vdwg.mxu0
    %580 = vmatprep.subr.bf16.mxu0 %v442
    %581 = vmatpush1.bf16.msra.mxu0 %v441
    %582 = vmatprep.subr.bf16.mxu0 %v438
    %583 = vmatpush1.bf16.msra.mxu0 %v437
    %584 = vmatprep.subr.bf16.mxu0 %v434
    %585 = vmatpush1.bf16.msra.mxu0 %v433
    %586 = vmatprep.subr.bf16.mxu0 %v430
    %587 = vmatpush1.bf16.msra.mxu0 %v429
    %588 = vmatprep.subr.bf16.mxu0 %v426
    %589 = vmatpush1.bf16.msra.mxu0 %v425
    %590 = vmatprep.subr.bf16.mxu0 %v422
    %591 = vmatpush1.bf16.msra.mxu0 %v421
    %592 = vmatprep.subr.bf16.mxu0 %v418
    %593 = vmatpush1.bf16.msra.mxu0 %v417
    %594 = vmatprep.subr.bf16.mxu0 %v414
    %595 = vmatpush1.bf16.msra.mxu0 %v413
    %596 = vmatprep.subr.bf16.mxu0 %v474
    %597 = vmatpush2.bf16.msra.mxu0 %v473
    %598 = vmatprep.subr.bf16.mxu0 %v470
    %599 = vmatpush2.bf16.msra.mxu0 %v469
    %600 = vmatprep.subr.bf16.mxu0 %v466
    %601 = vmatpush2.bf16.msra.mxu0 %v465
    %602 = vmatprep.subr.bf16.mxu0 %v462
    %603 = vmatpush2.bf16.msra.mxu0 %v461
    %604 = vmatprep.subr.bf16.mxu0 %v458
    %605 = vmatpush2.bf16.msra.mxu0 %v457
    %606 = vmatprep.subr.bf16.mxu0 %v454
    %607 = vmatpush2.bf16.msra.mxu0 %v453
    %608 = vmatprep.subr.bf16.mxu0 %v450
    %609 = vmatpush2.bf16.msra.mxu0 %v449
    %610 = vmatprep.subr.bf16.mxu0 %v446
    %611 = vmatpush2.bf16.msra.mxu0 %v445
    %612 = vmatprep.mubr.bf16.mxu0 %v132
    %613 = vmatmul.mubr.bf16.gmra.mxu0 %v131
    %v614 = vpop.f32.mrf.mxu0
    %v615 = vadd.f32 %v210, %v614
    %v616 = vpop.f32.mrf.mxu0
    %v617 = vadd.f32 %v214, %v616
    %v618 = vpop.f32.mrf.mxu0
    %v619 = vpop.f32.mrf.mxu0
    %620 = vdwg.mxu0
    %v621 = vmax.f32 %v574, 0.0
    %v622 = vmax.f32 %v576, 0.0
    %v623 = vmax.f32 %v615, 0.0
    %v624 = vmax.f32 %v617, 0.0
    %v625 = vpack.c.bf16 %v621, %v621
    %v626 = vpack.c.bf16 %v622, %v622
    %v627 = vpack.c.bf16 %v623, %v623
    %v628 = vpack.c.bf16 %v624, %v624
    %v629 = vld [vmem:[#allocation6] sm:$0xff]
    %v630 = vld [vmem:[#allocation6 + $0x8] sm:$0xff]
    %v631 = vld [vmem:[#allocation6 + $0x10] sm:$0xff]
    %v632 = vld [vmem:[#allocation6 + $0x18] sm:$0xff]
    %v633 = vld [vmem:[#allocation6 + $0x20] sm:$0xff]
    %v634 = vld [vmem:[#allocation6 + $0x28] sm:$0xff]
    %v635 = vld [vmem:[#allocation6 + $0x30] sm:$0xff]
    %v636 = vld [vmem:[#allocation6 + $0x38] sm:$0xff]
    %v637 = vld [vmem:[#allocation6 + $0x40] sm:$0xff]
    %v638 = vld [vmem:[#allocation6 + $0x48] sm:$0xff]
    %v639 = vld [vmem:[#allocation6 + $0x50] sm:$0xff]
    %v640 = vld [vmem:[#allocation6 + $0x58] sm:$0xff]
    %v641 = vld [vmem:[#allocation6 + $0x60] sm:$0xff]
    %v642 = vld [vmem:[#allocation6 + $0x68] sm:$0xff]
    %v643 = vld [vmem:[#allocation6 + $0x70] sm:$0xff]
    %v644 = vld [vmem:[#allocation6 + $0x78] sm:$0xff]
    %v645 = vld [vmem:[#allocation6 + $0x80] sm:$0xff]
    %v646 = vld [vmem:[#allocation6 + $0x88] sm:$0xff]
    %v647 = vld [vmem:[#allocation6 + $0x90] sm:$0xff]
    %v648 = vld [vmem:[#allocation6 + $0x98] sm:$0xff]
    %v649 = vld [vmem:[#allocation6 + $0xa0] sm:$0xff]
    %v650 = vld [vmem:[#allocation6 + $0xa8] sm:$0xff]
    %v651 = vld [vmem:[#allocation6 + $0xb0] sm:$0xff]
    %v652 = vld [vmem:[#allocation6 + $0xb8] sm:$0xff]
    %v653 = vld [vmem:[#allocation6 + $0xc0] sm:$0xff]
    %v654 = vld [vmem:[#allocation6 + $0xc8] sm:$0xff]
    %v655 = vld [vmem:[#allocation6 + $0xd0] sm:$0xff]
    %v656 = vld [vmem:[#allocation6 + $0xd8] sm:$0xff]
    %v657 = vld [vmem:[#allocation6 + $0xe0] sm:$0xff]
    %v658 = vld [vmem:[#allocation6 + $0xe8] sm:$0xff]
    %v659 = vld [vmem:[#allocation6 + $0xf0] sm:$0xff]
    %v660 = vld [vmem:[#allocation6 + $0xf8] sm:$0xff]
    %v661 = vld [vmem:[#allocation6 + $0x100] sm:$0xff]
    %v662 = vld [vmem:[#allocation6 + $0x108] sm:$0xff]
    %v663 = vld [vmem:[#allocation6 + $0x110] sm:$0xff]
    %v664 = vld [vmem:[#allocation6 + $0x118] sm:$0xff]
    %v665 = vld [vmem:[#allocation6 + $0x120] sm:$0xff]
    %v666 = vld [vmem:[#allocation6 + $0x128] sm:$0xff]
    %v667 = vld [vmem:[#allocation6 + $0x130] sm:$0xff]
    %v668 = vld [vmem:[#allocation6 + $0x138] sm:$0xff]
    %v669 = vld [vmem:[#allocation6 + $0x140] sm:$0xff]
    %v670 = vld [vmem:[#allocation6 + $0x148] sm:$0xff]
    %v671 = vld [vmem:[#allocation6 + $0x150] sm:$0xff]
    %v672 = vld [vmem:[#allocation6 + $0x158] sm:$0xff]
    %v673 = vld [vmem:[#allocation6 + $0x160] sm:$0xff]
    %v674 = vld [vmem:[#allocation6 + $0x168] sm:$0xff]
    %v675 = vld [vmem:[#allocation6 + $0x170] sm:$0xff]
    %v676 = vld [vmem:[#allocation6 + $0x178] sm:$0xff]
    %v677 = vld [vmem:[#allocation6 + $0x180] sm:$0xff]
    %v678 = vld [vmem:[#allocation6 + $0x188] sm:$0xff]
    %v679 = vld [vmem:[#allocation6 + $0x190] sm:$0xff]
    %v680 = vld [vmem:[#allocation6 + $0x198] sm:$0xff]
    %v681 = vld [vmem:[#allocation6 + $0x1a0] sm:$0xff]
    %v682 = vld [vmem:[#allocation6 + $0x1a8] sm:$0xff]
    %v683 = vld [vmem:[#allocation6 + $0x1b0] sm:$0xff]
    %v684 = vld [vmem:[#allocation6 + $0x1b8] sm:$0xff]
    %v685 = vld [vmem:[#allocation6 + $0x1c0] sm:$0xff]
    %v686 = vld [vmem:[#allocation6 + $0x1c8] sm:$0xff]
    %v687 = vld [vmem:[#allocation6 + $0x1d0] sm:$0xff]
    %v688 = vld [vmem:[#allocation6 + $0x1d8] sm:$0xff]
    %v689 = vld [vmem:[#allocation6 + $0x1e0] sm:$0xff]
    %v690 = vld [vmem:[#allocation6 + $0x1e8] sm:$0xff]
    %v691 = vld [vmem:[#allocation6 + $0x1f0] sm:$0xff]
    %v692 = vld [vmem:[#allocation6 + $0x1f8] sm:$0xff]
    %v693 = vld [vmem:[#allocation6 + $0x200] sm:$0xff]
    %v694 = vld [vmem:[#allocation6 + $0x208] sm:$0xff]
    %v695 = vld [vmem:[#allocation6 + $0x210] sm:$0xff]
    %v696 = vld [vmem:[#allocation6 + $0x218] sm:$0xff]
    %v697 = vld [vmem:[#allocation6 + $0x220] sm:$0xff]
    %v698 = vld [vmem:[#allocation6 + $0x228] sm:$0xff]
    %v699 = vld [vmem:[#allocation6 + $0x230] sm:$0xff]
    %v700 = vld [vmem:[#allocation6 + $0x238] sm:$0xff]
    %v701 = vld [vmem:[#allocation6 + $0x240] sm:$0xff]
    %v702 = vld [vmem:[#allocation6 + $0x248] sm:$0xff]
    %v703 = vld [vmem:[#allocation6 + $0x250] sm:$0xff]
    %v704 = vld [vmem:[#allocation6 + $0x258] sm:$0xff]
    %v705 = vld [vmem:[#allocation6 + $0x260] sm:$0xff]
    %v706 = vld [vmem:[#allocation6 + $0x268] sm:$0xff]
    %v707 = vld [vmem:[#allocation6 + $0x270] sm:$0xff]
    %v708 = vld [vmem:[#allocation6 + $0x278] sm:$0xff]
    %v709 = vld [vmem:[#allocation6 + $0x280] sm:$0xff]
    %v710 = vld [vmem:[#allocation6 + $0x288] sm:$0xff]
    %v711 = vld [vmem:[#allocation6 + $0x290] sm:$0xff]
    %v712 = vld [vmem:[#allocation6 + $0x298] sm:$0xff]
    %v713 = vld [vmem:[#allocation6 + $0x2a0] sm:$0xff]
    %v714 = vld [vmem:[#allocation6 + $0x2a8] sm:$0xff]
    %v715 = vld [vmem:[#allocation6 + $0x2b0] sm:$0xff]
    %v716 = vld [vmem:[#allocation6 + $0x2b8] sm:$0xff]
    %v717 = vld [vmem:[#allocation6 + $0x2c0] sm:$0xff]
    %v718 = vld [vmem:[#allocation6 + $0x2c8] sm:$0xff]
    %v719 = vld [vmem:[#allocation6 + $0x2d0] sm:$0xff]
    %v720 = vld [vmem:[#allocation6 + $0x2d8] sm:$0xff]
    %v721 = vld [vmem:[#allocation6 + $0x2e0] sm:$0xff]
    %v722 = vld [vmem:[#allocation6 + $0x2e8] sm:$0xff]
    %v723 = vld [vmem:[#allocation6 + $0x2f0] sm:$0xff]
    %v724 = vld [vmem:[#allocation6 + $0x2f8] sm:$0xff]
    %v725 = vld [vmem:[#allocation6 + $0x300] sm:$0xff]
    %v726 = vld [vmem:[#allocation6 + $0x308] sm:$0xff]
    %v727 = vld [vmem:[#allocation6 + $0x310] sm:$0xff]
    %v728 = vld [vmem:[#allocation6 + $0x318] sm:$0xff]
    %v729 = vld [vmem:[#allocation6 + $0x320] sm:$0xff]
    %v730 = vld [vmem:[#allocation6 + $0x328] sm:$0xff]
    %v731 = vld [vmem:[#allocation6 + $0x330] sm:$0xff]
    %v732 = vld [vmem:[#allocation6 + $0x338] sm:$0xff]
    %v733 = vld [vmem:[#allocation6 + $0x340] sm:$0xff]
    %v734 = vld [vmem:[#allocation6 + $0x348] sm:$0xff]
    %v735 = vld [vmem:[#allocation6 + $0x350] sm:$0xff]
    %v736 = vld [vmem:[#allocation6 + $0x358] sm:$0xff]
    %v737 = vld [vmem:[#allocation6 + $0x360] sm:$0xff]
    %v738 = vld [vmem:[#allocation6 + $0x368] sm:$0xff]
    %v739 = vld [vmem:[#allocation6 + $0x370] sm:$0xff]
    %v740 = vld [vmem:[#allocation6 + $0x378] sm:$0xff]
    %v741 = vld [vmem:[#allocation6 + $0x380] sm:$0xff]
    %v742 = vld [vmem:[#allocation6 + $0x388] sm:$0xff]
    %v743 = vld [vmem:[#allocation6 + $0x390] sm:$0xff]
    %v744 = vld [vmem:[#allocation6 + $0x398] sm:$0xff]
    %v745 = vld [vmem:[#allocation6 + $0x3a0] sm:$0xff]
    %v746 = vld [vmem:[#allocation6 + $0x3a8] sm:$0xff]
    %v747 = vld [vmem:[#allocation6 + $0x3b0] sm:$0xff]
    %v748 = vld [vmem:[#allocation6 + $0x3b8] sm:$0xff]
    %v749 = vld [vmem:[#allocation6 + $0x3c0] sm:$0xff]
    %v750 = vld [vmem:[#allocation6 + $0x3c8] sm:$0xff]
    %v751 = vld [vmem:[#allocation6 + $0x3d0] sm:$0xff]
    %v752 = vld [vmem:[#allocation6 + $0x3d8] sm:$0xff]
    %v753 = vld [vmem:[#allocation6 + $0x3e0] sm:$0xff]
    %v754 = vld [vmem:[#allocation6 + $0x3e8] sm:$0xff]
    %v755 = vld [vmem:[#allocation6 + $0x3f0] sm:$0xff]
    %v756 = vld [vmem:[#allocation6 + $0x3f8] sm:$0xff]
    %v757 = vld [vmem:[#allocation6 + $0x400] sm:$0xff]
    %v758 = vld [vmem:[#allocation6 + $0x408] sm:$0xff]
    %v759 = vld [vmem:[#allocation6 + $0x410] sm:$0xff]
    %v760 = vld [vmem:[#allocation6 + $0x418] sm:$0xff]
    %v761 = vld [vmem:[#allocation6 + $0x420] sm:$0xff]
    %v762 = vld [vmem:[#allocation6 + $0x428] sm:$0xff]
    %v763 = vld [vmem:[#allocation6 + $0x430] sm:$0xff]
    %v764 = vld [vmem:[#allocation6 + $0x438] sm:$0xff]
    %v765 = vld [vmem:[#allocation6 + $0x440] sm:$0xff]
    %v766 = vld [vmem:[#allocation6 + $0x448] sm:$0xff]
    %v767 = vld [vmem:[#allocation6 + $0x450] sm:$0xff]
    %v768 = vld [vmem:[#allocation6 + $0x458] sm:$0xff]
    %v769 = vld [vmem:[#allocation6 + $0x460] sm:$0xff]
    %v770 = vld [vmem:[#allocation6 + $0x468] sm:$0xff]
    %v771 = vld [vmem:[#allocation6 + $0x470] sm:$0xff]
    %v772 = vld [vmem:[#allocation6 + $0x478] sm:$0xff]
    %v773 = vld [vmem:[#allocation6 + $0x480] sm:$0xff]
    %v774 = vld [vmem:[#allocation6 + $0x488] sm:$0xff]
    %v775 = vld [vmem:[#allocation6 + $0x490] sm:$0xff]
    %v776 = vld [vmem:[#allocation6 + $0x498] sm:$0xff]
    %v777 = vld [vmem:[#allocation6 + $0x4a0] sm:$0xff]
    %v778 = vld [vmem:[#allocation6 + $0x4a8] sm:$0xff]
    %v779 = vld [vmem:[#allocation6 + $0x4b0] sm:$0xff]
    %v780 = vld [vmem:[#allocation6 + $0x4b8] sm:$0xff]
    %v781 = vld [vmem:[#allocation6 + $0x4c0] sm:$0xff]
    %v782 = vld [vmem:[#allocation6 + $0x4c8] sm:$0xff]
    %v783 = vld [vmem:[#allocation6 + $0x4d0] sm:$0xff]
    %v784 = vld [vmem:[#allocation6 + $0x4d8] sm:$0xff]
    %v785 = vld [vmem:[#allocation6 + $0x4e0] sm:$0xff]
    %v786 = vld [vmem:[#allocation6 + $0x4e8] sm:$0xff]
    %v787 = vld [vmem:[#allocation6 + $0x4f0] sm:$0xff]
    %v788 = vld [vmem:[#allocation6 + $0x4f8] sm:$0xff]
    %v789 = vld [vmem:[#allocation6 + $0x500] sm:$0xff]
    %v790 = vld [vmem:[#allocation6 + $0x508] sm:$0xff]
    %v791 = vld [vmem:[#allocation6 + $0x510] sm:$0xff]
    %v792 = vld [vmem:[#allocation6 + $0x518] sm:$0xff]
    %v793 = vld [vmem:[#allocation6 + $0x520] sm:$0xff]
    %v794 = vld [vmem:[#allocation6 + $0x528] sm:$0xff]
    %v795 = vld [vmem:[#allocation6 + $0x530] sm:$0xff]
    %v796 = vld [vmem:[#allocation6 + $0x538] sm:$0xff]
    %v797 = vld [vmem:[#allocation6 + $0x540] sm:$0xff]
    %v798 = vld [vmem:[#allocation6 + $0x548] sm:$0xff]
    %v799 = vld [vmem:[#allocation6 + $0x550] sm:$0xff]
    %v800 = vld [vmem:[#allocation6 + $0x558] sm:$0xff]
    %v801 = vld [vmem:[#allocation6 + $0x560] sm:$0xff]
    %v802 = vld [vmem:[#allocation6 + $0x568] sm:$0xff]
    %v803 = vld [vmem:[#allocation6 + $0x570] sm:$0xff]
    %v804 = vld [vmem:[#allocation6 + $0x578] sm:$0xff]
    %v805 = vld [vmem:[#allocation6 + $0x580] sm:$0xff]
    %v806 = vld [vmem:[#allocation6 + $0x588] sm:$0xff]
    %v807 = vld [vmem:[#allocation6 + $0x590] sm:$0xff]
    %v808 = vld [vmem:[#allocation6 + $0x598] sm:$0xff]
    %v809 = vld [vmem:[#allocation6 + $0x5a0] sm:$0xff]
    %v810 = vld [vmem:[#allocation6 + $0x5a8] sm:$0xff]
    %v811 = vld [vmem:[#allocation6 + $0x5b0] sm:$0xff]
    %v812 = vld [vmem:[#allocation6 + $0x5b8] sm:$0xff]
    %v813 = vld [vmem:[#allocation6 + $0x5c0] sm:$0xff]
    %v814 = vld [vmem:[#allocation6 + $0x5c8] sm:$0xff]
    %v815 = vld [vmem:[#allocation6 + $0x5d0] sm:$0xff]
    %v816 = vld [vmem:[#allocation6 + $0x5d8] sm:$0xff]
    %v817 = vld [vmem:[#allocation6 + $0x5e0] sm:$0xff]
    %v818 = vld [vmem:[#allocation6 + $0x5e8] sm:$0xff]
    %v819 = vld [vmem:[#allocation6 + $0x5f0] sm:$0xff]
    %v820 = vld [vmem:[#allocation6 + $0x5f8] sm:$0xff]
    %v821 = vld [vmem:[#allocation6 + $0x600] sm:$0xff]
    %v822 = vld [vmem:[#allocation6 + $0x608] sm:$0xff]
    %v823 = vld [vmem:[#allocation6 + $0x610] sm:$0xff]
    %v824 = vld [vmem:[#allocation6 + $0x618] sm:$0xff]
    %v825 = vld [vmem:[#allocation6 + $0x620] sm:$0xff]
    %v826 = vld [vmem:[#allocation6 + $0x628] sm:$0xff]
    %v827 = vld [vmem:[#allocation6 + $0x630] sm:$0xff]
    %v828 = vld [vmem:[#allocation6 + $0x638] sm:$0xff]
    %v829 = vld [vmem:[#allocation6 + $0x640] sm:$0xff]
    %v830 = vld [vmem:[#allocation6 + $0x648] sm:$0xff]
    %v831 = vld [vmem:[#allocation6 + $0x650] sm:$0xff]
    %v832 = vld [vmem:[#allocation6 + $0x658] sm:$0xff]
    %v833 = vld [vmem:[#allocation6 + $0x660] sm:$0xff]
    %v834 = vld [vmem:[#allocation6 + $0x668] sm:$0xff]
    %v835 = vld [vmem:[#allocation6 + $0x670] sm:$0xff]
    %v836 = vld [vmem:[#allocation6 + $0x678] sm:$0xff]
    %v837 = vld [vmem:[#allocation6 + $0x680] sm:$0xff]
    %v838 = vld [vmem:[#allocation6 + $0x688] sm:$0xff]
    %v839 = vld [vmem:[#allocation6 + $0x690] sm:$0xff]
    %v840 = vld [vmem:[#allocation6 + $0x698] sm:$0xff]
    %v841 = vld [vmem:[#allocation6 + $0x6a0] sm:$0xff]
    %v842 = vld [vmem:[#allocation6 + $0x6a8] sm:$0xff]
    %v843 = vld [vmem:[#allocation6 + $0x6b0] sm:$0xff]
    %v844 = vld [vmem:[#allocation6 + $0x6b8] sm:$0xff]
    %v845 = vld [vmem:[#allocation6 + $0x6c0] sm:$0xff]
    %v846 = vld [vmem:[#allocation6 + $0x6c8] sm:$0xff]
    %v847 = vld [vmem:[#allocation6 + $0x6d0] sm:$0xff]
    %v848 = vld [vmem:[#allocation6 + $0x6d8] sm:$0xff]
    %v849 = vld [vmem:[#allocation6 + $0x6e0] sm:$0xff]
    %v850 = vld [vmem:[#allocation6 + $0x6e8] sm:$0xff]
    %v851 = vld [vmem:[#allocation6 + $0x6f0] sm:$0xff]
    %v852 = vld [vmem:[#allocation6 + $0x6f8] sm:$0xff]
    %v853 = vld [vmem:[#allocation6 + $0x700] sm:$0xff]
    %v854 = vld [vmem:[#allocation6 + $0x708] sm:$0xff]
    %v855 = vld [vmem:[#allocation6 + $0x710] sm:$0xff]
    %v856 = vld [vmem:[#allocation6 + $0x718] sm:$0xff]
    %v857 = vld [vmem:[#allocation6 + $0x720] sm:$0xff]
    %v858 = vld [vmem:[#allocation6 + $0x728] sm:$0xff]
    %v859 = vld [vmem:[#allocation6 + $0x730] sm:$0xff]
    %v860 = vld [vmem:[#allocation6 + $0x738] sm:$0xff]
    %v861 = vld [vmem:[#allocation6 + $0x740] sm:$0xff]
    %v862 = vld [vmem:[#allocation6 + $0x748] sm:$0xff]
    %v863 = vld [vmem:[#allocation6 + $0x750] sm:$0xff]
    %v864 = vld [vmem:[#allocation6 + $0x758] sm:$0xff]
    %v865 = vld [vmem:[#allocation6 + $0x760] sm:$0xff]
    %v866 = vld [vmem:[#allocation6 + $0x768] sm:$0xff]
    %v867 = vld [vmem:[#allocation6 + $0x770] sm:$0xff]
    %v868 = vld [vmem:[#allocation6 + $0x778] sm:$0xff]
    %v869 = vld [vmem:[#allocation6 + $0x780] sm:$0xff]
    %v870 = vld [vmem:[#allocation6 + $0x788] sm:$0xff]
    %v871 = vld [vmem:[#allocation6 + $0x790] sm:$0xff]
    %v872 = vld [vmem:[#allocation6 + $0x798] sm:$0xff]
    %v873 = vld [vmem:[#allocation6 + $0x7a0] sm:$0xff]
    %v874 = vld [vmem:[#allocation6 + $0x7a8] sm:$0xff]
    %v875 = vld [vmem:[#allocation6 + $0x7b0] sm:$0xff]
    %v876 = vld [vmem:[#allocation6 + $0x7b8] sm:$0xff]
    %v877 = vld [vmem:[#allocation6 + $0x7c0] sm:$0xff]
    %v878 = vld [vmem:[#allocation6 + $0x7c8] sm:$0xff]
    %v879 = vld [vmem:[#allocation6 + $0x7d0] sm:$0xff]
    %v880 = vld [vmem:[#allocation6 + $0x7d8] sm:$0xff]
    %v881 = vld [vmem:[#allocation6 + $0x7e0] sm:$0xff]
    %v882 = vld [vmem:[#allocation6 + $0x7e8] sm:$0xff]
    %v883 = vld [vmem:[#allocation6 + $0x7f0] sm:$0xff]
    %v884 = vld [vmem:[#allocation6 + $0x7f8] sm:$0xff]
    %v885 = vld [vmem:[#allocation7] sm:$0xff]
    %v887 = vlaneseq
    %v888 = vshrl.u32 %v887, 7
    %v889 = vsub.s32 0, %v888
    %v890 = vrot.slane %v885, %v889
    %v891 = vlaneseq
    %v892 = vshrl.u32 %v891, 7
    %v893 = vsub.s32 1, %v892
    %v894 = vrot.slane %v885, %v893
    %v895 = vlaneseq
    %v896 = vshrl.u32 %v895, 7
    %v897 = vsub.s32 2, %v896
    %v898 = vrot.slane %v885, %v897
    %v899 = vlaneseq
    %v900 = vshrl.u32 %v899, 7
    %v901 = vsub.s32 3, %v900
    %v902 = vrot.slane %v885, %v901
    %v903 = vlaneseq
    %v904 = vshrl.u32 %v903, 7
    %v905 = vsub.s32 4, %v904
    %v906 = vrot.slane %v885, %v905
    %v907 = vlaneseq
    %v908 = vshrl.u32 %v907, 7
    %v909 = vsub.s32 5, %v908
    %v910 = vrot.slane %v885, %v909
    %v911 = vlaneseq
    %v912 = vshrl.u32 %v911, 7
    %v913 = vsub.s32 6, %v912
    %v914 = vrot.slane %v885, %v913
    %v915 = vlaneseq
    %v916 = vshrl.u32 %v915, 7
    %v917 = vsub.s32 7, %v916
    %v918 = vrot.slane %v885, %v917
    %v1183 = vunpack.c.l.b16 %v629
    %v1184 = vunpack.c.h.b16 %v629
    %v1185 = vunpack.c.l.b16 %v630
    %v1186 = vunpack.c.h.b16 %v630
    %v1187 = vunpack.c.l.b16 %v631
    %v1188 = vunpack.c.h.b16 %v631
    %v1189 = vunpack.c.l.b16 %v632
    %v1190 = vunpack.c.h.b16 %v632
    %v1191 = vunpack.c.l.b16 %v633
    %v1192 = vunpack.c.h.b16 %v633
    %v1193 = vunpack.c.l.b16 %v634
    %v1194 = vunpack.c.h.b16 %v634
    %v1195 = vunpack.c.l.b16 %v635
    %v1196 = vunpack.c.h.b16 %v635
    %v1197 = vunpack.c.l.b16 %v636
    %v1198 = vunpack.c.h.b16 %v636
    %v1199 = vunpack.c.l.b16 %v637
    %v1200 = vunpack.c.h.b16 %v637
    %v1201 = vunpack.c.l.b16 %v638
    %v1202 = vunpack.c.h.b16 %v638
    %v1203 = vunpack.c.l.b16 %v639
    %v1204 = vunpack.c.h.b16 %v639
    %v1205 = vunpack.c.l.b16 %v640
    %v1206 = vunpack.c.h.b16 %v640
    %v1207 = vunpack.c.l.b16 %v641
    %v1208 = vunpack.c.h.b16 %v641
    %v1209 = vunpack.c.l.b16 %v642
    %v1210 = vunpack.c.h.b16 %v642
    %v1211 = vunpack.c.l.b16 %v643
    %v1212 = vunpack.c.h.b16 %v643
    %v1213 = vunpack.c.l.b16 %v644
    %v1214 = vunpack.c.h.b16 %v644
    %v1215 = vunpack.c.l.b16 %v645
    %v1216 = vunpack.c.h.b16 %v645
    %v1217 = vunpack.c.l.b16 %v646
    %v1218 = vunpack.c.h.b16 %v646
    %v1219 = vunpack.c.l.b16 %v647
    %v1220 = vunpack.c.h.b16 %v647
    %v1221 = vunpack.c.l.b16 %v648
    %v1222 = vunpack.c.h.b16 %v648
    %v1223 = vunpack.c.l.b16 %v649
    %v1224 = vunpack.c.h.b16 %v649
    %v1225 = vunpack.c.l.b16 %v650
    %v1226 = vunpack.c.h.b16 %v650
    %v1227 = vunpack.c.l.b16 %v651
    %v1228 = vunpack.c.h.b16 %v651
    %v1229 = vunpack.c.l.b16 %v652
    %v1230 = vunpack.c.h.b16 %v652
    %v1231 = vunpack.c.l.b16 %v653
    %v1232 = vunpack.c.h.b16 %v653
    %v1233 = vunpack.c.l.b16 %v654
    %v1234 = vunpack.c.h.b16 %v654
    %v1235 = vunpack.c.l.b16 %v655
    %v1236 = vunpack.c.h.b16 %v655
    %v1237 = vunpack.c.l.b16 %v656
    %v1238 = vunpack.c.h.b16 %v656
    %v1239 = vunpack.c.l.b16 %v657
    %v1240 = vunpack.c.h.b16 %v657
    %v1241 = vunpack.c.l.b16 %v658
    %v1242 = vunpack.c.h.b16 %v658
    %v1243 = vunpack.c.l.b16 %v659
    %v1244 = vunpack.c.h.b16 %v659
    %v1245 = vunpack.c.l.b16 %v660
    %v1246 = vunpack.c.h.b16 %v660
    %v1247 = vunpack.c.l.b16 %v661
    %v1248 = vunpack.c.h.b16 %v661
    %v1249 = vunpack.c.l.b16 %v662
    %v1250 = vunpack.c.h.b16 %v662
    %v1251 = vunpack.c.l.b16 %v663
    %v1252 = vunpack.c.h.b16 %v663
    %v1253 = vunpack.c.l.b16 %v664
    %v1254 = vunpack.c.h.b16 %v664
    %v1255 = vunpack.c.l.b16 %v665
    %v1256 = vunpack.c.h.b16 %v665
    %v1257 = vunpack.c.l.b16 %v666
    %v1258 = vunpack.c.h.b16 %v666
    %v1259 = vunpack.c.l.b16 %v667
    %v1260 = vunpack.c.h.b16 %v667
    %v1261 = vunpack.c.l.b16 %v668
    %v1262 = vunpack.c.h.b16 %v668
    %v1263 = vunpack.c.l.b16 %v669
    %v1264 = vunpack.c.h.b16 %v669
    %v1265 = vunpack.c.l.b16 %v670
    %v1266 = vunpack.c.h.b16 %v670
    %v1267 = vunpack.c.l.b16 %v671
    %v1268 = vunpack.c.h.b16 %v671
    %v1269 = vunpack.c.l.b16 %v672
    %v1270 = vunpack.c.h.b16 %v672
    %v1271 = vunpack.c.l.b16 %v673
    %v1272 = vunpack.c.h.b16 %v673
    %v1273 = vunpack.c.l.b16 %v674
    %v1274 = vunpack.c.h.b16 %v674
    %v1275 = vunpack.c.l.b16 %v675
    %v1276 = vunpack.c.h.b16 %v675
    %v1277 = vunpack.c.l.b16 %v676
    %v1278 = vunpack.c.h.b16 %v676
    %v1279 = vunpack.c.l.b16 %v677
    %v1280 = vunpack.c.h.b16 %v677
    %v1281 = vunpack.c.l.b16 %v678
    %v1282 = vunpack.c.h.b16 %v678
    %v1283 = vunpack.c.l.b16 %v679
    %v1284 = vunpack.c.h.b16 %v679
    %v1285 = vunpack.c.l.b16 %v680
    %v1286 = vunpack.c.h.b16 %v680
    %v1287 = vunpack.c.l.b16 %v681
    %v1288 = vunpack.c.h.b16 %v681
    %v1289 = vunpack.c.l.b16 %v682
    %v1290 = vunpack.c.h.b16 %v682
    %v1291 = vunpack.c.l.b16 %v683
    %v1292 = vunpack.c.h.b16 %v683
    %v1293 = vunpack.c.l.b16 %v684
    %v1294 = vunpack.c.h.b16 %v684
    %v1295 = vunpack.c.l.b16 %v685
    %v1296 = vunpack.c.h.b16 %v685
    %v1297 = vunpack.c.l.b16 %v686
    %v1298 = vunpack.c.h.b16 %v686
    %v1299 = vunpack.c.l.b16 %v687
    %v1300 = vunpack.c.h.b16 %v687
    %v1301 = vunpack.c.l.b16 %v688
    %v1302 = vunpack.c.h.b16 %v688
    %v1303 = vunpack.c.l.b16 %v689
    %v1304 = vunpack.c.h.b16 %v689
    %v1305 = vunpack.c.l.b16 %v690
    %v1306 = vunpack.c.h.b16 %v690
    %v1307 = vunpack.c.l.b16 %v691
    %v1308 = vunpack.c.h.b16 %v691
    %v1309 = vunpack.c.l.b16 %v692
    %v1310 = vunpack.c.h.b16 %v692
    %v1311 = vunpack.c.l.b16 %v693
    %v1312 = vunpack.c.h.b16 %v693
    %v1313 = vunpack.c.l.b16 %v694
    %v1314 = vunpack.c.h.b16 %v694
    %v1315 = vunpack.c.l.b16 %v695
    %v1316 = vunpack.c.h.b16 %v695
    %v1317 = vunpack.c.l.b16 %v696
    %v1318 = vunpack.c.h.b16 %v696
    %v1319 = vunpack.c.l.b16 %v697
    %v1320 = vunpack.c.h.b16 %v697
    %v1321 = vunpack.c.l.b16 %v698
    %v1322 = vunpack.c.h.b16 %v698
    %v1323 = vunpack.c.l.b16 %v699
    %v1324 = vunpack.c.h.b16 %v699
    %v1325 = vunpack.c.l.b16 %v700
    %v1326 = vunpack.c.h.b16 %v700
    %v1327 = vunpack.c.l.b16 %v701
    %v1328 = vunpack.c.h.b16 %v701
    %v1329 = vunpack.c.l.b16 %v702
    %v1330 = vunpack.c.h.b16 %v702
    %v1331 = vunpack.c.l.b16 %v703
    %v1332 = vunpack.c.h.b16 %v703
    %v1333 = vunpack.c.l.b16 %v704
    %v1334 = vunpack.c.h.b16 %v704
    %v1335 = vunpack.c.l.b16 %v705
    %v1336 = vunpack.c.h.b16 %v705
    %v1337 = vunpack.c.l.b16 %v706
    %v1338 = vunpack.c.h.b16 %v706
    %v1339 = vunpack.c.l.b16 %v707
    %v1340 = vunpack.c.h.b16 %v707
    %v1341 = vunpack.c.l.b16 %v708
    %v1342 = vunpack.c.h.b16 %v708
    %v1343 = vunpack.c.l.b16 %v709
    %v1344 = vunpack.c.h.b16 %v709
    %v1345 = vunpack.c.l.b16 %v710
    %v1346 = vunpack.c.h.b16 %v710
    %v1347 = vunpack.c.l.b16 %v711
    %v1348 = vunpack.c.h.b16 %v711
    %v1349 = vunpack.c.l.b16 %v712
    %v1350 = vunpack.c.h.b16 %v712
    %v1351 = vunpack.c.l.b16 %v713
    %v1352 = vunpack.c.h.b16 %v713
    %v1353 = vunpack.c.l.b16 %v714
    %v1354 = vunpack.c.h.b16 %v714
    %v1355 = vunpack.c.l.b16 %v715
    %v1356 = vunpack.c.h.b16 %v715
    %v1357 = vunpack.c.l.b16 %v716
    %v1358 = vunpack.c.h.b16 %v716
    %v1359 = vunpack.c.l.b16 %v717
    %v1360 = vunpack.c.h.b16 %v717
    %v1361 = vunpack.c.l.b16 %v718
    %v1362 = vunpack.c.h.b16 %v718
    %v1363 = vunpack.c.l.b16 %v719
    %v1364 = vunpack.c.h.b16 %v719
    %v1365 = vunpack.c.l.b16 %v720
    %v1366 = vunpack.c.h.b16 %v720
    %v1367 = vunpack.c.l.b16 %v721
    %v1368 = vunpack.c.h.b16 %v721
    %v1369 = vunpack.c.l.b16 %v722
    %v1370 = vunpack.c.h.b16 %v722
    %v1371 = vunpack.c.l.b16 %v723
    %v1372 = vunpack.c.h.b16 %v723
    %v1373 = vunpack.c.l.b16 %v724
    %v1374 = vunpack.c.h.b16 %v724
    %v1375 = vunpack.c.l.b16 %v725
    %v1376 = vunpack.c.h.b16 %v725
    %v1377 = vunpack.c.l.b16 %v726
    %v1378 = vunpack.c.h.b16 %v726
    %v1379 = vunpack.c.l.b16 %v727
    %v1380 = vunpack.c.h.b16 %v727
    %v1381 = vunpack.c.l.b16 %v728
    %v1382 = vunpack.c.h.b16 %v728
    %v1383 = vunpack.c.l.b16 %v729
    %v1384 = vunpack.c.h.b16 %v729
    %v1385 = vunpack.c.l.b16 %v730
    %v1386 = vunpack.c.h.b16 %v730
    %v1387 = vunpack.c.l.b16 %v731
    %v1388 = vunpack.c.h.b16 %v731
    %v1389 = vunpack.c.l.b16 %v732
    %v1390 = vunpack.c.h.b16 %v732
    %v1391 = vunpack.c.l.b16 %v733
    %v1392 = vunpack.c.h.b16 %v733
    %v1393 = vunpack.c.l.b16 %v734
    %v1394 = vunpack.c.h.b16 %v734
    %v1395 = vunpack.c.l.b16 %v735
    %v1396 = vunpack.c.h.b16 %v735
    %v1397 = vunpack.c.l.b16 %v736
    %v1398 = vunpack.c.h.b16 %v736
    %v1399 = vunpack.c.l.b16 %v737
    %v1400 = vunpack.c.h.b16 %v737
    %v1401 = vunpack.c.l.b16 %v738
    %v1402 = vunpack.c.h.b16 %v738
    %v1403 = vunpack.c.l.b16 %v739
    %v1404 = vunpack.c.h.b16 %v739
    %v1405 = vunpack.c.l.b16 %v740
    %v1406 = vunpack.c.h.b16 %v740
    %v1407 = vunpack.c.l.b16 %v741
    %v1408 = vunpack.c.h.b16 %v741
    %v1409 = vunpack.c.l.b16 %v742
    %v1410 = vunpack.c.h.b16 %v742
    %v1411 = vunpack.c.l.b16 %v743
    %v1412 = vunpack.c.h.b16 %v743
    %v1413 = vunpack.c.l.b16 %v744
    %v1414 = vunpack.c.h.b16 %v744
    %v1415 = vunpack.c.l.b16 %v745
    %v1416 = vunpack.c.h.b16 %v745
    %v1417 = vunpack.c.l.b16 %v746
    %v1418 = vunpack.c.h.b16 %v746
    %v1419 = vunpack.c.l.b16 %v747
    %v1420 = vunpack.c.h.b16 %v747
    %v1421 = vunpack.c.l.b16 %v748
    %v1422 = vunpack.c.h.b16 %v748
    %v1423 = vunpack.c.l.b16 %v749
    %v1424 = vunpack.c.h.b16 %v749
    %v1425 = vunpack.c.l.b16 %v750
    %v1426 = vunpack.c.h.b16 %v750
    %v1427 = vunpack.c.l.b16 %v751
    %v1428 = vunpack.c.h.b16 %v751
    %v1429 = vunpack.c.l.b16 %v752
    %v1430 = vunpack.c.h.b16 %v752
    %v1431 = vunpack.c.l.b16 %v753
    %v1432 = vunpack.c.h.b16 %v753
    %v1433 = vunpack.c.l.b16 %v754
    %v1434 = vunpack.c.h.b16 %v754
    %v1435 = vunpack.c.l.b16 %v755
    %v1436 = vunpack.c.h.b16 %v755
    %v1437 = vunpack.c.l.b16 %v756
    %v1438 = vunpack.c.h.b16 %v756
    %v1439 = vunpack.c.l.b16 %v757
    %v1440 = vunpack.c.h.b16 %v757
    %v1441 = vunpack.c.l.b16 %v758
    %v1442 = vunpack.c.h.b16 %v758
    %v1443 = vunpack.c.l.b16 %v759
    %v1444 = vunpack.c.h.b16 %v759
    %v1445 = vunpack.c.l.b16 %v760
    %v1446 = vunpack.c.h.b16 %v760
    %v1447 = vunpack.c.l.b16 %v761
    %v1448 = vunpack.c.h.b16 %v761
    %v1449 = vunpack.c.l.b16 %v762
    %v1450 = vunpack.c.h.b16 %v762
    %v1451 = vunpack.c.l.b16 %v763
    %v1452 = vunpack.c.h.b16 %v763
    %v1453 = vunpack.c.l.b16 %v764
    %v1454 = vunpack.c.h.b16 %v764
    %v1455 = vunpack.c.l.b16 %v765
    %v1456 = vunpack.c.h.b16 %v765
    %v1457 = vunpack.c.l.b16 %v766
    %v1458 = vunpack.c.h.b16 %v766
    %v1459 = vunpack.c.l.b16 %v767
    %v1460 = vunpack.c.h.b16 %v767
    %v1461 = vunpack.c.l.b16 %v768
    %v1462 = vunpack.c.h.b16 %v768
    %v1463 = vunpack.c.l.b16 %v769
    %v1464 = vunpack.c.h.b16 %v769
    %v1465 = vunpack.c.l.b16 %v770
    %v1466 = vunpack.c.h.b16 %v770
    %v1467 = vunpack.c.l.b16 %v771
    %v1468 = vunpack.c.h.b16 %v771
    %v1469 = vunpack.c.l.b16 %v772
    %v1470 = vunpack.c.h.b16 %v772
    %v1471 = vunpack.c.l.b16 %v773
    %v1472 = vunpack.c.h.b16 %v773
    %v1473 = vunpack.c.l.b16 %v774
    %v1474 = vunpack.c.h.b16 %v774
    %v1475 = vunpack.c.l.b16 %v775
    %v1476 = vunpack.c.h.b16 %v775
    %v1477 = vunpack.c.l.b16 %v776
    %v1478 = vunpack.c.h.b16 %v776
    %v1479 = vunpack.c.l.b16 %v777
    %v1480 = vunpack.c.h.b16 %v777
    %v1481 = vunpack.c.l.b16 %v778
    %v1482 = vunpack.c.h.b16 %v778
    %v1483 = vunpack.c.l.b16 %v779
    %v1484 = vunpack.c.h.b16 %v779
    %v1485 = vunpack.c.l.b16 %v780
    %v1486 = vunpack.c.h.b16 %v780
    %v1487 = vunpack.c.l.b16 %v781
    %v1488 = vunpack.c.h.b16 %v781
    %v1489 = vunpack.c.l.b16 %v782
    %v1490 = vunpack.c.h.b16 %v782
    %v1491 = vunpack.c.l.b16 %v783
    %v1492 = vunpack.c.h.b16 %v783
    %v1493 = vunpack.c.l.b16 %v784
    %v1494 = vunpack.c.h.b16 %v784
    %v1495 = vunpack.c.l.b16 %v785
    %v1496 = vunpack.c.h.b16 %v785
    %v1497 = vunpack.c.l.b16 %v786
    %v1498 = vunpack.c.h.b16 %v786
    %v1499 = vunpack.c.l.b16 %v787
    %v1500 = vunpack.c.h.b16 %v787
    %v1501 = vunpack.c.l.b16 %v788
    %v1502 = vunpack.c.h.b16 %v788
    %v1503 = vunpack.c.l.b16 %v789
    %v1504 = vunpack.c.h.b16 %v789
    %v1505 = vunpack.c.l.b16 %v790
    %v1506 = vunpack.c.h.b16 %v790
    %v1507 = vunpack.c.l.b16 %v791
    %v1508 = vunpack.c.h.b16 %v791
    %v1509 = vunpack.c.l.b16 %v792
    %v1510 = vunpack.c.h.b16 %v792
    %v1511 = vunpack.c.l.b16 %v793
    %v1512 = vunpack.c.h.b16 %v793
    %v1513 = vunpack.c.l.b16 %v794
    %v1514 = vunpack.c.h.b16 %v794
    %v1515 = vunpack.c.l.b16 %v795
    %v1516 = vunpack.c.h.b16 %v795
    %v1517 = vunpack.c.l.b16 %v796
    %v1518 = vunpack.c.h.b16 %v796
    %v1519 = vunpack.c.l.b16 %v797
    %v1520 = vunpack.c.h.b16 %v797
    %v1521 = vunpack.c.l.b16 %v798
    %v1522 = vunpack.c.h.b16 %v798
    %v1523 = vunpack.c.l.b16 %v799
    %v1524 = vunpack.c.h.b16 %v799
    %v1525 = vunpack.c.l.b16 %v800
    %v1526 = vunpack.c.h.b16 %v800
    %v1527 = vunpack.c.l.b16 %v801
    %v1528 = vunpack.c.h.b16 %v801
    %v1529 = vunpack.c.l.b16 %v802
    %v1530 = vunpack.c.h.b16 %v802
    %v1531 = vunpack.c.l.b16 %v803
    %v1532 = vunpack.c.h.b16 %v803
    %v1533 = vunpack.c.l.b16 %v804
    %v1534 = vunpack.c.h.b16 %v804
    %v1535 = vunpack.c.l.b16 %v805
    %v1536 = vunpack.c.h.b16 %v805
    %v1537 = vunpack.c.l.b16 %v806
    %v1538 = vunpack.c.h.b16 %v806
    %v1539 = vunpack.c.l.b16 %v807
    %v1540 = vunpack.c.h.b16 %v807
    %v1541 = vunpack.c.l.b16 %v808
    %v1542 = vunpack.c.h.b16 %v808
    %v1543 = vunpack.c.l.b16 %v809
    %v1544 = vunpack.c.h.b16 %v809
    %v1545 = vunpack.c.l.b16 %v810
    %v1546 = vunpack.c.h.b16 %v810
    %v1547 = vunpack.c.l.b16 %v811
    %v1548 = vunpack.c.h.b16 %v811
    %v1549 = vunpack.c.l.b16 %v812
    %v1550 = vunpack.c.h.b16 %v812
    %v1551 = vunpack.c.l.b16 %v813
    %v1552 = vunpack.c.h.b16 %v813
    %v1553 = vunpack.c.l.b16 %v814
    %v1554 = vunpack.c.h.b16 %v814
    %v1555 = vunpack.c.l.b16 %v815
    %v1556 = vunpack.c.h.b16 %v815
    %v1557 = vunpack.c.l.b16 %v816
    %v1558 = vunpack.c.h.b16 %v816
    %v1559 = vunpack.c.l.b16 %v817
    %v1560 = vunpack.c.h.b16 %v817
    %v1561 = vunpack.c.l.b16 %v818
    %v1562 = vunpack.c.h.b16 %v818
    %v1563 = vunpack.c.l.b16 %v819
    %v1564 = vunpack.c.h.b16 %v819
    %v1565 = vunpack.c.l.b16 %v820
    %v1566 = vunpack.c.h.b16 %v820
    %v1567 = vunpack.c.l.b16 %v821
    %v1568 = vunpack.c.h.b16 %v821
    %v1569 = vunpack.c.l.b16 %v822
    %v1570 = vunpack.c.h.b16 %v822
    %v1571 = vunpack.c.l.b16 %v823
    %v1572 = vunpack.c.h.b16 %v823
    %v1573 = vunpack.c.l.b16 %v824
    %v1574 = vunpack.c.h.b16 %v824
    %v1575 = vunpack.c.l.b16 %v825
    %v1576 = vunpack.c.h.b16 %v825
    %v1577 = vunpack.c.l.b16 %v826
    %v1578 = vunpack.c.h.b16 %v826
    %v1579 = vunpack.c.l.b16 %v827
    %v1580 = vunpack.c.h.b16 %v827
    %v1581 = vunpack.c.l.b16 %v828
    %v1582 = vunpack.c.h.b16 %v828
    %v1583 = vunpack.c.l.b16 %v829
    %v1584 = vunpack.c.h.b16 %v829
    %v1585 = vunpack.c.l.b16 %v830
    %v1586 = vunpack.c.h.b16 %v830
    %v1587 = vunpack.c.l.b16 %v831
    %v1588 = vunpack.c.h.b16 %v831
    %v1589 = vunpack.c.l.b16 %v832
    %v1590 = vunpack.c.h.b16 %v832
    %v1591 = vunpack.c.l.b16 %v833
    %v1592 = vunpack.c.h.b16 %v833
    %v1593 = vunpack.c.l.b16 %v834
    %v1594 = vunpack.c.h.b16 %v834
    %v1595 = vunpack.c.l.b16 %v835
    %v1596 = vunpack.c.h.b16 %v835
    %v1597 = vunpack.c.l.b16 %v836
    %v1598 = vunpack.c.h.b16 %v836
    %v1599 = vunpack.c.l.b16 %v837
    %v1600 = vunpack.c.h.b16 %v837
    %v1601 = vunpack.c.l.b16 %v838
    %v1602 = vunpack.c.h.b16 %v838
    %v1603 = vunpack.c.l.b16 %v839
    %v1604 = vunpack.c.h.b16 %v839
    %v1605 = vunpack.c.l.b16 %v840
    %v1606 = vunpack.c.h.b16 %v840
    %v1607 = vunpack.c.l.b16 %v841
    %v1608 = vunpack.c.h.b16 %v841
    %v1609 = vunpack.c.l.b16 %v842
    %v1610 = vunpack.c.h.b16 %v842
    %v1611 = vunpack.c.l.b16 %v843
    %v1612 = vunpack.c.h.b16 %v843
    %v1613 = vunpack.c.l.b16 %v844
    %v1614 = vunpack.c.h.b16 %v844
    %v1615 = vunpack.c.l.b16 %v845
    %v1616 = vunpack.c.h.b16 %v845
    %v1617 = vunpack.c.l.b16 %v846
    %v1618 = vunpack.c.h.b16 %v846
    %v1619 = vunpack.c.l.b16 %v847
    %v1620 = vunpack.c.h.b16 %v847
    %v1621 = vunpack.c.l.b16 %v848
    %v1622 = vunpack.c.h.b16 %v848
    %v1623 = vunpack.c.l.b16 %v849
    %v1624 = vunpack.c.h.b16 %v849
    %v1625 = vunpack.c.l.b16 %v850
    %v1626 = vunpack.c.h.b16 %v850
    %v1627 = vunpack.c.l.b16 %v851
    %v1628 = vunpack.c.h.b16 %v851
    %v1629 = vunpack.c.l.b16 %v852
    %v1630 = vunpack.c.h.b16 %v852
    %v1631 = vunpack.c.l.b16 %v853
    %v1632 = vunpack.c.h.b16 %v853
    %v1633 = vunpack.c.l.b16 %v854
    %v1634 = vunpack.c.h.b16 %v854
    %v1635 = vunpack.c.l.b16 %v855
    %v1636 = vunpack.c.h.b16 %v855
    %v1637 = vunpack.c.l.b16 %v856
    %v1638 = vunpack.c.h.b16 %v856
    %v1639 = vunpack.c.l.b16 %v857
    %v1640 = vunpack.c.h.b16 %v857
    %v1641 = vunpack.c.l.b16 %v858
    %v1642 = vunpack.c.h.b16 %v858
    %v1643 = vunpack.c.l.b16 %v859
    %v1644 = vunpack.c.h.b16 %v859
    %v1645 = vunpack.c.l.b16 %v860
    %v1646 = vunpack.c.h.b16 %v860
    %v1647 = vunpack.c.l.b16 %v861
    %v1648 = vunpack.c.h.b16 %v861
    %v1649 = vunpack.c.l.b16 %v862
    %v1650 = vunpack.c.h.b16 %v862
    %v1651 = vunpack.c.l.b16 %v863
    %v1652 = vunpack.c.h.b16 %v863
    %v1653 = vunpack.c.l.b16 %v864
    %v1654 = vunpack.c.h.b16 %v864
    %v1655 = vunpack.c.l.b16 %v865
    %v1656 = vunpack.c.h.b16 %v865
    %v1657 = vunpack.c.l.b16 %v866
    %v1658 = vunpack.c.h.b16 %v866
    %v1659 = vunpack.c.l.b16 %v867
    %v1660 = vunpack.c.h.b16 %v867
    %v1661 = vunpack.c.l.b16 %v868
    %v1662 = vunpack.c.h.b16 %v868
    %v1663 = vunpack.c.l.b16 %v869
    %v1664 = vunpack.c.h.b16 %v869
    %v1665 = vunpack.c.l.b16 %v870
    %v1666 = vunpack.c.h.b16 %v870
    %v1667 = vunpack.c.l.b16 %v871
    %v1668 = vunpack.c.h.b16 %v871
    %v1669 = vunpack.c.l.b16 %v872
    %v1670 = vunpack.c.h.b16 %v872
    %v1671 = vunpack.c.l.b16 %v873
    %v1672 = vunpack.c.h.b16 %v873
    %v1673 = vunpack.c.l.b16 %v874
    %v1674 = vunpack.c.h.b16 %v874
    %v1675 = vunpack.c.l.b16 %v875
    %v1676 = vunpack.c.h.b16 %v875
    %v1677 = vunpack.c.l.b16 %v876
    %v1678 = vunpack.c.h.b16 %v876
    %v1679 = vunpack.c.l.b16 %v877
    %v1680 = vunpack.c.h.b16 %v877
    %v1681 = vunpack.c.l.b16 %v878
    %v1682 = vunpack.c.h.b16 %v878
    %v1683 = vunpack.c.l.b16 %v879
    %v1684 = vunpack.c.h.b16 %v879
    %v1685 = vunpack.c.l.b16 %v880
    %v1686 = vunpack.c.h.b16 %v880
    %v1687 = vunpack.c.l.b16 %v881
    %v1688 = vunpack.c.h.b16 %v881
    %v1689 = vunpack.c.l.b16 %v882
    %v1690 = vunpack.c.h.b16 %v882
    %v1691 = vunpack.c.l.b16 %v883
    %v1692 = vunpack.c.h.b16 %v883
    %v1693 = vunpack.c.l.b16 %v884
    %v1694 = vunpack.c.h.b16 %v884
    %v1695 = vpack.c.b16 %v1191, %v1183
    %v1696 = vpack.c.b16 %v1192, %v1184
    %v1697 = vpack.c.b16 %v1193, %v1185
    %v1698 = vpack.c.b16 %v1194, %v1186
    %v1699 = vpack.c.b16 %v1195, %v1187
    %v1700 = vpack.c.b16 %v1196, %v1188
    %v1701 = vpack.c.b16 %v1197, %v1189
    %v1702 = vpack.c.b16 %v1198, %v1190
    %v1703 = vpack.c.b16 %v1207, %v1199
    %v1704 = vpack.c.b16 %v1208, %v1200
    %v1705 = vpack.c.b16 %v1209, %v1201
    %v1706 = vpack.c.b16 %v1210, %v1202
    %v1707 = vpack.c.b16 %v1211, %v1203
    %v1708 = vpack.c.b16 %v1212, %v1204
    %v1709 = vpack.c.b16 %v1213, %v1205
    %v1710 = vpack.c.b16 %v1214, %v1206
    %v1711 = vpack.c.b16 %v1223, %v1215
    %v1712 = vpack.c.b16 %v1224, %v1216
    %v1713 = vpack.c.b16 %v1225, %v1217
    %v1714 = vpack.c.b16 %v1226, %v1218
    %v1715 = vpack.c.b16 %v1227, %v1219
    %v1716 = vpack.c.b16 %v1228, %v1220
    %v1717 = vpack.c.b16 %v1229, %v1221
    %v1718 = vpack.c.b16 %v1230, %v1222
    %v1719 = vpack.c.b16 %v1239, %v1231
    %v1720 = vpack.c.b16 %v1240, %v1232
    %v1721 = vpack.c.b16 %v1241, %v1233
    %v1722 = vpack.c.b16 %v1242, %v1234
    %v1723 = vpack.c.b16 %v1243, %v1235
    %v1724 = vpack.c.b16 %v1244, %v1236
    %v1725 = vpack.c.b16 %v1245, %v1237
    %v1726 = vpack.c.b16 %v1246, %v1238
    %v1727 = vpack.c.b16 %v1255, %v1247
    %v1728 = vpack.c.b16 %v1256, %v1248
    %v1729 = vpack.c.b16 %v1257, %v1249
    %v1730 = vpack.c.b16 %v1258, %v1250
    %v1731 = vpack.c.b16 %v1259, %v1251
    %v1732 = vpack.c.b16 %v1260, %v1252
    %v1733 = vpack.c.b16 %v1261, %v1253
    %v1734 = vpack.c.b16 %v1262, %v1254
    %v1735 = vpack.c.b16 %v1271, %v1263
    %v1736 = vpack.c.b16 %v1272, %v1264
    %v1737 = vpack.c.b16 %v1273, %v1265
    %v1738 = vpack.c.b16 %v1274, %v1266
    %v1739 = vpack.c.b16 %v1275, %v1267
    %v1740 = vpack.c.b16 %v1276, %v1268
    %v1741 = vpack.c.b16 %v1277, %v1269
    %v1742 = vpack.c.b16 %v1278, %v1270
    %v1743 = vpack.c.b16 %v1287, %v1279
    %v1744 = vpack.c.b16 %v1288, %v1280
    %v1745 = vpack.c.b16 %v1289, %v1281
    %v1746 = vpack.c.b16 %v1290, %v1282
    %v1747 = vpack.c.b16 %v1291, %v1283
    %v1748 = vpack.c.b16 %v1292, %v1284
    %v1749 = vpack.c.b16 %v1293, %v1285
    %v1750 = vpack.c.b16 %v1294, %v1286
    %v1751 = vpack.c.b16 %v1303, %v1295
    %v1752 = vpack.c.b16 %v1304, %v1296
    %v1753 = vpack.c.b16 %v1305, %v1297
    %v1754 = vpack.c.b16 %v1306, %v1298
    %v1755 = vpack.c.b16 %v1307, %v1299
    %v1756 = vpack.c.b16 %v1308, %v1300
    %v1757 = vpack.c.b16 %v1309, %v1301
    %v1758 = vpack.c.b16 %v1310, %v1302
    %v1759 = vpack.c.b16 %v1319, %v1311
    %v1760 = vpack.c.b16 %v1320, %v1312
    %v1761 = vpack.c.b16 %v1321, %v1313
    %v1762 = vpack.c.b16 %v1322, %v1314
    %v1763 = vpack.c.b16 %v1323, %v1315
    %v1764 = vpack.c.b16 %v1324, %v1316
    %v1765 = vpack.c.b16 %v1325, %v1317
    %v1766 = vpack.c.b16 %v1326, %v1318
    %v1767 = vpack.c.b16 %v1335, %v1327
    %v1768 = vpack.c.b16 %v1336, %v1328
    %v1769 = vpack.c.b16 %v1337, %v1329
    %v1770 = vpack.c.b16 %v1338, %v1330
    %v1771 = vpack.c.b16 %v1339, %v1331
    %v1772 = vpack.c.b16 %v1340, %v1332
    %v1773 = vpack.c.b16 %v1341, %v1333
    %v1774 = vpack.c.b16 %v1342, %v1334
    %v1775 = vpack.c.b16 %v1351, %v1343
    %v1776 = vpack.c.b16 %v1352, %v1344
    %v1777 = vpack.c.b16 %v1353, %v1345
    %v1778 = vpack.c.b16 %v1354, %v1346
    %v1779 = vpack.c.b16 %v1355, %v1347
    %v1780 = vpack.c.b16 %v1356, %v1348
    %v1781 = vpack.c.b16 %v1357, %v1349
    %v1782 = vpack.c.b16 %v1358, %v1350
    %v1783 = vpack.c.b16 %v1367, %v1359
    %v1784 = vpack.c.b16 %v1368, %v1360
    %v1785 = vpack.c.b16 %v1369, %v1361
    %v1786 = vpack.c.b16 %v1370, %v1362
    %v1787 = vpack.c.b16 %v1371, %v1363
    %v1788 = vpack.c.b16 %v1372, %v1364
    %v1789 = vpack.c.b16 %v1373, %v1365
    %v1790 = vpack.c.b16 %v1374, %v1366
    %v1791 = vpack.c.b16 %v1383, %v1375
    %v1792 = vpack.c.b16 %v1384, %v1376
    %v1793 = vpack.c.b16 %v1385, %v1377
    %v1794 = vpack.c.b16 %v1386, %v1378
    %v1795 = vpack.c.b16 %v1387, %v1379
    %v1796 = vpack.c.b16 %v1388, %v1380
    %v1797 = vpack.c.b16 %v1389, %v1381
    %v1798 = vpack.c.b16 %v1390, %v1382
    %v1799 = vpack.c.b16 %v1399, %v1391
    %v1800 = vpack.c.b16 %v1400, %v1392
    %v1801 = vpack.c.b16 %v1401, %v1393
    %v1802 = vpack.c.b16 %v1402, %v1394
    %v1803 = vpack.c.b16 %v1403, %v1395
    %v1804 = vpack.c.b16 %v1404, %v1396
    %v1805 = vpack.c.b16 %v1405, %v1397
    %v1806 = vpack.c.b16 %v1406, %v1398
    %v1807 = vpack.c.b16 %v1415, %v1407
    %v1808 = vpack.c.b16 %v1416, %v1408
    %v1809 = vpack.c.b16 %v1417, %v1409
    %v1810 = vpack.c.b16 %v1418, %v1410
    %v1811 = vpack.c.b16 %v1419, %v1411
    %v1812 = vpack.c.b16 %v1420, %v1412
    %v1813 = vpack.c.b16 %v1421, %v1413
    %v1814 = vpack.c.b16 %v1422, %v1414
    %v1815 = vpack.c.b16 %v1431, %v1423
    %v1816 = vpack.c.b16 %v1432, %v1424
    %v1817 = vpack.c.b16 %v1433, %v1425
    %v1818 = vpack.c.b16 %v1434, %v1426
    %v1819 = vpack.c.b16 %v1435, %v1427
    %v1820 = vpack.c.b16 %v1436, %v1428
    %v1821 = vpack.c.b16 %v1437, %v1429
    %v1822 = vpack.c.b16 %v1438, %v1430
    %v1823 = vpack.c.b16 %v1447, %v1439
    %v1824 = vpack.c.b16 %v1448, %v1440
    %v1825 = vpack.c.b16 %v1449, %v1441
    %v1826 = vpack.c.b16 %v1450, %v1442
    %v1827 = vpack.c.b16 %v1451, %v1443
    %v1828 = vpack.c.b16 %v1452, %v1444
    %v1829 = vpack.c.b16 %v1453, %v1445
    %v1830 = vpack.c.b16 %v1454, %v1446
    %v1831 = vpack.c.b16 %v1463, %v1455
    %v1832 = vpack.c.b16 %v1464, %v1456
    %v1833 = vpack.c.b16 %v1465, %v1457
    %v1834 = vpack.c.b16 %v1466, %v1458
    %v1835 = vpack.c.b16 %v1467, %v1459
    %v1836 = vpack.c.b16 %v1468, %v1460
    %v1837 = vpack.c.b16 %v1469, %v1461
    %v1838 = vpack.c.b16 %v1470, %v1462
    %v1839 = vpack.c.b16 %v1479, %v1471
    %v1840 = vpack.c.b16 %v1480, %v1472
    %v1841 = vpack.c.b16 %v1481, %v1473
    %v1842 = vpack.c.b16 %v1482, %v1474
    %v1843 = vpack.c.b16 %v1483, %v1475
    %v1844 = vpack.c.b16 %v1484, %v1476
    %v1845 = vpack.c.b16 %v1485, %v1477
    %v1846 = vpack.c.b16 %v1486, %v1478
    %v1847 = vpack.c.b16 %v1495, %v1487
    %v1848 = vpack.c.b16 %v1496, %v1488
    %v1849 = vpack.c.b16 %v1497, %v1489
    %v1850 = vpack.c.b16 %v1498, %v1490
    %v1851 = vpack.c.b16 %v1499, %v1491
    %v1852 = vpack.c.b16 %v1500, %v1492
    %v1853 = vpack.c.b16 %v1501, %v1493
    %v1854 = vpack.c.b16 %v1502, %v1494
    %v1855 = vpack.c.b16 %v1511, %v1503
    %v1856 = vpack.c.b16 %v1512, %v1504
    %v1857 = vpack.c.b16 %v1513, %v1505
    %v1858 = vpack.c.b16 %v1514, %v1506
    %v1859 = vpack.c.b16 %v1515, %v1507
    %v1860 = vpack.c.b16 %v1516, %v1508
    %v1861 = vpack.c.b16 %v1517, %v1509
    %v1862 = vpack.c.b16 %v1518, %v1510
    %v1863 = vpack.c.b16 %v1527, %v1519
    %v1864 = vpack.c.b16 %v1528, %v1520
    %v1865 = vpack.c.b16 %v1529, %v1521
    %v1866 = vpack.c.b16 %v1530, %v1522
    %v1867 = vpack.c.b16 %v1531, %v1523
    %v1868 = vpack.c.b16 %v1532, %v1524
    %v1869 = vpack.c.b16 %v1533, %v1525
    %v1870 = vpack.c.b16 %v1534, %v1526
    %v1871 = vpack.c.b16 %v1543, %v1535
    %v1872 = vpack.c.b16 %v1544, %v1536
    %v1873 = vpack.c.b16 %v1545, %v1537
    %v1874 = vpack.c.b16 %v1546, %v1538
    %v1875 = vpack.c.b16 %v1547, %v1539
    %v1876 = vpack.c.b16 %v1548, %v1540
    %v1877 = vpack.c.b16 %v1549, %v1541
    %v1878 = vpack.c.b16 %v1550, %v1542
    %v1879 = vpack.c.b16 %v1559, %v1551
    %v1880 = vpack.c.b16 %v1560, %v1552
    %v1881 = vpack.c.b16 %v1561, %v1553
    %v1882 = vpack.c.b16 %v1562, %v1554
    %v1883 = vpack.c.b16 %v1563, %v1555
    %v1884 = vpack.c.b16 %v1564, %v1556
    %v1885 = vpack.c.b16 %v1565, %v1557
    %v1886 = vpack.c.b16 %v1566, %v1558
    %v1887 = vpack.c.b16 %v1575, %v1567
    %v1888 = vpack.c.b16 %v1576, %v1568
    %v1889 = vpack.c.b16 %v1577, %v1569
    %v1890 = vpack.c.b16 %v1578, %v1570
    %v1891 = vpack.c.b16 %v1579, %v1571
    %v1892 = vpack.c.b16 %v1580, %v1572
    %v1893 = vpack.c.b16 %v1581, %v1573
    %v1894 = vpack.c.b16 %v1582, %v1574
    %v1895 = vpack.c.b16 %v1591, %v1583
    %v1896 = vpack.c.b16 %v1592, %v1584
    %v1897 = vpack.c.b16 %v1593, %v1585
    %v1898 = vpack.c.b16 %v1594, %v1586
    %v1899 = vpack.c.b16 %v1595, %v1587
    %v1900 = vpack.c.b16 %v1596, %v1588
    %v1901 = vpack.c.b16 %v1597, %v1589
    %v1902 = vpack.c.b16 %v1598, %v1590
    %v1903 = vpack.c.b16 %v1607, %v1599
    %v1904 = vpack.c.b16 %v1608, %v1600
    %v1905 = vpack.c.b16 %v1609, %v1601
    %v1906 = vpack.c.b16 %v1610, %v1602
    %v1907 = vpack.c.b16 %v1611, %v1603
    %v1908 = vpack.c.b16 %v1612, %v1604
    %v1909 = vpack.c.b16 %v1613, %v1605
    %v1910 = vpack.c.b16 %v1614, %v1606
    %v1911 = vpack.c.b16 %v1623, %v1615
    %v1912 = vpack.c.b16 %v1624, %v1616
    %v1913 = vpack.c.b16 %v1625, %v1617
    %v1914 = vpack.c.b16 %v1626, %v1618
    %v1915 = vpack.c.b16 %v1627, %v1619
    %v1916 = vpack.c.b16 %v1628, %v1620
    %v1917 = vpack.c.b16 %v1629, %v1621
    %v1918 = vpack.c.b16 %v1630, %v1622
    %v1919 = vpack.c.b16 %v1639, %v1631
    %v1920 = vpack.c.b16 %v1640, %v1632
    %v1921 = vpack.c.b16 %v1641, %v1633
    %v1922 = vpack.c.b16 %v1642, %v1634
    %v1923 = vpack.c.b16 %v1643, %v1635
    %v1924 = vpack.c.b16 %v1644, %v1636
    %v1925 = vpack.c.b16 %v1645, %v1637
    %v1926 = vpack.c.b16 %v1646, %v1638
    %v1927 = vpack.c.b16 %v1655, %v1647
    %v1928 = vpack.c.b16 %v1656, %v1648
    %v1929 = vpack.c.b16 %v1657, %v1649
    %v1930 = vpack.c.b16 %v1658, %v1650
    %v1931 = vpack.c.b16 %v1659, %v1651
    %v1932 = vpack.c.b16 %v1660, %v1652
    %v1933 = vpack.c.b16 %v1661, %v1653
    %v1934 = vpack.c.b16 %v1662, %v1654
    %v1935 = vpack.c.b16 %v1671, %v1663
    %v1936 = vpack.c.b16 %v1672, %v1664
    %v1937 = vpack.c.b16 %v1673, %v1665
    %v1938 = vpack.c.b16 %v1674, %v1666
    %v1939 = vpack.c.b16 %v1675, %v1667
    %v1940 = vpack.c.b16 %v1676, %v1668
    %v1941 = vpack.c.b16 %v1677, %v1669
    %v1942 = vpack.c.b16 %v1678, %v1670
    %v1943 = vpack.c.b16 %v1687, %v1679
    %v1944 = vpack.c.b16 %v1688, %v1680
    %v1945 = vpack.c.b16 %v1689, %v1681
    %v1946 = vpack.c.b16 %v1690, %v1682
    %v1947 = vpack.c.b16 %v1691, %v1683
    %v1948 = vpack.c.b16 %v1692, %v1684
    %v1949 = vpack.c.b16 %v1693, %v1685
    %v1950 = vpack.c.b16 %v1694, %v1686
    %2207 = vmatprep.subr.bf16.mxu0 %v1752
    %2208 = vmatpush1.bf16.msra.mxu0 %v1751
    %2209 = vmatprep.subr.bf16.mxu0 %v1744
    %2210 = vmatpush1.bf16.msra.mxu0 %v1743
    %2211 = vmatprep.subr.bf16.mxu0 %v1736
    %2212 = vmatpush1.bf16.msra.mxu0 %v1735
    %2213 = vmatprep.subr.bf16.mxu0 %v1728
    %2214 = vmatpush1.bf16.msra.mxu0 %v1727
    %2215 = vmatprep.subr.bf16.mxu0 %v1720
    %2216 = vmatpush1.bf16.msra.mxu0 %v1719
    %2217 = vmatprep.subr.bf16.mxu0 %v1712
    %2218 = vmatpush1.bf16.msra.mxu0 %v1711
    %2219 = vmatprep.subr.bf16.mxu0 %v1704
    %2220 = vmatpush1.bf16.msra.mxu0 %v1703
    %2221 = vmatprep.subr.bf16.mxu0 %v1696
    %2222 = vmatpush1.bf16.msra.mxu0 %v1695
    %2223 = vmatprep.subr.bf16.mxu0 %v1816
    %2224 = vmatpush2.bf16.msra.mxu0 %v1815
    %2225 = vmatprep.subr.bf16.mxu0 %v1808
    %2226 = vmatpush2.bf16.msra.mxu0 %v1807
    %2227 = vmatprep.subr.bf16.mxu0 %v1800
    %2228 = vmatpush2.bf16.msra.mxu0 %v1799
    %2229 = vmatprep.subr.bf16.mxu0 %v1792
    %2230 = vmatpush2.bf16.msra.mxu0 %v1791
    %2231 = vmatprep.subr.bf16.mxu0 %v1784
    %2232 = vmatpush2.bf16.msra.mxu0 %v1783
    %2233 = vmatprep.subr.bf16.mxu0 %v1776
    %2234 = vmatpush2.bf16.msra.mxu0 %v1775
    %2235 = vmatprep.subr.bf16.mxu0 %v1768
    %2236 = vmatpush2.bf16.msra.mxu0 %v1767
    %2237 = vmatprep.subr.bf16.mxu0 %v1760
    %2238 = vmatpush2.bf16.msra.mxu0 %v1759
    %2239 = vmatprep.mubr.bf16.mxu0 %v626
    %2240 = vmatmul.mubr.bf16.gmra.mxu0 %v625
    %v2241 = vpop.f32.mrf.mxu0
    %v2242 = vadd.f32 %v890, %v2241
    %v2243 = vpop.f32.mrf.mxu0
    %v2244 = vadd.f32 %v894, %v2243
    %v2245 = vpop.f32.mrf.mxu0
    %v2246 = vpop.f32.mrf.mxu0
    %2247 = vdwg.mxu0
    %2248 = vmatprep.subr.bf16.mxu0 %v1880
    %2249 = vmatpush1.bf16.msra.mxu0 %v1879
    %2250 = vmatprep.subr.bf16.mxu0 %v1872
    %2251 = vmatpush1.bf16.msra.mxu0 %v1871
    %2252 = vmatprep.subr.bf16.mxu0 %v1864
    %2253 = vmatpush1.bf16.msra.mxu0 %v1863
    %2254 = vmatprep.subr.bf16.mxu0 %v1856
    %2255 = vmatpush1.bf16.msra.mxu0 %v1855
    %2256 = vmatprep.subr.bf16.mxu0 %v1848
    %2257 = vmatpush1.bf16.msra.mxu0 %v1847
    %2258 = vmatprep.subr.bf16.mxu0 %v1840
    %2259 = vmatpush1.bf16.msra.mxu0 %v1839
    %2260 = vmatprep.subr.bf16.mxu0 %v1832
    %2261 = vmatpush1.bf16.msra.mxu0 %v1831
    %2262 = vmatprep.subr.bf16.mxu0 %v1824
    %2263 = vmatpush1.bf16.msra.mxu0 %v1823
    %2264 = vmatprep.subr.bf16.mxu0 %v1944
    %2265 = vmatpush2.bf16.msra.mxu0 %v1943
    %2266 = vmatprep.subr.bf16.mxu0 %v1936
    %2267 = vmatpush2.bf16.msra.mxu0 %v1935
    %2268 = vmatprep.subr.bf16.mxu0 %v1928
    %2269 = vmatpush2.bf16.msra.mxu0 %v1927
    %2270 = vmatprep.subr.bf16.mxu0 %v1920
    %2271 = vmatpush2.bf16.msra.mxu0 %v1919
    %2272 = vmatprep.subr.bf16.mxu0 %v1912
    %2273 = vmatpush2.bf16.msra.mxu0 %v1911
    %2274 = vmatprep.subr.bf16.mxu0 %v1904
    %2275 = vmatpush2.bf16.msra.mxu0 %v1903
    %2276 = vmatprep.subr.bf16.mxu0 %v1896
    %2277 = vmatpush2.bf16.msra.mxu0 %v1895
    %2278 = vmatprep.subr.bf16.mxu0 %v1888
    %2279 = vmatpush2.bf16.msra.mxu0 %v1887
    %2280 = vmatprep.mubr.bf16.mxu0 %v628
    %2281 = vmatmul.mubr.bf16.gmra.mxu0 %v627
    %v2282 = vpop.f32.mrf.mxu0
    %v2283 = vadd.f32 %v2242, %v2282
    %v2284 = vpop.f32.mrf.mxu0
    %v2285 = vadd.f32 %v2244, %v2284
    %v2286 = vpop.f32.mrf.mxu0
    %v2287 = vpop.f32.mrf.mxu0
    %2288 = vdwg.mxu0
    %2289 = vmatprep.subr.bf16.mxu0 %v1754
    %2290 = vmatpush1.bf16.msra.mxu0 %v1753
    %2291 = vmatprep.subr.bf16.mxu0 %v1746
    %2292 = vmatpush1.bf16.msra.mxu0 %v1745
    %2293 = vmatprep.subr.bf16.mxu0 %v1738
    %2294 = vmatpush1.bf16.msra.mxu0 %v1737
    %2295 = vmatprep.subr.bf16.mxu0 %v1730
    %2296 = vmatpush1.bf16.msra.mxu0 %v1729
    %2297 = vmatprep.subr.bf16.mxu0 %v1722
    %2298 = vmatpush1.bf16.msra.mxu0 %v1721
    %2299 = vmatprep.subr.bf16.mxu0 %v1714
    %2300 = vmatpush1.bf16.msra.mxu0 %v1713
    %2301 = vmatprep.subr.bf16.mxu0 %v1706
    %2302 = vmatpush1.bf16.msra.mxu0 %v1705
    %2303 = vmatprep.subr.bf16.mxu0 %v1698
    %2304 = vmatpush1.bf16.msra.mxu0 %v1697
    %2305 = vmatprep.subr.bf16.mxu0 %v1818
    %2306 = vmatpush2.bf16.msra.mxu0 %v1817
    %2307 = vmatprep.subr.bf16.mxu0 %v1810
    %2308 = vmatpush2.bf16.msra.mxu0 %v1809
    %2309 = vmatprep.subr.bf16.mxu0 %v1802
    %2310 = vmatpush2.bf16.msra.mxu0 %v1801
    %2311 = vmatprep.subr.bf16.mxu0 %v1794
    %2312 = vmatpush2.bf16.msra.mxu0 %v1793
    %2313 = vmatprep.subr.bf16.mxu0 %v1786
    %2314 = vmatpush2.bf16.msra.mxu0 %v1785
    %2315 = vmatprep.subr.bf16.mxu0 %v1778
    %2316 = vmatpush2.bf16.msra.mxu0 %v1777
    %2317 = vmatprep.subr.bf16.mxu0 %v1770
    %2318 = vmatpush2.bf16.msra.mxu0 %v1769
    %2319 = vmatprep.subr.bf16.mxu0 %v1762
    %2320 = vmatpush2.bf16.msra.mxu0 %v1761
    %2321 = vmatprep.mubr.bf16.mxu0 %v626
    %2322 = vmatmul.mubr.bf16.gmra.mxu0 %v625
    %v2323 = vpop.f32.mrf.mxu0
    %v2324 = vadd.f32 %v898, %v2323
    %v2325 = vpop.f32.mrf.mxu0
    %v2326 = vadd.f32 %v902, %v2325
    %v2327 = vpop.f32.mrf.mxu0
    %v2328 = vpop.f32.mrf.mxu0
    %2329 = vdwg.mxu0
    %2330 = vmatprep.subr.bf16.mxu0 %v1882
    %2331 = vmatpush1.bf16.msra.mxu0 %v1881
    %2332 = vmatprep.subr.bf16.mxu0 %v1874
    %2333 = vmatpush1.bf16.msra.mxu0 %v1873
    %2334 = vmatprep.subr.bf16.mxu0 %v1866
    %2335 = vmatpush1.bf16.msra.mxu0 %v1865
    %2336 = vmatprep.subr.bf16.mxu0 %v1858
    %2337 = vmatpush1.bf16.msra.mxu0 %v1857
    %2338 = vmatprep.subr.bf16.mxu0 %v1850
    %2339 = vmatpush1.bf16.msra.mxu0 %v1849
    %2340 = vmatprep.subr.bf16.mxu0 %v1842
    %2341 = vmatpush1.bf16.msra.mxu0 %v1841
    %2342 = vmatprep.subr.bf16.mxu0 %v1834
    %2343 = vmatpush1.bf16.msra.mxu0 %v1833
    %2344 = vmatprep.subr.bf16.mxu0 %v1826
    %2345 = vmatpush1.bf16.msra.mxu0 %v1825
    %2346 = vmatprep.subr.bf16.mxu0 %v1946
    %2347 = vmatpush2.bf16.msra.mxu0 %v1945
    %2348 = vmatprep.subr.bf16.mxu0 %v1938
    %2349 = vmatpush2.bf16.msra.mxu0 %v1937
    %2350 = vmatprep.subr.bf16.mxu0 %v1930
    %2351 = vmatpush2.bf16.msra.mxu0 %v1929
    %2352 = vmatprep.subr.bf16.mxu0 %v1922
    %2353 = vmatpush2.bf16.msra.mxu0 %v1921
    %2354 = vmatprep.subr.bf16.mxu0 %v1914
    %2355 = vmatpush2.bf16.msra.mxu0 %v1913
    %2356 = vmatprep.subr.bf16.mxu0 %v1906
    %2357 = vmatpush2.bf16.msra.mxu0 %v1905
    %2358 = vmatprep.subr.bf16.mxu0 %v1898
    %2359 = vmatpush2.bf16.msra.mxu0 %v1897
    %2360 = vmatprep.subr.bf16.mxu0 %v1890
    %2361 = vmatpush2.bf16.msra.mxu0 %v1889
    %2362 = vmatprep.mubr.bf16.mxu0 %v628
    %2363 = vmatmul.mubr.bf16.gmra.mxu0 %v627
    %v2364 = vpop.f32.mrf.mxu0
    %v2365 = vadd.f32 %v2324, %v2364
    %v2366 = vpop.f32.mrf.mxu0
    %v2367 = vadd.f32 %v2326, %v2366
    %v2368 = vpop.f32.mrf.mxu0
    %v2369 = vpop.f32.mrf.mxu0
    %2370 = vdwg.mxu0
    %2371 = vmatprep.subr.bf16.mxu0 %v1756
    %2372 = vmatpush1.bf16.msra.mxu0 %v1755
    %2373 = vmatprep.subr.bf16.mxu0 %v1748
    %2374 = vmatpush1.bf16.msra.mxu0 %v1747
    %2375 = vmatprep.subr.bf16.mxu0 %v1740
    %2376 = vmatpush1.bf16.msra.mxu0 %v1739
    %2377 = vmatprep.subr.bf16.mxu0 %v1732
    %2378 = vmatpush1.bf16.msra.mxu0 %v1731
    %2379 = vmatprep.subr.bf16.mxu0 %v1724
    %2380 = vmatpush1.bf16.msra.mxu0 %v1723
    %2381 = vmatprep.subr.bf16.mxu0 %v1716
    %2382 = vmatpush1.bf16.msra.mxu0 %v1715
    %2383 = vmatprep.subr.bf16.mxu0 %v1708
    %2384 = vmatpush1.bf16.msra.mxu0 %v1707
    %2385 = vmatprep.subr.bf16.mxu0 %v1700
    %2386 = vmatpush1.bf16.msra.mxu0 %v1699
    %2387 = vmatprep.subr.bf16.mxu0 %v1820
    %2388 = vmatpush2.bf16.msra.mxu0 %v1819
    %2389 = vmatprep.subr.bf16.mxu0 %v1812
    %2390 = vmatpush2.bf16.msra.mxu0 %v1811
    %2391 = vmatprep.subr.bf16.mxu0 %v1804
    %2392 = vmatpush2.bf16.msra.mxu0 %v1803
    %2393 = vmatprep.subr.bf16.mxu0 %v1796
    %2394 = vmatpush2.bf16.msra.mxu0 %v1795
    %2395 = vmatprep.subr.bf16.mxu0 %v1788
    %2396 = vmatpush2.bf16.msra.mxu0 %v1787
    %2397 = vmatprep.subr.bf16.mxu0 %v1780
    %2398 = vmatpush2.bf16.msra.mxu0 %v1779
    %2399 = vmatprep.subr.bf16.mxu0 %v1772
    %2400 = vmatpush2.bf16.msra.mxu0 %v1771
    %2401 = vmatprep.subr.bf16.mxu0 %v1764
    %2402 = vmatpush2.bf16.msra.mxu0 %v1763
    %2403 = vmatprep.mubr.bf16.mxu0 %v626
    %2404 = vmatmul.mubr.bf16.gmra.mxu0 %v625
    %v2405 = vpop.f32.mrf.mxu0
    %v2406 = vadd.f32 %v906, %v2405
    %v2407 = vpop.f32.mrf.mxu0
    %v2408 = vadd.f32 %v910, %v2407
    %v2409 = vpop.f32.mrf.mxu0
    %v2410 = vpop.f32.mrf.mxu0
    %2411 = vdwg.mxu0
    %2412 = vmatprep.subr.bf16.mxu0 %v1884
    %2413 = vmatpush1.bf16.msra.mxu0 %v1883
    %2414 = vmatprep.subr.bf16.mxu0 %v1876
    %2415 = vmatpush1.bf16.msra.mxu0 %v1875
    %2416 = vmatprep.subr.bf16.mxu0 %v1868
    %2417 = vmatpush1.bf16.msra.mxu0 %v1867
    %2418 = vmatprep.subr.bf16.mxu0 %v1860
    %2419 = vmatpush1.bf16.msra.mxu0 %v1859
    %2420 = vmatprep.subr.bf16.mxu0 %v1852
    %2421 = vmatpush1.bf16.msra.mxu0 %v1851
    %2422 = vmatprep.subr.bf16.mxu0 %v1844
    %2423 = vmatpush1.bf16.msra.mxu0 %v1843
    %2424 = vmatprep.subr.bf16.mxu0 %v1836
    %2425 = vmatpush1.bf16.msra.mxu0 %v1835
    %2426 = vmatprep.subr.bf16.mxu0 %v1828
    %2427 = vmatpush1.bf16.msra.mxu0 %v1827
    %2428 = vmatprep.subr.bf16.mxu0 %v1948
    %2429 = vmatpush2.bf16.msra.mxu0 %v1947
    %2430 = vmatprep.subr.bf16.mxu0 %v1940
    %2431 = vmatpush2.bf16.msra.mxu0 %v1939
    %2432 = vmatprep.subr.bf16.mxu0 %v1932
    %2433 = vmatpush2.bf16.msra.mxu0 %v1931
    %2434 = vmatprep.subr.bf16.mxu0 %v1924
    %2435 = vmatpush2.bf16.msra.mxu0 %v1923
    %2436 = vmatprep.subr.bf16.mxu0 %v1916
    %2437 = vmatpush2.bf16.msra.mxu0 %v1915
    %2438 = vmatprep.subr.bf16.mxu0 %v1908
    %2439 = vmatpush2.bf16.msra.mxu0 %v1907
    %2440 = vmatprep.subr.bf16.mxu0 %v1900
    %2441 = vmatpush2.bf16.msra.mxu0 %v1899
    %2442 = vmatprep.subr.bf16.mxu0 %v1892
    %2443 = vmatpush2.bf16.msra.mxu0 %v1891
    %2444 = vmatprep.mubr.bf16.mxu0 %v628
    %2445 = vmatmul.mubr.bf16.gmra.mxu0 %v627
    %v2446 = vpop.f32.mrf.mxu0
    %v2447 = vadd.f32 %v2406, %v2446
    %v2448 = vpop.f32.mrf.mxu0
    %v2449 = vadd.f32 %v2408, %v2448
    %v2450 = vpop.f32.mrf.mxu0
    %v2451 = vpop.f32.mrf.mxu0
    %2452 = vdwg.mxu0
    %2453 = vmatprep.subr.bf16.mxu0 %v1758
    %2454 = vmatpush1.bf16.msra.mxu0 %v1757
    %2455 = vmatprep.subr.bf16.mxu0 %v1750
    %2456 = vmatpush1.bf16.msra.mxu0 %v1749
    %2457 = vmatprep.subr.bf16.mxu0 %v1742
    %2458 = vmatpush1.bf16.msra.mxu0 %v1741
    %2459 = vmatprep.subr.bf16.mxu0 %v1734
    %2460 = vmatpush1.bf16.msra.mxu0 %v1733
    %2461 = vmatprep.subr.bf16.mxu0 %v1726
    %2462 = vmatpush1.bf16.msra.mxu0 %v1725
    %2463 = vmatprep.subr.bf16.mxu0 %v1718
    %2464 = vmatpush1.bf16.msra.mxu0 %v1717
    %2465 = vmatprep.subr.bf16.mxu0 %v1710
    %2466 = vmatpush1.bf16.msra.mxu0 %v1709
    %2467 = vmatprep.subr.bf16.mxu0 %v1702
    %2468 = vmatpush1.bf16.msra.mxu0 %v1701
    %2469 = vmatprep.subr.bf16.mxu0 %v1822
    %2470 = vmatpush2.bf16.msra.mxu0 %v1821
    %2471 = vmatprep.subr.bf16.mxu0 %v1814
    %2472 = vmatpush2.bf16.msra.mxu0 %v1813
    %2473 = vmatprep.subr.bf16.mxu0 %v1806
    %2474 = vmatpush2.bf16.msra.mxu0 %v1805
    %2475 = vmatprep.subr.bf16.mxu0 %v1798
    %2476 = vmatpush2.bf16.msra.mxu0 %v1797
    %2477 = vmatprep.subr.bf16.mxu0 %v1790
    %2478 = vmatpush2.bf16.msra.mxu0 %v1789
    %2479 = vmatprep.subr.bf16.mxu0 %v1782
    %2480 = vmatpush2.bf16.msra.mxu0 %v1781
    %2481 = vmatprep.subr.bf16.mxu0 %v1774
    %2482 = vmatpush2.bf16.msra.mxu0 %v1773
    %2483 = vmatprep.subr.bf16.mxu0 %v1766
    %2484 = vmatpush2.bf16.msra.mxu0 %v1765
    %2485 = vmatprep.mubr.bf16.mxu0 %v626
    %2486 = vmatmul.mubr.bf16.gmra.mxu0 %v625
    %v2487 = vpop.f32.mrf.mxu0
    %v2488 = vadd.f32 %v914, %v2487
    %v2489 = vpop.f32.mrf.mxu0
    %v2490 = vadd.f32 %v918, %v2489
    %v2491 = vpop.f32.mrf.mxu0
    %v2492 = vpop.f32.mrf.mxu0
    %2493 = vdwg.mxu0
    %2494 = vmatprep.subr.bf16.mxu0 %v1886
    %2495 = vmatpush1.bf16.msra.mxu0 %v1885
    %2496 = vmatprep.subr.bf16.mxu0 %v1878
    %2497 = vmatpush1.bf16.msra.mxu0 %v1877
    %2498 = vmatprep.subr.bf16.mxu0 %v1870
    %2499 = vmatpush1.bf16.msra.mxu0 %v1869
    %2500 = vmatprep.subr.bf16.mxu0 %v1862
    %2501 = vmatpush1.bf16.msra.mxu0 %v1861
    %2502 = vmatprep.subr.bf16.mxu0 %v1854
    %2503 = vmatpush1.bf16.msra.mxu0 %v1853
    %2504 = vmatprep.subr.bf16.mxu0 %v1846
    %2505 = vmatpush1.bf16.msra.mxu0 %v1845
    %2506 = vmatprep.subr.bf16.mxu0 %v1838
    %2507 = vmatpush1.bf16.msra.mxu0 %v1837
    %2508 = vmatprep.subr.bf16.mxu0 %v1830
    %2509 = vmatpush1.bf16.msra.mxu0 %v1829
    %2510 = vmatprep.subr.bf16.mxu0 %v1950
    %2511 = vmatpush2.bf16.msra.mxu0 %v1949
    %2512 = vmatprep.subr.bf16.mxu0 %v1942
    %2513 = vmatpush2.bf16.msra.mxu0 %v1941
    %2514 = vmatprep.subr.bf16.mxu0 %v1934
    %2515 = vmatpush2.bf16.msra.mxu0 %v1933
    %2516 = vmatprep.subr.bf16.mxu0 %v1926
    %2517 = vmatpush2.bf16.msra.mxu0 %v1925
    %2518 = vmatprep.subr.bf16.mxu0 %v1918
    %2519 = vmatpush2.bf16.msra.mxu0 %v1917
    %2520 = vmatprep.subr.bf16.mxu0 %v1910
    %2521 = vmatpush2.bf16.msra.mxu0 %v1909
    %2522 = vmatprep.subr.bf16.mxu0 %v1902
    %2523 = vmatpush2.bf16.msra.mxu0 %v1901
    %2524 = vmatprep.subr.bf16.mxu0 %v1894
    %2525 = vmatpush2.bf16.msra.mxu0 %v1893
    %2526 = vmatprep.mubr.bf16.mxu0 %v628
    %2527 = vmatmul.mubr.bf16.gmra.mxu0 %v627
    %v2528 = vpop.f32.mrf.mxu0
    %v2529 = vadd.f32 %v2488, %v2528
    %v2530 = vpop.f32.mrf.mxu0
    %v2531 = vadd.f32 %v2490, %v2530
    %v2532 = vpop.f32.mrf.mxu0
    %v2533 = vpop.f32.mrf.mxu0
    %2534 = vdwg.mxu0
    %v2535 = vmax.f32 %v2283, 0.0
    %v2536 = vmax.f32 %v2285, 0.0
    %v2537 = vmax.f32 %v2365, 0.0
    %v2538 = vmax.f32 %v2367, 0.0
    %v2539 = vmax.f32 %v2447, 0.0
    %v2540 = vmax.f32 %v2449, 0.0
    %v2541 = vmax.f32 %v2529, 0.0
    %v2542 = vmax.f32 %v2531, 0.0
    %v2543 = vpack.c.bf16 %v2535, %v2535
    %v2544 = vpack.c.bf16 %v2536, %v2536
    %v2545 = vpack.c.bf16 %v2537, %v2537
    %v2546 = vpack.c.bf16 %v2538, %v2538
    %v2547 = vpack.c.bf16 %v2539, %v2539
    %v2548 = vpack.c.bf16 %v2540, %v2540
    %v2549 = vpack.c.bf16 %v2541, %v2541
    %v2550 = vpack.c.bf16 %v2542, %v2542
    %v2551 = vld [vmem:[#allocation9] sm:$0xff]
    %v2552 = vld [vmem:[#allocation9 + $0x8] sm:$0xff]
    %v2553 = vld [vmem:[#allocation9 + $0x10] sm:$0xff]
    %v2554 = vld [vmem:[#allocation9 + $0x18] sm:$0xff]
    %v2555 = vld [vmem:[#allocation9 + $0x20] sm:$0xff]
    %v2556 = vld [vmem:[#allocation9 + $0x28] sm:$0xff]
    %v2557 = vld [vmem:[#allocation9 + $0x30] sm:$0xff]
    %v2558 = vld [vmem:[#allocation9 + $0x38] sm:$0xff]
    %v2559 = vld [vmem:[#allocation9 + $0x40] sm:$0xff]
    %v2560 = vld [vmem:[#allocation9 + $0x48] sm:$0xff]
    %v2561 = vld [vmem:[#allocation9 + $0x50] sm:$0xff]
    %v2562 = vld [vmem:[#allocation9 + $0x58] sm:$0xff]
    %v2563 = vld [vmem:[#allocation9 + $0x60] sm:$0xff]
    %v2564 = vld [vmem:[#allocation9 + $0x68] sm:$0xff]
    %v2565 = vld [vmem:[#allocation9 + $0x70] sm:$0xff]
    %v2566 = vld [vmem:[#allocation9 + $0x78] sm:$0xff]
    %v2567 = vld [vmem:[#allocation9 + $0x80] sm:$0xff]
    %v2568 = vld [vmem:[#allocation9 + $0x88] sm:$0xff]
    %v2569 = vld [vmem:[#allocation9 + $0x90] sm:$0xff]
    %v2570 = vld [vmem:[#allocation9 + $0x98] sm:$0xff]
    %v2571 = vld [vmem:[#allocation9 + $0xa0] sm:$0xff]
    %v2572 = vld [vmem:[#allocation9 + $0xa8] sm:$0xff]
    %v2573 = vld [vmem:[#allocation9 + $0xb0] sm:$0xff]
    %v2574 = vld [vmem:[#allocation9 + $0xb8] sm:$0xff]
    %v2575 = vld [vmem:[#allocation9 + $0xc0] sm:$0xff]
    %v2576 = vld [vmem:[#allocation9 + $0xc8] sm:$0xff]
    %v2577 = vld [vmem:[#allocation9 + $0xd0] sm:$0xff]
    %v2578 = vld [vmem:[#allocation9 + $0xd8] sm:$0xff]
    %v2579 = vld [vmem:[#allocation9 + $0xe0] sm:$0xff]
    %v2580 = vld [vmem:[#allocation9 + $0xe8] sm:$0xff]
    %v2581 = vld [vmem:[#allocation9 + $0xf0] sm:$0xff]
    %v2582 = vld [vmem:[#allocation9 + $0xf8] sm:$0xff]
    %v2583 = vld [vmem:[#allocation9 + $0x100] sm:$0xff]
    %v2584 = vld [vmem:[#allocation9 + $0x108] sm:$0xff]
    %v2585 = vld [vmem:[#allocation9 + $0x110] sm:$0xff]
    %v2586 = vld [vmem:[#allocation9 + $0x118] sm:$0xff]
    %v2587 = vld [vmem:[#allocation9 + $0x120] sm:$0xff]
    %v2588 = vld [vmem:[#allocation9 + $0x128] sm:$0xff]
    %v2589 = vld [vmem:[#allocation9 + $0x130] sm:$0xff]
    %v2590 = vld [vmem:[#allocation9 + $0x138] sm:$0xff]
    %v2591 = vld [vmem:[#allocation9 + $0x140] sm:$0xff]
    %v2592 = vld [vmem:[#allocation9 + $0x148] sm:$0xff]
    %v2593 = vld [vmem:[#allocation9 + $0x150] sm:$0xff]
    %v2594 = vld [vmem:[#allocation9 + $0x158] sm:$0xff]
    %v2595 = vld [vmem:[#allocation9 + $0x160] sm:$0xff]
    %v2596 = vld [vmem:[#allocation9 + $0x168] sm:$0xff]
    %v2597 = vld [vmem:[#allocation9 + $0x170] sm:$0xff]
    %v2598 = vld [vmem:[#allocation9 + $0x178] sm:$0xff]
    %v2599 = vld [vmem:[#allocation9 + $0x180] sm:$0xff]
    %v2600 = vld [vmem:[#allocation9 + $0x188] sm:$0xff]
    %v2601 = vld [vmem:[#allocation9 + $0x190] sm:$0xff]
    %v2602 = vld [vmem:[#allocation9 + $0x198] sm:$0xff]
    %v2603 = vld [vmem:[#allocation9 + $0x1a0] sm:$0xff]
    %v2604 = vld [vmem:[#allocation9 + $0x1a8] sm:$0xff]
    %v2605 = vld [vmem:[#allocation9 + $0x1b0] sm:$0xff]
    %v2606 = vld [vmem:[#allocation9 + $0x1b8] sm:$0xff]
    %v2607 = vld [vmem:[#allocation9 + $0x1c0] sm:$0xff]
    %v2608 = vld [vmem:[#allocation9 + $0x1c8] sm:$0xff]
    %v2609 = vld [vmem:[#allocation9 + $0x1d0] sm:$0xff]
    %v2610 = vld [vmem:[#allocation9 + $0x1d8] sm:$0xff]
    %v2611 = vld [vmem:[#allocation9 + $0x1e0] sm:$0xff]
    %v2612 = vld [vmem:[#allocation9 + $0x1e8] sm:$0xff]
    %v2613 = vld [vmem:[#allocation9 + $0x1f0] sm:$0xff]
    %v2614 = vld [vmem:[#allocation9 + $0x1f8] sm:$0xff]
    %v2615 = vld [vmem:[#allocation9 + $0x200] sm:$0xff]
    %v2616 = vld [vmem:[#allocation9 + $0x208] sm:$0xff]
    %v2617 = vld [vmem:[#allocation9 + $0x210] sm:$0xff]
    %v2618 = vld [vmem:[#allocation9 + $0x218] sm:$0xff]
    %v2619 = vld [vmem:[#allocation9 + $0x220] sm:$0xff]
    %v2620 = vld [vmem:[#allocation9 + $0x228] sm:$0xff]
    %v2621 = vld [vmem:[#allocation9 + $0x230] sm:$0xff]
    %v2622 = vld [vmem:[#allocation9 + $0x238] sm:$0xff]
    %v2623 = vld [vmem:[#allocation9 + $0x240] sm:$0xff]
    %v2624 = vld [vmem:[#allocation9 + $0x248] sm:$0xff]
    %v2625 = vld [vmem:[#allocation9 + $0x250] sm:$0xff]
    %v2626 = vld [vmem:[#allocation9 + $0x258] sm:$0xff]
    %v2627 = vld [vmem:[#allocation9 + $0x260] sm:$0xff]
    %v2628 = vld [vmem:[#allocation9 + $0x268] sm:$0xff]
    %v2629 = vld [vmem:[#allocation9 + $0x270] sm:$0xff]
    %v2630 = vld [vmem:[#allocation9 + $0x278] sm:$0xff]
    %v2631 = vld [vmem:[#allocation9 + $0x280] sm:$0xff]
    %v2632 = vld [vmem:[#allocation9 + $0x288] sm:$0xff]
    %v2633 = vld [vmem:[#allocation9 + $0x290] sm:$0xff]
    %v2634 = vld [vmem:[#allocation9 + $0x298] sm:$0xff]
    %v2635 = vld [vmem:[#allocation9 + $0x2a0] sm:$0xff]
    %v2636 = vld [vmem:[#allocation9 + $0x2a8] sm:$0xff]
    %v2637 = vld [vmem:[#allocation9 + $0x2b0] sm:$0xff]
    %v2638 = vld [vmem:[#allocation9 + $0x2b8] sm:$0xff]
    %v2639 = vld [vmem:[#allocation9 + $0x2c0] sm:$0xff]
    %v2640 = vld [vmem:[#allocation9 + $0x2c8] sm:$0xff]
    %v2641 = vld [vmem:[#allocation9 + $0x2d0] sm:$0xff]
    %v2642 = vld [vmem:[#allocation9 + $0x2d8] sm:$0xff]
    %v2643 = vld [vmem:[#allocation9 + $0x2e0] sm:$0xff]
    %v2644 = vld [vmem:[#allocation9 + $0x2e8] sm:$0xff]
    %v2645 = vld [vmem:[#allocation9 + $0x2f0] sm:$0xff]
    %v2646 = vld [vmem:[#allocation9 + $0x2f8] sm:$0xff]
    %v2647 = vld [vmem:[#allocation9 + $0x300] sm:$0xff]
    %v2648 = vld [vmem:[#allocation9 + $0x308] sm:$0xff]
    %v2649 = vld [vmem:[#allocation9 + $0x310] sm:$0xff]
    %v2650 = vld [vmem:[#allocation9 + $0x318] sm:$0xff]
    %v2651 = vld [vmem:[#allocation9 + $0x320] sm:$0xff]
    %v2652 = vld [vmem:[#allocation9 + $0x328] sm:$0xff]
    %v2653 = vld [vmem:[#allocation9 + $0x330] sm:$0xff]
    %v2654 = vld [vmem:[#allocation9 + $0x338] sm:$0xff]
    %v2655 = vld [vmem:[#allocation9 + $0x340] sm:$0xff]
    %v2656 = vld [vmem:[#allocation9 + $0x348] sm:$0xff]
    %v2657 = vld [vmem:[#allocation9 + $0x350] sm:$0xff]
    %v2658 = vld [vmem:[#allocation9 + $0x358] sm:$0xff]
    %v2659 = vld [vmem:[#allocation9 + $0x360] sm:$0xff]
    %v2660 = vld [vmem:[#allocation9 + $0x368] sm:$0xff]
    %v2661 = vld [vmem:[#allocation9 + $0x370] sm:$0xff]
    %v2662 = vld [vmem:[#allocation9 + $0x378] sm:$0xff]
    %v2663 = vld [vmem:[#allocation9 + $0x380] sm:$0xff]
    %v2664 = vld [vmem:[#allocation9 + $0x388] sm:$0xff]
    %v2665 = vld [vmem:[#allocation9 + $0x390] sm:$0xff]
    %v2666 = vld [vmem:[#allocation9 + $0x398] sm:$0xff]
    %v2667 = vld [vmem:[#allocation9 + $0x3a0] sm:$0xff]
    %v2668 = vld [vmem:[#allocation9 + $0x3a8] sm:$0xff]
    %v2669 = vld [vmem:[#allocation9 + $0x3b0] sm:$0xff]
    %v2670 = vld [vmem:[#allocation9 + $0x3b8] sm:$0xff]
    %v2671 = vld [vmem:[#allocation9 + $0x3c0] sm:$0xff]
    %v2672 = vld [vmem:[#allocation9 + $0x3c8] sm:$0xff]
    %v2673 = vld [vmem:[#allocation9 + $0x3d0] sm:$0xff]
    %v2674 = vld [vmem:[#allocation9 + $0x3d8] sm:$0xff]
    %v2675 = vld [vmem:[#allocation9 + $0x3e0] sm:$0xff]
    %v2676 = vld [vmem:[#allocation9 + $0x3e8] sm:$0xff]
    %v2677 = vld [vmem:[#allocation9 + $0x3f0] sm:$0xff]
    %v2678 = vld [vmem:[#allocation9 + $0x3f8] sm:$0xff]
    %v2679 = vld [vmem:[#allocation9 + $0x400] sm:$0xff]
    %v2680 = vld [vmem:[#allocation9 + $0x408] sm:$0xff]
    %v2681 = vld [vmem:[#allocation9 + $0x410] sm:$0xff]
    %v2682 = vld [vmem:[#allocation9 + $0x418] sm:$0xff]
    %v2683 = vld [vmem:[#allocation9 + $0x420] sm:$0xff]
    %v2684 = vld [vmem:[#allocation9 + $0x428] sm:$0xff]
    %v2685 = vld [vmem:[#allocation9 + $0x430] sm:$0xff]
    %v2686 = vld [vmem:[#allocation9 + $0x438] sm:$0xff]
    %v2687 = vld [vmem:[#allocation9 + $0x440] sm:$0xff]
    %v2688 = vld [vmem:[#allocation9 + $0x448] sm:$0xff]
    %v2689 = vld [vmem:[#allocation9 + $0x450] sm:$0xff]
    %v2690 = vld [vmem:[#allocation9 + $0x458] sm:$0xff]
    %v2691 = vld [vmem:[#allocation9 + $0x460] sm:$0xff]
    %v2692 = vld [vmem:[#allocation9 + $0x468] sm:$0xff]
    %v2693 = vld [vmem:[#allocation9 + $0x470] sm:$0xff]
    %v2694 = vld [vmem:[#allocation9 + $0x478] sm:$0xff]
    %v2695 = vld [vmem:[#allocation9 + $0x480] sm:$0xff]
    %v2696 = vld [vmem:[#allocation9 + $0x488] sm:$0xff]
    %v2697 = vld [vmem:[#allocation9 + $0x490] sm:$0xff]
    %v2698 = vld [vmem:[#allocation9 + $0x498] sm:$0xff]
    %v2699 = vld [vmem:[#allocation9 + $0x4a0] sm:$0xff]
    %v2700 = vld [vmem:[#allocation9 + $0x4a8] sm:$0xff]
    %v2701 = vld [vmem:[#allocation9 + $0x4b0] sm:$0xff]
    %v2702 = vld [vmem:[#allocation9 + $0x4b8] sm:$0xff]
    %v2703 = vld [vmem:[#allocation9 + $0x4c0] sm:$0xff]
    %v2704 = vld [vmem:[#allocation9 + $0x4c8] sm:$0xff]
    %v2705 = vld [vmem:[#allocation9 + $0x4d0] sm:$0xff]
    %v2706 = vld [vmem:[#allocation9 + $0x4d8] sm:$0xff]
    %v2707 = vld [vmem:[#allocation9 + $0x4e0] sm:$0xff]
    %v2708 = vld [vmem:[#allocation9 + $0x4e8] sm:$0xff]
    %v2709 = vld [vmem:[#allocation9 + $0x4f0] sm:$0xff]
    %v2710 = vld [vmem:[#allocation9 + $0x4f8] sm:$0xff]
    %v2711 = vld [vmem:[#allocation9 + $0x500] sm:$0xff]
    %v2712 = vld [vmem:[#allocation9 + $0x508] sm:$0xff]
    %v2713 = vld [vmem:[#allocation9 + $0x510] sm:$0xff]
    %v2714 = vld [vmem:[#allocation9 + $0x518] sm:$0xff]
    %v2715 = vld [vmem:[#allocation9 + $0x520] sm:$0xff]
    %v2716 = vld [vmem:[#allocation9 + $0x528] sm:$0xff]
    %v2717 = vld [vmem:[#allocation9 + $0x530] sm:$0xff]
    %v2718 = vld [vmem:[#allocation9 + $0x538] sm:$0xff]
    %v2719 = vld [vmem:[#allocation9 + $0x540] sm:$0xff]
    %v2720 = vld [vmem:[#allocation9 + $0x548] sm:$0xff]
    %v2721 = vld [vmem:[#allocation9 + $0x550] sm:$0xff]
    %v2722 = vld [vmem:[#allocation9 + $0x558] sm:$0xff]
    %v2723 = vld [vmem:[#allocation9 + $0x560] sm:$0xff]
    %v2724 = vld [vmem:[#allocation9 + $0x568] sm:$0xff]
    %v2725 = vld [vmem:[#allocation9 + $0x570] sm:$0xff]
    %v2726 = vld [vmem:[#allocation9 + $0x578] sm:$0xff]
    %v2727 = vld [vmem:[#allocation9 + $0x580] sm:$0xff]
    %v2728 = vld [vmem:[#allocation9 + $0x588] sm:$0xff]
    %v2729 = vld [vmem:[#allocation9 + $0x590] sm:$0xff]
    %v2730 = vld [vmem:[#allocation9 + $0x598] sm:$0xff]
    %v2731 = vld [vmem:[#allocation9 + $0x5a0] sm:$0xff]
    %v2732 = vld [vmem:[#allocation9 + $0x5a8] sm:$0xff]
    %v2733 = vld [vmem:[#allocation9 + $0x5b0] sm:$0xff]
    %v2734 = vld [vmem:[#allocation9 + $0x5b8] sm:$0xff]
    %v2735 = vld [vmem:[#allocation9 + $0x5c0] sm:$0xff]
    %v2736 = vld [vmem:[#allocation9 + $0x5c8] sm:$0xff]
    %v2737 = vld [vmem:[#allocation9 + $0x5d0] sm:$0xff]
    %v2738 = vld [vmem:[#allocation9 + $0x5d8] sm:$0xff]
    %v2739 = vld [vmem:[#allocation9 + $0x5e0] sm:$0xff]
    %v2740 = vld [vmem:[#allocation9 + $0x5e8] sm:$0xff]
    %v2741 = vld [vmem:[#allocation9 + $0x5f0] sm:$0xff]
    %v2742 = vld [vmem:[#allocation9 + $0x5f8] sm:$0xff]
    %v2743 = vld [vmem:[#allocation9 + $0x600] sm:$0xff]
    %v2744 = vld [vmem:[#allocation9 + $0x608] sm:$0xff]
    %v2745 = vld [vmem:[#allocation9 + $0x610] sm:$0xff]
    %v2746 = vld [vmem:[#allocation9 + $0x618] sm:$0xff]
    %v2747 = vld [vmem:[#allocation9 + $0x620] sm:$0xff]
    %v2748 = vld [vmem:[#allocation9 + $0x628] sm:$0xff]
    %v2749 = vld [vmem:[#allocation9 + $0x630] sm:$0xff]
    %v2750 = vld [vmem:[#allocation9 + $0x638] sm:$0xff]
    %v2751 = vld [vmem:[#allocation9 + $0x640] sm:$0xff]
    %v2752 = vld [vmem:[#allocation9 + $0x648] sm:$0xff]
    %v2753 = vld [vmem:[#allocation9 + $0x650] sm:$0xff]
    %v2754 = vld [vmem:[#allocation9 + $0x658] sm:$0xff]
    %v2755 = vld [vmem:[#allocation9 + $0x660] sm:$0xff]
    %v2756 = vld [vmem:[#allocation9 + $0x668] sm:$0xff]
    %v2757 = vld [vmem:[#allocation9 + $0x670] sm:$0xff]
    %v2758 = vld [vmem:[#allocation9 + $0x678] sm:$0xff]
    %v2759 = vld [vmem:[#allocation9 + $0x680] sm:$0xff]
    %v2760 = vld [vmem:[#allocation9 + $0x688] sm:$0xff]
    %v2761 = vld [vmem:[#allocation9 + $0x690] sm:$0xff]
    %v2762 = vld [vmem:[#allocation9 + $0x698] sm:$0xff]
    %v2763 = vld [vmem:[#allocation9 + $0x6a0] sm:$0xff]
    %v2764 = vld [vmem:[#allocation9 + $0x6a8] sm:$0xff]
    %v2765 = vld [vmem:[#allocation9 + $0x6b0] sm:$0xff]
    %v2766 = vld [vmem:[#allocation9 + $0x6b8] sm:$0xff]
    %v2767 = vld [vmem:[#allocation9 + $0x6c0] sm:$0xff]
    %v2768 = vld [vmem:[#allocation9 + $0x6c8] sm:$0xff]
    %v2769 = vld [vmem:[#allocation9 + $0x6d0] sm:$0xff]
    %v2770 = vld [vmem:[#allocation9 + $0x6d8] sm:$0xff]
    %v2771 = vld [vmem:[#allocation9 + $0x6e0] sm:$0xff]
    %v2772 = vld [vmem:[#allocation9 + $0x6e8] sm:$0xff]
    %v2773 = vld [vmem:[#allocation9 + $0x6f0] sm:$0xff]
    %v2774 = vld [vmem:[#allocation9 + $0x6f8] sm:$0xff]
    %v2775 = vld [vmem:[#allocation9 + $0x700] sm:$0xff]
    %v2776 = vld [vmem:[#allocation9 + $0x708] sm:$0xff]
    %v2777 = vld [vmem:[#allocation9 + $0x710] sm:$0xff]
    %v2778 = vld [vmem:[#allocation9 + $0x718] sm:$0xff]
    %v2779 = vld [vmem:[#allocation9 + $0x720] sm:$0xff]
    %v2780 = vld [vmem:[#allocation9 + $0x728] sm:$0xff]
    %v2781 = vld [vmem:[#allocation9 + $0x730] sm:$0xff]
    %v2782 = vld [vmem:[#allocation9 + $0x738] sm:$0xff]
    %v2783 = vld [vmem:[#allocation9 + $0x740] sm:$0xff]
    %v2784 = vld [vmem:[#allocation9 + $0x748] sm:$0xff]
    %v2785 = vld [vmem:[#allocation9 + $0x750] sm:$0xff]
    %v2786 = vld [vmem:[#allocation9 + $0x758] sm:$0xff]
    %v2787 = vld [vmem:[#allocation9 + $0x760] sm:$0xff]
    %v2788 = vld [vmem:[#allocation9 + $0x768] sm:$0xff]
    %v2789 = vld [vmem:[#allocation9 + $0x770] sm:$0xff]
    %v2790 = vld [vmem:[#allocation9 + $0x778] sm:$0xff]
    %v2791 = vld [vmem:[#allocation9 + $0x780] sm:$0xff]
    %v2792 = vld [vmem:[#allocation9 + $0x788] sm:$0xff]
    %v2793 = vld [vmem:[#allocation9 + $0x790] sm:$0xff]
    %v2794 = vld [vmem:[#allocation9 + $0x798] sm:$0xff]
    %v2795 = vld [vmem:[#allocation9 + $0x7a0] sm:$0xff]
    %v2796 = vld [vmem:[#allocation9 + $0x7a8] sm:$0xff]
    %v2797 = vld [vmem:[#allocation9 + $0x7b0] sm:$0xff]
    %v2798 = vld [vmem:[#allocation9 + $0x7b8] sm:$0xff]
    %v2799 = vld [vmem:[#allocation9 + $0x7c0] sm:$0xff]
    %v2800 = vld [vmem:[#allocation9 + $0x7c8] sm:$0xff]
    %v2801 = vld [vmem:[#allocation9 + $0x7d0] sm:$0xff]
    %v2802 = vld [vmem:[#allocation9 + $0x7d8] sm:$0xff]
    %v2803 = vld [vmem:[#allocation9 + $0x7e0] sm:$0xff]
    %v2804 = vld [vmem:[#allocation9 + $0x7e8] sm:$0xff]
    %v2805 = vld [vmem:[#allocation9 + $0x7f0] sm:$0xff]
    %v2806 = vld [vmem:[#allocation9 + $0x7f8] sm:$0xff]
    %v2807 = vld [vmem:[#allocation10] sm:$0xf]
    %v2809 = vlaneseq
    %v2810 = vshrl.u32 %v2809, 7
    %v2811 = vsub.s32 0, %v2810
    %v2812 = vrot.slane %v2807, %v2811
    %v2813 = vlaneseq
    %v2814 = vshrl.u32 %v2813, 7
    %v2815 = vsub.s32 1, %v2814
    %v2816 = vrot.slane %v2807, %v2815
    %v2817 = vlaneseq
    %v2818 = vshrl.u32 %v2817, 7
    %v2819 = vsub.s32 2, %v2818
    %v2820 = vrot.slane %v2807, %v2819
    %v2821 = vlaneseq
    %v2822 = vshrl.u32 %v2821, 7
    %v2823 = vsub.s32 3, %v2822
    %v2824 = vrot.slane %v2807, %v2823
    %v3085 = vunpack.c.l.b16 %v2551
    %v3086 = vunpack.c.h.b16 %v2551
    %v3087 = vunpack.c.l.b16 %v2552
    %v3088 = vunpack.c.h.b16 %v2552
    %v3089 = vunpack.c.l.b16 %v2553
    %v3090 = vunpack.c.h.b16 %v2553
    %v3091 = vunpack.c.l.b16 %v2554
    %v3092 = vunpack.c.h.b16 %v2554
    %v3093 = vunpack.c.l.b16 %v2555
    %v3094 = vunpack.c.h.b16 %v2555
    %v3095 = vunpack.c.l.b16 %v2556
    %v3096 = vunpack.c.h.b16 %v2556
    %v3097 = vunpack.c.l.b16 %v2557
    %v3098 = vunpack.c.h.b16 %v2557
    %v3099 = vunpack.c.l.b16 %v2558
    %v3100 = vunpack.c.h.b16 %v2558
    %v3101 = vunpack.c.l.b16 %v2559
    %v3102 = vunpack.c.h.b16 %v2559
    %v3103 = vunpack.c.l.b16 %v2560
    %v3104 = vunpack.c.h.b16 %v2560
    %v3105 = vunpack.c.l.b16 %v2561
    %v3106 = vunpack.c.h.b16 %v2561
    %v3107 = vunpack.c.l.b16 %v2562
    %v3108 = vunpack.c.h.b16 %v2562
    %v3109 = vunpack.c.l.b16 %v2563
    %v3110 = vunpack.c.h.b16 %v2563
    %v3111 = vunpack.c.l.b16 %v2564
    %v3112 = vunpack.c.h.b16 %v2564
    %v3113 = vunpack.c.l.b16 %v2565
    %v3114 = vunpack.c.h.b16 %v2565
    %v3115 = vunpack.c.l.b16 %v2566
    %v3116 = vunpack.c.h.b16 %v2566
    %v3117 = vunpack.c.l.b16 %v2567
    %v3118 = vunpack.c.h.b16 %v2567
    %v3119 = vunpack.c.l.b16 %v2568
    %v3120 = vunpack.c.h.b16 %v2568
    %v3121 = vunpack.c.l.b16 %v2569
    %v3122 = vunpack.c.h.b16 %v2569
    %v3123 = vunpack.c.l.b16 %v2570
    %v3124 = vunpack.c.h.b16 %v2570
    %v3125 = vunpack.c.l.b16 %v2571
    %v3126 = vunpack.c.h.b16 %v2571
    %v3127 = vunpack.c.l.b16 %v2572
    %v3128 = vunpack.c.h.b16 %v2572
    %v3129 = vunpack.c.l.b16 %v2573
    %v3130 = vunpack.c.h.b16 %v2573
    %v3131 = vunpack.c.l.b16 %v2574
    %v3132 = vunpack.c.h.b16 %v2574
    %v3133 = vunpack.c.l.b16 %v2575
    %v3134 = vunpack.c.h.b16 %v2575
    %v3135 = vunpack.c.l.b16 %v2576
    %v3136 = vunpack.c.h.b16 %v2576
    %v3137 = vunpack.c.l.b16 %v2577
    %v3138 = vunpack.c.h.b16 %v2577
    %v3139 = vunpack.c.l.b16 %v2578
    %v3140 = vunpack.c.h.b16 %v2578
    %v3141 = vunpack.c.l.b16 %v2579
    %v3142 = vunpack.c.h.b16 %v2579
    %v3143 = vunpack.c.l.b16 %v2580
    %v3144 = vunpack.c.h.b16 %v2580
    %v3145 = vunpack.c.l.b16 %v2581
    %v3146 = vunpack.c.h.b16 %v2581
    %v3147 = vunpack.c.l.b16 %v2582
    %v3148 = vunpack.c.h.b16 %v2582
    %v3149 = vunpack.c.l.b16 %v2583
    %v3150 = vunpack.c.h.b16 %v2583
    %v3151 = vunpack.c.l.b16 %v2584
    %v3152 = vunpack.c.h.b16 %v2584
    %v3153 = vunpack.c.l.b16 %v2585
    %v3154 = vunpack.c.h.b16 %v2585
    %v3155 = vunpack.c.l.b16 %v2586
    %v3156 = vunpack.c.h.b16 %v2586
    %v3157 = vunpack.c.l.b16 %v2587
    %v3158 = vunpack.c.h.b16 %v2587
    %v3159 = vunpack.c.l.b16 %v2588
    %v3160 = vunpack.c.h.b16 %v2588
    %v3161 = vunpack.c.l.b16 %v2589
    %v3162 = vunpack.c.h.b16 %v2589
    %v3163 = vunpack.c.l.b16 %v2590
    %v3164 = vunpack.c.h.b16 %v2590
    %v3165 = vunpack.c.l.b16 %v2591
    %v3166 = vunpack.c.h.b16 %v2591
    %v3167 = vunpack.c.l.b16 %v2592
    %v3168 = vunpack.c.h.b16 %v2592
    %v3169 = vunpack.c.l.b16 %v2593
    %v3170 = vunpack.c.h.b16 %v2593
    %v3171 = vunpack.c.l.b16 %v2594
    %v3172 = vunpack.c.h.b16 %v2594
    %v3173 = vunpack.c.l.b16 %v2595
    %v3174 = vunpack.c.h.b16 %v2595
    %v3175 = vunpack.c.l.b16 %v2596
    %v3176 = vunpack.c.h.b16 %v2596
    %v3177 = vunpack.c.l.b16 %v2597
    %v3178 = vunpack.c.h.b16 %v2597
    %v3179 = vunpack.c.l.b16 %v2598
    %v3180 = vunpack.c.h.b16 %v2598
    %v3181 = vunpack.c.l.b16 %v2599
    %v3182 = vunpack.c.h.b16 %v2599
    %v3183 = vunpack.c.l.b16 %v2600
    %v3184 = vunpack.c.h.b16 %v2600
    %v3185 = vunpack.c.l.b16 %v2601
    %v3186 = vunpack.c.h.b16 %v2601
    %v3187 = vunpack.c.l.b16 %v2602
    %v3188 = vunpack.c.h.b16 %v2602
    %v3189 = vunpack.c.l.b16 %v2603
    %v3190 = vunpack.c.h.b16 %v2603
    %v3191 = vunpack.c.l.b16 %v2604
    %v3192 = vunpack.c.h.b16 %v2604
    %v3193 = vunpack.c.l.b16 %v2605
    %v3194 = vunpack.c.h.b16 %v2605
    %v3195 = vunpack.c.l.b16 %v2606
    %v3196 = vunpack.c.h.b16 %v2606
    %v3197 = vunpack.c.l.b16 %v2607
    %v3198 = vunpack.c.h.b16 %v2607
    %v3199 = vunpack.c.l.b16 %v2608
    %v3200 = vunpack.c.h.b16 %v2608
    %v3201 = vunpack.c.l.b16 %v2609
    %v3202 = vunpack.c.h.b16 %v2609
    %v3203 = vunpack.c.l.b16 %v2610
    %v3204 = vunpack.c.h.b16 %v2610
    %v3205 = vunpack.c.l.b16 %v2611
    %v3206 = vunpack.c.h.b16 %v2611
    %v3207 = vunpack.c.l.b16 %v2612
    %v3208 = vunpack.c.h.b16 %v2612
    %v3209 = vunpack.c.l.b16 %v2613
    %v3210 = vunpack.c.h.b16 %v2613
    %v3211 = vunpack.c.l.b16 %v2614
    %v3212 = vunpack.c.h.b16 %v2614
    %v3213 = vunpack.c.l.b16 %v2615
    %v3214 = vunpack.c.h.b16 %v2615
    %v3215 = vunpack.c.l.b16 %v2616
    %v3216 = vunpack.c.h.b16 %v2616
    %v3217 = vunpack.c.l.b16 %v2617
    %v3218 = vunpack.c.h.b16 %v2617
    %v3219 = vunpack.c.l.b16 %v2618
    %v3220 = vunpack.c.h.b16 %v2618
    %v3221 = vunpack.c.l.b16 %v2619
    %v3222 = vunpack.c.h.b16 %v2619
    %v3223 = vunpack.c.l.b16 %v2620
    %v3224 = vunpack.c.h.b16 %v2620
    %v3225 = vunpack.c.l.b16 %v2621
    %v3226 = vunpack.c.h.b16 %v2621
    %v3227 = vunpack.c.l.b16 %v2622
    %v3228 = vunpack.c.h.b16 %v2622
    %v3229 = vunpack.c.l.b16 %v2623
    %v3230 = vunpack.c.h.b16 %v2623
    %v3231 = vunpack.c.l.b16 %v2624
    %v3232 = vunpack.c.h.b16 %v2624
    %v3233 = vunpack.c.l.b16 %v2625
    %v3234 = vunpack.c.h.b16 %v2625
    %v3235 = vunpack.c.l.b16 %v2626
    %v3236 = vunpack.c.h.b16 %v2626
    %v3237 = vunpack.c.l.b16 %v2627
    %v3238 = vunpack.c.h.b16 %v2627
    %v3239 = vunpack.c.l.b16 %v2628
    %v3240 = vunpack.c.h.b16 %v2628
    %v3241 = vunpack.c.l.b16 %v2629
    %v3242 = vunpack.c.h.b16 %v2629
    %v3243 = vunpack.c.l.b16 %v2630
    %v3244 = vunpack.c.h.b16 %v2630
    %v3245 = vunpack.c.l.b16 %v2631
    %v3246 = vunpack.c.h.b16 %v2631
    %v3247 = vunpack.c.l.b16 %v2632
    %v3248 = vunpack.c.h.b16 %v2632
    %v3249 = vunpack.c.l.b16 %v2633
    %v3250 = vunpack.c.h.b16 %v2633
    %v3251 = vunpack.c.l.b16 %v2634
    %v3252 = vunpack.c.h.b16 %v2634
    %v3253 = vunpack.c.l.b16 %v2635
    %v3254 = vunpack.c.h.b16 %v2635
    %v3255 = vunpack.c.l.b16 %v2636
    %v3256 = vunpack.c.h.b16 %v2636
    %v3257 = vunpack.c.l.b16 %v2637
    %v3258 = vunpack.c.h.b16 %v2637
    %v3259 = vunpack.c.l.b16 %v2638
    %v3260 = vunpack.c.h.b16 %v2638
    %v3261 = vunpack.c.l.b16 %v2639
    %v3262 = vunpack.c.h.b16 %v2639
    %v3263 = vunpack.c.l.b16 %v2640
    %v3264 = vunpack.c.h.b16 %v2640
    %v3265 = vunpack.c.l.b16 %v2641
    %v3266 = vunpack.c.h.b16 %v2641
    %v3267 = vunpack.c.l.b16 %v2642
    %v3268 = vunpack.c.h.b16 %v2642
    %v3269 = vunpack.c.l.b16 %v2643
    %v3270 = vunpack.c.h.b16 %v2643
    %v3271 = vunpack.c.l.b16 %v2644
    %v3272 = vunpack.c.h.b16 %v2644
    %v3273 = vunpack.c.l.b16 %v2645
    %v3274 = vunpack.c.h.b16 %v2645
    %v3275 = vunpack.c.l.b16 %v2646
    %v3276 = vunpack.c.h.b16 %v2646
    %v3277 = vunpack.c.l.b16 %v2647
    %v3278 = vunpack.c.h.b16 %v2647
    %v3279 = vunpack.c.l.b16 %v2648
    %v3280 = vunpack.c.h.b16 %v2648
    %v3281 = vunpack.c.l.b16 %v2649
    %v3282 = vunpack.c.h.b16 %v2649
    %v3283 = vunpack.c.l.b16 %v2650
    %v3284 = vunpack.c.h.b16 %v2650
    %v3285 = vunpack.c.l.b16 %v2651
    %v3286 = vunpack.c.h.b16 %v2651
    %v3287 = vunpack.c.l.b16 %v2652
    %v3288 = vunpack.c.h.b16 %v2652
    %v3289 = vunpack.c.l.b16 %v2653
    %v3290 = vunpack.c.h.b16 %v2653
    %v3291 = vunpack.c.l.b16 %v2654
    %v3292 = vunpack.c.h.b16 %v2654
    %v3293 = vunpack.c.l.b16 %v2655
    %v3294 = vunpack.c.h.b16 %v2655
    %v3295 = vunpack.c.l.b16 %v2656
    %v3296 = vunpack.c.h.b16 %v2656
    %v3297 = vunpack.c.l.b16 %v2657
    %v3298 = vunpack.c.h.b16 %v2657
    %v3299 = vunpack.c.l.b16 %v2658
    %v3300 = vunpack.c.h.b16 %v2658
    %v3301 = vunpack.c.l.b16 %v2659
    %v3302 = vunpack.c.h.b16 %v2659
    %v3303 = vunpack.c.l.b16 %v2660
    %v3304 = vunpack.c.h.b16 %v2660
    %v3305 = vunpack.c.l.b16 %v2661
    %v3306 = vunpack.c.h.b16 %v2661
    %v3307 = vunpack.c.l.b16 %v2662
    %v3308 = vunpack.c.h.b16 %v2662
    %v3309 = vunpack.c.l.b16 %v2663
    %v3310 = vunpack.c.h.b16 %v2663
    %v3311 = vunpack.c.l.b16 %v2664
    %v3312 = vunpack.c.h.b16 %v2664
    %v3313 = vunpack.c.l.b16 %v2665
    %v3314 = vunpack.c.h.b16 %v2665
    %v3315 = vunpack.c.l.b16 %v2666
    %v3316 = vunpack.c.h.b16 %v2666
    %v3317 = vunpack.c.l.b16 %v2667
    %v3318 = vunpack.c.h.b16 %v2667
    %v3319 = vunpack.c.l.b16 %v2668
    %v3320 = vunpack.c.h.b16 %v2668
    %v3321 = vunpack.c.l.b16 %v2669
    %v3322 = vunpack.c.h.b16 %v2669
    %v3323 = vunpack.c.l.b16 %v2670
    %v3324 = vunpack.c.h.b16 %v2670
    %v3325 = vunpack.c.l.b16 %v2671
    %v3326 = vunpack.c.h.b16 %v2671
    %v3327 = vunpack.c.l.b16 %v2672
    %v3328 = vunpack.c.h.b16 %v2672
    %v3329 = vunpack.c.l.b16 %v2673
    %v3330 = vunpack.c.h.b16 %v2673
    %v3331 = vunpack.c.l.b16 %v2674
    %v3332 = vunpack.c.h.b16 %v2674
    %v3333 = vunpack.c.l.b16 %v2675
    %v3334 = vunpack.c.h.b16 %v2675
    %v3335 = vunpack.c.l.b16 %v2676
    %v3336 = vunpack.c.h.b16 %v2676
    %v3337 = vunpack.c.l.b16 %v2677
    %v3338 = vunpack.c.h.b16 %v2677
    %v3339 = vunpack.c.l.b16 %v2678
    %v3340 = vunpack.c.h.b16 %v2678
    %v3341 = vunpack.c.l.b16 %v2679
    %v3342 = vunpack.c.h.b16 %v2679
    %v3343 = vunpack.c.l.b16 %v2680
    %v3344 = vunpack.c.h.b16 %v2680
    %v3345 = vunpack.c.l.b16 %v2681
    %v3346 = vunpack.c.h.b16 %v2681
    %v3347 = vunpack.c.l.b16 %v2682
    %v3348 = vunpack.c.h.b16 %v2682
    %v3349 = vunpack.c.l.b16 %v2683
    %v3350 = vunpack.c.h.b16 %v2683
    %v3351 = vunpack.c.l.b16 %v2684
    %v3352 = vunpack.c.h.b16 %v2684
    %v3353 = vunpack.c.l.b16 %v2685
    %v3354 = vunpack.c.h.b16 %v2685
    %v3355 = vunpack.c.l.b16 %v2686
    %v3356 = vunpack.c.h.b16 %v2686
    %v3357 = vunpack.c.l.b16 %v2687
    %v3358 = vunpack.c.h.b16 %v2687
    %v3359 = vunpack.c.l.b16 %v2688
    %v3360 = vunpack.c.h.b16 %v2688
    %v3361 = vunpack.c.l.b16 %v2689
    %v3362 = vunpack.c.h.b16 %v2689
    %v3363 = vunpack.c.l.b16 %v2690
    %v3364 = vunpack.c.h.b16 %v2690
    %v3365 = vunpack.c.l.b16 %v2691
    %v3366 = vunpack.c.h.b16 %v2691
    %v3367 = vunpack.c.l.b16 %v2692
    %v3368 = vunpack.c.h.b16 %v2692
    %v3369 = vunpack.c.l.b16 %v2693
    %v3370 = vunpack.c.h.b16 %v2693
    %v3371 = vunpack.c.l.b16 %v2694
    %v3372 = vunpack.c.h.b16 %v2694
    %v3373 = vunpack.c.l.b16 %v2695
    %v3374 = vunpack.c.h.b16 %v2695
    %v3375 = vunpack.c.l.b16 %v2696
    %v3376 = vunpack.c.h.b16 %v2696
    %v3377 = vunpack.c.l.b16 %v2697
    %v3378 = vunpack.c.h.b16 %v2697
    %v3379 = vunpack.c.l.b16 %v2698
    %v3380 = vunpack.c.h.b16 %v2698
    %v3381 = vunpack.c.l.b16 %v2699
    %v3382 = vunpack.c.h.b16 %v2699
    %v3383 = vunpack.c.l.b16 %v2700
    %v3384 = vunpack.c.h.b16 %v2700
    %v3385 = vunpack.c.l.b16 %v2701
    %v3386 = vunpack.c.h.b16 %v2701
    %v3387 = vunpack.c.l.b16 %v2702
    %v3388 = vunpack.c.h.b16 %v2702
    %v3389 = vunpack.c.l.b16 %v2703
    %v3390 = vunpack.c.h.b16 %v2703
    %v3391 = vunpack.c.l.b16 %v2704
    %v3392 = vunpack.c.h.b16 %v2704
    %v3393 = vunpack.c.l.b16 %v2705
    %v3394 = vunpack.c.h.b16 %v2705
    %v3395 = vunpack.c.l.b16 %v2706
    %v3396 = vunpack.c.h.b16 %v2706
    %v3397 = vunpack.c.l.b16 %v2707
    %v3398 = vunpack.c.h.b16 %v2707
    %v3399 = vunpack.c.l.b16 %v2708
    %v3400 = vunpack.c.h.b16 %v2708
    %v3401 = vunpack.c.l.b16 %v2709
    %v3402 = vunpack.c.h.b16 %v2709
    %v3403 = vunpack.c.l.b16 %v2710
    %v3404 = vunpack.c.h.b16 %v2710
    %v3405 = vunpack.c.l.b16 %v2711
    %v3406 = vunpack.c.h.b16 %v2711
    %v3407 = vunpack.c.l.b16 %v2712
    %v3408 = vunpack.c.h.b16 %v2712
    %v3409 = vunpack.c.l.b16 %v2713
    %v3410 = vunpack.c.h.b16 %v2713
    %v3411 = vunpack.c.l.b16 %v2714
    %v3412 = vunpack.c.h.b16 %v2714
    %v3413 = vunpack.c.l.b16 %v2715
    %v3414 = vunpack.c.h.b16 %v2715
    %v3415 = vunpack.c.l.b16 %v2716
    %v3416 = vunpack.c.h.b16 %v2716
    %v3417 = vunpack.c.l.b16 %v2717
    %v3418 = vunpack.c.h.b16 %v2717
    %v3419 = vunpack.c.l.b16 %v2718
    %v3420 = vunpack.c.h.b16 %v2718
    %v3421 = vunpack.c.l.b16 %v2719
    %v3422 = vunpack.c.h.b16 %v2719
    %v3423 = vunpack.c.l.b16 %v2720
    %v3424 = vunpack.c.h.b16 %v2720
    %v3425 = vunpack.c.l.b16 %v2721
    %v3426 = vunpack.c.h.b16 %v2721
    %v3427 = vunpack.c.l.b16 %v2722
    %v3428 = vunpack.c.h.b16 %v2722
    %v3429 = vunpack.c.l.b16 %v2723
    %v3430 = vunpack.c.h.b16 %v2723
    %v3431 = vunpack.c.l.b16 %v2724
    %v3432 = vunpack.c.h.b16 %v2724
    %v3433 = vunpack.c.l.b16 %v2725
    %v3434 = vunpack.c.h.b16 %v2725
    %v3435 = vunpack.c.l.b16 %v2726
    %v3436 = vunpack.c.h.b16 %v2726
    %v3437 = vunpack.c.l.b16 %v2727
    %v3438 = vunpack.c.h.b16 %v2727
    %v3439 = vunpack.c.l.b16 %v2728
    %v3440 = vunpack.c.h.b16 %v2728
    %v3441 = vunpack.c.l.b16 %v2729
    %v3442 = vunpack.c.h.b16 %v2729
    %v3443 = vunpack.c.l.b16 %v2730
    %v3444 = vunpack.c.h.b16 %v2730
    %v3445 = vunpack.c.l.b16 %v2731
    %v3446 = vunpack.c.h.b16 %v2731
    %v3447 = vunpack.c.l.b16 %v2732
    %v3448 = vunpack.c.h.b16 %v2732
    %v3449 = vunpack.c.l.b16 %v2733
    %v3450 = vunpack.c.h.b16 %v2733
    %v3451 = vunpack.c.l.b16 %v2734
    %v3452 = vunpack.c.h.b16 %v2734
    %v3453 = vunpack.c.l.b16 %v2735
    %v3454 = vunpack.c.h.b16 %v2735
    %v3455 = vunpack.c.l.b16 %v2736
    %v3456 = vunpack.c.h.b16 %v2736
    %v3457 = vunpack.c.l.b16 %v2737
    %v3458 = vunpack.c.h.b16 %v2737
    %v3459 = vunpack.c.l.b16 %v2738
    %v3460 = vunpack.c.h.b16 %v2738
    %v3461 = vunpack.c.l.b16 %v2739
    %v3462 = vunpack.c.h.b16 %v2739
    %v3463 = vunpack.c.l.b16 %v2740
    %v3464 = vunpack.c.h.b16 %v2740
    %v3465 = vunpack.c.l.b16 %v2741
    %v3466 = vunpack.c.h.b16 %v2741
    %v3467 = vunpack.c.l.b16 %v2742
    %v3468 = vunpack.c.h.b16 %v2742
    %v3469 = vunpack.c.l.b16 %v2743
    %v3470 = vunpack.c.h.b16 %v2743
    %v3471 = vunpack.c.l.b16 %v2744
    %v3472 = vunpack.c.h.b16 %v2744
    %v3473 = vunpack.c.l.b16 %v2745
    %v3474 = vunpack.c.h.b16 %v2745
    %v3475 = vunpack.c.l.b16 %v2746
    %v3476 = vunpack.c.h.b16 %v2746
    %v3477 = vunpack.c.l.b16 %v2747
    %v3478 = vunpack.c.h.b16 %v2747
    %v3479 = vunpack.c.l.b16 %v2748
    %v3480 = vunpack.c.h.b16 %v2748
    %v3481 = vunpack.c.l.b16 %v2749
    %v3482 = vunpack.c.h.b16 %v2749
    %v3483 = vunpack.c.l.b16 %v2750
    %v3484 = vunpack.c.h.b16 %v2750
    %v3485 = vunpack.c.l.b16 %v2751
    %v3486 = vunpack.c.h.b16 %v2751
    %v3487 = vunpack.c.l.b16 %v2752
    %v3488 = vunpack.c.h.b16 %v2752
    %v3489 = vunpack.c.l.b16 %v2753
    %v3490 = vunpack.c.h.b16 %v2753
    %v3491 = vunpack.c.l.b16 %v2754
    %v3492 = vunpack.c.h.b16 %v2754
    %v3493 = vunpack.c.l.b16 %v2755
    %v3494 = vunpack.c.h.b16 %v2755
    %v3495 = vunpack.c.l.b16 %v2756
    %v3496 = vunpack.c.h.b16 %v2756
    %v3497 = vunpack.c.l.b16 %v2757
    %v3498 = vunpack.c.h.b16 %v2757
    %v3499 = vunpack.c.l.b16 %v2758
    %v3500 = vunpack.c.h.b16 %v2758
    %v3501 = vunpack.c.l.b16 %v2759
    %v3502 = vunpack.c.h.b16 %v2759
    %v3503 = vunpack.c.l.b16 %v2760
    %v3504 = vunpack.c.h.b16 %v2760
    %v3505 = vunpack.c.l.b16 %v2761
    %v3506 = vunpack.c.h.b16 %v2761
    %v3507 = vunpack.c.l.b16 %v2762
    %v3508 = vunpack.c.h.b16 %v2762
    %v3509 = vunpack.c.l.b16 %v2763
    %v3510 = vunpack.c.h.b16 %v2763
    %v3511 = vunpack.c.l.b16 %v2764
    %v3512 = vunpack.c.h.b16 %v2764
    %v3513 = vunpack.c.l.b16 %v2765
    %v3514 = vunpack.c.h.b16 %v2765
    %v3515 = vunpack.c.l.b16 %v2766
    %v3516 = vunpack.c.h.b16 %v2766
    %v3517 = vunpack.c.l.b16 %v2767
    %v3518 = vunpack.c.h.b16 %v2767
    %v3519 = vunpack.c.l.b16 %v2768
    %v3520 = vunpack.c.h.b16 %v2768
    %v3521 = vunpack.c.l.b16 %v2769
    %v3522 = vunpack.c.h.b16 %v2769
    %v3523 = vunpack.c.l.b16 %v2770
    %v3524 = vunpack.c.h.b16 %v2770
    %v3525 = vunpack.c.l.b16 %v2771
    %v3526 = vunpack.c.h.b16 %v2771
    %v3527 = vunpack.c.l.b16 %v2772
    %v3528 = vunpack.c.h.b16 %v2772
    %v3529 = vunpack.c.l.b16 %v2773
    %v3530 = vunpack.c.h.b16 %v2773
    %v3531 = vunpack.c.l.b16 %v2774
    %v3532 = vunpack.c.h.b16 %v2774
    %v3533 = vunpack.c.l.b16 %v2775
    %v3534 = vunpack.c.h.b16 %v2775
    %v3535 = vunpack.c.l.b16 %v2776
    %v3536 = vunpack.c.h.b16 %v2776
    %v3537 = vunpack.c.l.b16 %v2777
    %v3538 = vunpack.c.h.b16 %v2777
    %v3539 = vunpack.c.l.b16 %v2778
    %v3540 = vunpack.c.h.b16 %v2778
    %v3541 = vunpack.c.l.b16 %v2779
    %v3542 = vunpack.c.h.b16 %v2779
    %v3543 = vunpack.c.l.b16 %v2780
    %v3544 = vunpack.c.h.b16 %v2780
    %v3545 = vunpack.c.l.b16 %v2781
    %v3546 = vunpack.c.h.b16 %v2781
    %v3547 = vunpack.c.l.b16 %v2782
    %v3548 = vunpack.c.h.b16 %v2782
    %v3549 = vunpack.c.l.b16 %v2783
    %v3550 = vunpack.c.h.b16 %v2783
    %v3551 = vunpack.c.l.b16 %v2784
    %v3552 = vunpack.c.h.b16 %v2784
    %v3553 = vunpack.c.l.b16 %v2785
    %v3554 = vunpack.c.h.b16 %v2785
    %v3555 = vunpack.c.l.b16 %v2786
    %v3556 = vunpack.c.h.b16 %v2786
    %v3557 = vunpack.c.l.b16 %v2787
    %v3558 = vunpack.c.h.b16 %v2787
    %v3559 = vunpack.c.l.b16 %v2788
    %v3560 = vunpack.c.h.b16 %v2788
    %v3561 = vunpack.c.l.b16 %v2789
    %v3562 = vunpack.c.h.b16 %v2789
    %v3563 = vunpack.c.l.b16 %v2790
    %v3564 = vunpack.c.h.b16 %v2790
    %v3565 = vunpack.c.l.b16 %v2791
    %v3566 = vunpack.c.h.b16 %v2791
    %v3567 = vunpack.c.l.b16 %v2792
    %v3568 = vunpack.c.h.b16 %v2792
    %v3569 = vunpack.c.l.b16 %v2793
    %v3570 = vunpack.c.h.b16 %v2793
    %v3571 = vunpack.c.l.b16 %v2794
    %v3572 = vunpack.c.h.b16 %v2794
    %v3573 = vunpack.c.l.b16 %v2795
    %v3574 = vunpack.c.h.b16 %v2795
    %v3575 = vunpack.c.l.b16 %v2796
    %v3576 = vunpack.c.h.b16 %v2796
    %v3577 = vunpack.c.l.b16 %v2797
    %v3578 = vunpack.c.h.b16 %v2797
    %v3579 = vunpack.c.l.b16 %v2798
    %v3580 = vunpack.c.h.b16 %v2798
    %v3581 = vunpack.c.l.b16 %v2799
    %v3582 = vunpack.c.h.b16 %v2799
    %v3583 = vunpack.c.l.b16 %v2800
    %v3584 = vunpack.c.h.b16 %v2800
    %v3585 = vunpack.c.l.b16 %v2801
    %v3586 = vunpack.c.h.b16 %v2801
    %v3587 = vunpack.c.l.b16 %v2802
    %v3588 = vunpack.c.h.b16 %v2802
    %v3589 = vunpack.c.l.b16 %v2803
    %v3590 = vunpack.c.h.b16 %v2803
    %v3591 = vunpack.c.l.b16 %v2804
    %v3592 = vunpack.c.h.b16 %v2804
    %v3593 = vunpack.c.l.b16 %v2805
    %v3594 = vunpack.c.h.b16 %v2805
    %v3595 = vunpack.c.l.b16 %v2806
    %v3596 = vunpack.c.h.b16 %v2806
    %v3597 = vpack.c.b16 %v3089, %v3085
    %v3598 = vpack.c.b16 %v3090, %v3086
    %v3599 = vpack.c.b16 %v3091, %v3087
    %v3600 = vpack.c.b16 %v3092, %v3088
    %v3601 = vpack.c.b16 %v3097, %v3093
    %v3602 = vpack.c.b16 %v3098, %v3094
    %v3603 = vpack.c.b16 %v3099, %v3095
    %v3604 = vpack.c.b16 %v3100, %v3096
    %v3605 = vpack.c.b16 %v3105, %v3101
    %v3606 = vpack.c.b16 %v3106, %v3102
    %v3607 = vpack.c.b16 %v3107, %v3103
    %v3608 = vpack.c.b16 %v3108, %v3104
    %v3609 = vpack.c.b16 %v3113, %v3109
    %v3610 = vpack.c.b16 %v3114, %v3110
    %v3611 = vpack.c.b16 %v3115, %v3111
    %v3612 = vpack.c.b16 %v3116, %v3112
    %v3613 = vpack.c.b16 %v3121, %v3117
    %v3614 = vpack.c.b16 %v3122, %v3118
    %v3615 = vpack.c.b16 %v3123, %v3119
    %v3616 = vpack.c.b16 %v3124, %v3120
    %v3617 = vpack.c.b16 %v3129, %v3125
    %v3618 = vpack.c.b16 %v3130, %v3126
    %v3619 = vpack.c.b16 %v3131, %v3127
    %v3620 = vpack.c.b16 %v3132, %v3128
    %v3621 = vpack.c.b16 %v3137, %v3133
    %v3622 = vpack.c.b16 %v3138, %v3134
    %v3623 = vpack.c.b16 %v3139, %v3135
    %v3624 = vpack.c.b16 %v3140, %v3136
    %v3625 = vpack.c.b16 %v3145, %v3141
    %v3626 = vpack.c.b16 %v3146, %v3142
    %v3627 = vpack.c.b16 %v3147, %v3143
    %v3628 = vpack.c.b16 %v3148, %v3144
    %v3629 = vpack.c.b16 %v3153, %v3149
    %v3630 = vpack.c.b16 %v3154, %v3150
    %v3631 = vpack.c.b16 %v3155, %v3151
    %v3632 = vpack.c.b16 %v3156, %v3152
    %v3633 = vpack.c.b16 %v3161, %v3157
    %v3634 = vpack.c.b16 %v3162, %v3158
    %v3635 = vpack.c.b16 %v3163, %v3159
    %v3636 = vpack.c.b16 %v3164, %v3160
    %v3637 = vpack.c.b16 %v3169, %v3165
    %v3638 = vpack.c.b16 %v3170, %v3166
    %v3639 = vpack.c.b16 %v3171, %v3167
    %v3640 = vpack.c.b16 %v3172, %v3168
    %v3641 = vpack.c.b16 %v3177, %v3173
    %v3642 = vpack.c.b16 %v3178, %v3174
    %v3643 = vpack.c.b16 %v3179, %v3175
    %v3644 = vpack.c.b16 %v3180, %v3176
    %v3645 = vpack.c.b16 %v3185, %v3181
    %v3646 = vpack.c.b16 %v3186, %v3182
    %v3647 = vpack.c.b16 %v3187, %v3183
    %v3648 = vpack.c.b16 %v3188, %v3184
    %v3649 = vpack.c.b16 %v3193, %v3189
    %v3650 = vpack.c.b16 %v3194, %v3190
    %v3651 = vpack.c.b16 %v3195, %v3191
    %v3652 = vpack.c.b16 %v3196, %v3192
    %v3653 = vpack.c.b16 %v3201, %v3197
    %v3654 = vpack.c.b16 %v3202, %v3198
    %v3655 = vpack.c.b16 %v3203, %v3199
    %v3656 = vpack.c.b16 %v3204, %v3200
    %v3657 = vpack.c.b16 %v3209, %v3205
    %v3658 = vpack.c.b16 %v3210, %v3206
    %v3659 = vpack.c.b16 %v3211, %v3207
    %v3660 = vpack.c.b16 %v3212, %v3208
    %v3661 = vpack.c.b16 %v3217, %v3213
    %v3662 = vpack.c.b16 %v3218, %v3214
    %v3663 = vpack.c.b16 %v3219, %v3215
    %v3664 = vpack.c.b16 %v3220, %v3216
    %v3665 = vpack.c.b16 %v3225, %v3221
    %v3666 = vpack.c.b16 %v3226, %v3222
    %v3667 = vpack.c.b16 %v3227, %v3223
    %v3668 = vpack.c.b16 %v3228, %v3224
    %v3669 = vpack.c.b16 %v3233, %v3229
    %v3670 = vpack.c.b16 %v3234, %v3230
    %v3671 = vpack.c.b16 %v3235, %v3231
    %v3672 = vpack.c.b16 %v3236, %v3232
    %v3673 = vpack.c.b16 %v3241, %v3237
    %v3674 = vpack.c.b16 %v3242, %v3238
    %v3675 = vpack.c.b16 %v3243, %v3239
    %v3676 = vpack.c.b16 %v3244, %v3240
    %v3677 = vpack.c.b16 %v3249, %v3245
    %v3678 = vpack.c.b16 %v3250, %v3246
    %v3679 = vpack.c.b16 %v3251, %v3247
    %v3680 = vpack.c.b16 %v3252, %v3248
    %v3681 = vpack.c.b16 %v3257, %v3253
    %v3682 = vpack.c.b16 %v3258, %v3254
    %v3683 = vpack.c.b16 %v3259, %v3255
    %v3684 = vpack.c.b16 %v3260, %v3256
    %v3685 = vpack.c.b16 %v3265, %v3261
    %v3686 = vpack.c.b16 %v3266, %v3262
    %v3687 = vpack.c.b16 %v3267, %v3263
    %v3688 = vpack.c.b16 %v3268, %v3264
    %v3689 = vpack.c.b16 %v3273, %v3269
    %v3690 = vpack.c.b16 %v3274, %v3270
    %v3691 = vpack.c.b16 %v3275, %v3271
    %v3692 = vpack.c.b16 %v3276, %v3272
    %v3693 = vpack.c.b16 %v3281, %v3277
    %v3694 = vpack.c.b16 %v3282, %v3278
    %v3695 = vpack.c.b16 %v3283, %v3279
    %v3696 = vpack.c.b16 %v3284, %v3280
    %v3697 = vpack.c.b16 %v3289, %v3285
    %v3698 = vpack.c.b16 %v3290, %v3286
    %v3699 = vpack.c.b16 %v3291, %v3287
    %v3700 = vpack.c.b16 %v3292, %v3288
    %v3701 = vpack.c.b16 %v3297, %v3293
    %v3702 = vpack.c.b16 %v3298, %v3294
    %v3703 = vpack.c.b16 %v3299, %v3295
    %v3704 = vpack.c.b16 %v3300, %v3296
    %v3705 = vpack.c.b16 %v3305, %v3301
    %v3706 = vpack.c.b16 %v3306, %v3302
    %v3707 = vpack.c.b16 %v3307, %v3303
    %v3708 = vpack.c.b16 %v3308, %v3304
    %v3709 = vpack.c.b16 %v3313, %v3309
    %v3710 = vpack.c.b16 %v3314, %v3310
    %v3711 = vpack.c.b16 %v3315, %v3311
    %v3712 = vpack.c.b16 %v3316, %v3312
    %v3713 = vpack.c.b16 %v3321, %v3317
    %v3714 = vpack.c.b16 %v3322, %v3318
    %v3715 = vpack.c.b16 %v3323, %v3319
    %v3716 = vpack.c.b16 %v3324, %v3320
    %v3717 = vpack.c.b16 %v3329, %v3325
    %v3718 = vpack.c.b16 %v3330, %v3326
    %v3719 = vpack.c.b16 %v3331, %v3327
    %v3720 = vpack.c.b16 %v3332, %v3328
    %v3721 = vpack.c.b16 %v3337, %v3333
    %v3722 = vpack.c.b16 %v3338, %v3334
    %v3723 = vpack.c.b16 %v3339, %v3335
    %v3724 = vpack.c.b16 %v3340, %v3336
    %v3725 = vpack.c.b16 %v3345, %v3341
    %v3726 = vpack.c.b16 %v3346, %v3342
    %v3727 = vpack.c.b16 %v3347, %v3343
    %v3728 = vpack.c.b16 %v3348, %v3344
    %v3729 = vpack.c.b16 %v3353, %v3349
    %v3730 = vpack.c.b16 %v3354, %v3350
    %v3731 = vpack.c.b16 %v3355, %v3351
    %v3732 = vpack.c.b16 %v3356, %v3352
    %v3733 = vpack.c.b16 %v3361, %v3357
    %v3734 = vpack.c.b16 %v3362, %v3358
    %v3735 = vpack.c.b16 %v3363, %v3359
    %v3736 = vpack.c.b16 %v3364, %v3360
    %v3737 = vpack.c.b16 %v3369, %v3365
    %v3738 = vpack.c.b16 %v3370, %v3366
    %v3739 = vpack.c.b16 %v3371, %v3367
    %v3740 = vpack.c.b16 %v3372, %v3368
    %v3741 = vpack.c.b16 %v3377, %v3373
    %v3742 = vpack.c.b16 %v3378, %v3374
    %v3743 = vpack.c.b16 %v3379, %v3375
    %v3744 = vpack.c.b16 %v3380, %v3376
    %v3745 = vpack.c.b16 %v3385, %v3381
    %v3746 = vpack.c.b16 %v3386, %v3382
    %v3747 = vpack.c.b16 %v3387, %v3383
    %v3748 = vpack.c.b16 %v3388, %v3384
    %v3749 = vpack.c.b16 %v3393, %v3389
    %v3750 = vpack.c.b16 %v3394, %v3390
    %v3751 = vpack.c.b16 %v3395, %v3391
    %v3752 = vpack.c.b16 %v3396, %v3392
    %v3753 = vpack.c.b16 %v3401, %v3397
    %v3754 = vpack.c.b16 %v3402, %v3398
    %v3755 = vpack.c.b16 %v3403, %v3399
    %v3756 = vpack.c.b16 %v3404, %v3400
    %v3757 = vpack.c.b16 %v3409, %v3405
    %v3758 = vpack.c.b16 %v3410, %v3406
    %v3759 = vpack.c.b16 %v3411, %v3407
    %v3760 = vpack.c.b16 %v3412, %v3408
    %v3761 = vpack.c.b16 %v3417, %v3413
    %v3762 = vpack.c.b16 %v3418, %v3414
    %v3763 = vpack.c.b16 %v3419, %v3415
    %v3764 = vpack.c.b16 %v3420, %v3416
    %v3765 = vpack.c.b16 %v3425, %v3421
    %v3766 = vpack.c.b16 %v3426, %v3422
    %v3767 = vpack.c.b16 %v3427, %v3423
    %v3768 = vpack.c.b16 %v3428, %v3424
    %v3769 = vpack.c.b16 %v3433, %v3429
    %v3770 = vpack.c.b16 %v3434, %v3430
    %v3771 = vpack.c.b16 %v3435, %v3431
    %v3772 = vpack.c.b16 %v3436, %v3432
    %v3773 = vpack.c.b16 %v3441, %v3437
    %v3774 = vpack.c.b16 %v3442, %v3438
    %v3775 = vpack.c.b16 %v3443, %v3439
    %v3776 = vpack.c.b16 %v3444, %v3440
    %v3777 = vpack.c.b16 %v3449, %v3445
    %v3778 = vpack.c.b16 %v3450, %v3446
    %v3779 = vpack.c.b16 %v3451, %v3447
    %v3780 = vpack.c.b16 %v3452, %v3448
    %v3781 = vpack.c.b16 %v3457, %v3453
    %v3782 = vpack.c.b16 %v3458, %v3454
    %v3783 = vpack.c.b16 %v3459, %v3455
    %v3784 = vpack.c.b16 %v3460, %v3456
    %v3785 = vpack.c.b16 %v3465, %v3461
    %v3786 = vpack.c.b16 %v3466, %v3462
    %v3787 = vpack.c.b16 %v3467, %v3463
    %v3788 = vpack.c.b16 %v3468, %v3464
    %v3789 = vpack.c.b16 %v3473, %v3469
    %v3790 = vpack.c.b16 %v3474, %v3470
    %v3791 = vpack.c.b16 %v3475, %v3471
    %v3792 = vpack.c.b16 %v3476, %v3472
    %v3793 = vpack.c.b16 %v3481, %v3477
    %v3794 = vpack.c.b16 %v3482, %v3478
    %v3795 = vpack.c.b16 %v3483, %v3479
    %v3796 = vpack.c.b16 %v3484, %v3480
    %v3797 = vpack.c.b16 %v3489, %v3485
    %v3798 = vpack.c.b16 %v3490, %v3486
    %v3799 = vpack.c.b16 %v3491, %v3487
    %v3800 = vpack.c.b16 %v3492, %v3488
    %v3801 = vpack.c.b16 %v3497, %v3493
    %v3802 = vpack.c.b16 %v3498, %v3494
    %v3803 = vpack.c.b16 %v3499, %v3495
    %v3804 = vpack.c.b16 %v3500, %v3496
    %v3805 = vpack.c.b16 %v3505, %v3501
    %v3806 = vpack.c.b16 %v3506, %v3502
    %v3807 = vpack.c.b16 %v3507, %v3503
    %v3808 = vpack.c.b16 %v3508, %v3504
    %v3809 = vpack.c.b16 %v3513, %v3509
    %v3810 = vpack.c.b16 %v3514, %v3510
    %v3811 = vpack.c.b16 %v3515, %v3511
    %v3812 = vpack.c.b16 %v3516, %v3512
    %v3813 = vpack.c.b16 %v3521, %v3517
    %v3814 = vpack.c.b16 %v3522, %v3518
    %v3815 = vpack.c.b16 %v3523, %v3519
    %v3816 = vpack.c.b16 %v3524, %v3520
    %v3817 = vpack.c.b16 %v3529, %v3525
    %v3818 = vpack.c.b16 %v3530, %v3526
    %v3819 = vpack.c.b16 %v3531, %v3527
    %v3820 = vpack.c.b16 %v3532, %v3528
    %v3821 = vpack.c.b16 %v3537, %v3533
    %v3822 = vpack.c.b16 %v3538, %v3534
    %v3823 = vpack.c.b16 %v3539, %v3535
    %v3824 = vpack.c.b16 %v3540, %v3536
    %v3825 = vpack.c.b16 %v3545, %v3541
    %v3826 = vpack.c.b16 %v3546, %v3542
    %v3827 = vpack.c.b16 %v3547, %v3543
    %v3828 = vpack.c.b16 %v3548, %v3544
    %v3829 = vpack.c.b16 %v3553, %v3549
    %v3830 = vpack.c.b16 %v3554, %v3550
    %v3831 = vpack.c.b16 %v3555, %v3551
    %v3832 = vpack.c.b16 %v3556, %v3552
    %v3833 = vpack.c.b16 %v3561, %v3557
    %v3834 = vpack.c.b16 %v3562, %v3558
    %v3835 = vpack.c.b16 %v3563, %v3559
    %v3836 = vpack.c.b16 %v3564, %v3560
    %v3837 = vpack.c.b16 %v3569, %v3565
    %v3838 = vpack.c.b16 %v3570, %v3566
    %v3839 = vpack.c.b16 %v3571, %v3567
    %v3840 = vpack.c.b16 %v3572, %v3568
    %v3841 = vpack.c.b16 %v3577, %v3573
    %v3842 = vpack.c.b16 %v3578, %v3574
    %v3843 = vpack.c.b16 %v3579, %v3575
    %v3844 = vpack.c.b16 %v3580, %v3576
    %v3845 = vpack.c.b16 %v3585, %v3581
    %v3846 = vpack.c.b16 %v3586, %v3582
    %v3847 = vpack.c.b16 %v3587, %v3583
    %v3848 = vpack.c.b16 %v3588, %v3584
    %v3849 = vpack.c.b16 %v3593, %v3589
    %v3850 = vpack.c.b16 %v3594, %v3590
    %v3851 = vpack.c.b16 %v3595, %v3591
    %v3852 = vpack.c.b16 %v3596, %v3592
    %4109 = vmatprep.subr.bf16.mxu0 %v3626
    %4110 = vmatpush1.bf16.msra.mxu0 %v3625
    %4111 = vmatprep.subr.bf16.mxu0 %v3622
    %4112 = vmatpush1.bf16.msra.mxu0 %v3621
    %4113 = vmatprep.subr.bf16.mxu0 %v3618
    %4114 = vmatpush1.bf16.msra.mxu0 %v3617
    %4115 = vmatprep.subr.bf16.mxu0 %v3614
    %4116 = vmatpush1.bf16.msra.mxu0 %v3613
    %4117 = vmatprep.subr.bf16.mxu0 %v3610
    %4118 = vmatpush1.bf16.msra.mxu0 %v3609
    %4119 = vmatprep.subr.bf16.mxu0 %v3606
    %4120 = vmatpush1.bf16.msra.mxu0 %v3605
    %4121 = vmatprep.subr.bf16.mxu0 %v3602
    %4122 = vmatpush1.bf16.msra.mxu0 %v3601
    %4123 = vmatprep.subr.bf16.mxu0 %v3598
    %4124 = vmatpush1.bf16.msra.mxu0 %v3597
    %4125 = vmatprep.subr.bf16.mxu0 %v3658
    %4126 = vmatpush2.bf16.msra.mxu0 %v3657
    %4127 = vmatprep.subr.bf16.mxu0 %v3654
    %4128 = vmatpush2.bf16.msra.mxu0 %v3653
    %4129 = vmatprep.subr.bf16.mxu0 %v3650
    %4130 = vmatpush2.bf16.msra.mxu0 %v3649
    %4131 = vmatprep.subr.bf16.mxu0 %v3646
    %4132 = vmatpush2.bf16.msra.mxu0 %v3645
    %4133 = vmatprep.subr.bf16.mxu0 %v3642
    %4134 = vmatpush2.bf16.msra.mxu0 %v3641
    %4135 = vmatprep.subr.bf16.mxu0 %v3638
    %4136 = vmatpush2.bf16.msra.mxu0 %v3637
    %4137 = vmatprep.subr.bf16.mxu0 %v3634
    %4138 = vmatpush2.bf16.msra.mxu0 %v3633
    %4139 = vmatprep.subr.bf16.mxu0 %v3630
    %4140 = vmatpush2.bf16.msra.mxu0 %v3629
    %4141 = vmatprep.mubr.bf16.mxu0 %v2544
    %4142 = vmatmul.mubr.bf16.gmra.mxu0 %v2543
    %v4143 = vpop.f32.mrf.mxu0
    %v4144 = vadd.f32 %v2812, %v4143
    %v4145 = vpop.f32.mrf.mxu0
    %v4146 = vadd.f32 %v2816, %v4145
    %v4147 = vpop.f32.mrf.mxu0
    %v4148 = vpop.f32.mrf.mxu0
    %4149 = vdwg.mxu0
    %4150 = vmatprep.subr.bf16.mxu0 %v3690
    %4151 = vmatpush1.bf16.msra.mxu0 %v3689
    %4152 = vmatprep.subr.bf16.mxu0 %v3686
    %4153 = vmatpush1.bf16.msra.mxu0 %v3685
    %4154 = vmatprep.subr.bf16.mxu0 %v3682
    %4155 = vmatpush1.bf16.msra.mxu0 %v3681
    %4156 = vmatprep.subr.bf16.mxu0 %v3678
    %4157 = vmatpush1.bf16.msra.mxu0 %v3677
    %4158 = vmatprep.subr.bf16.mxu0 %v3674
    %4159 = vmatpush1.bf16.msra.mxu0 %v3673
    %4160 = vmatprep.subr.bf16.mxu0 %v3670
    %4161 = vmatpush1.bf16.msra.mxu0 %v3669
    %4162 = vmatprep.subr.bf16.mxu0 %v3666
    %4163 = vmatpush1.bf16.msra.mxu0 %v3665
    %4164 = vmatprep.subr.bf16.mxu0 %v3662
    %4165 = vmatpush1.bf16.msra.mxu0 %v3661
    %4166 = vmatprep.subr.bf16.mxu0 %v3722
    %4167 = vmatpush2.bf16.msra.mxu0 %v3721
    %4168 = vmatprep.subr.bf16.mxu0 %v3718
    %4169 = vmatpush2.bf16.msra.mxu0 %v3717
    %4170 = vmatprep.subr.bf16.mxu0 %v3714
    %4171 = vmatpush2.bf16.msra.mxu0 %v3713
    %4172 = vmatprep.subr.bf16.mxu0 %v3710
    %4173 = vmatpush2.bf16.msra.mxu0 %v3709
    %4174 = vmatprep.subr.bf16.mxu0 %v3706
    %4175 = vmatpush2.bf16.msra.mxu0 %v3705
    %4176 = vmatprep.subr.bf16.mxu0 %v3702
    %4177 = vmatpush2.bf16.msra.mxu0 %v3701
    %4178 = vmatprep.subr.bf16.mxu0 %v3698
    %4179 = vmatpush2.bf16.msra.mxu0 %v3697
    %4180 = vmatprep.subr.bf16.mxu0 %v3694
    %4181 = vmatpush2.bf16.msra.mxu0 %v3693
    %4182 = vmatprep.mubr.bf16.mxu0 %v2546
    %4183 = vmatmul.mubr.bf16.gmra.mxu0 %v2545
    %v4184 = vpop.f32.mrf.mxu0
    %v4185 = vadd.f32 %v4144, %v4184
    %v4186 = vpop.f32.mrf.mxu0
    %v4187 = vadd.f32 %v4146, %v4186
    %v4188 = vpop.f32.mrf.mxu0
    %v4189 = vpop.f32.mrf.mxu0
    %4190 = vdwg.mxu0
    %4191 = vmatprep.subr.bf16.mxu0 %v3754
    %4192 = vmatpush1.bf16.msra.mxu0 %v3753
    %4193 = vmatprep.subr.bf16.mxu0 %v3750
    %4194 = vmatpush1.bf16.msra.mxu0 %v3749
    %4195 = vmatprep.subr.bf16.mxu0 %v3746
    %4196 = vmatpush1.bf16.msra.mxu0 %v3745
    %4197 = vmatprep.subr.bf16.mxu0 %v3742
    %4198 = vmatpush1.bf16.msra.mxu0 %v3741
    %4199 = vmatprep.subr.bf16.mxu0 %v3738
    %4200 = vmatpush1.bf16.msra.mxu0 %v3737
    %4201 = vmatprep.subr.bf16.mxu0 %v3734
    %4202 = vmatpush1.bf16.msra.mxu0 %v3733
    %4203 = vmatprep.subr.bf16.mxu0 %v3730
    %4204 = vmatpush1.bf16.msra.mxu0 %v3729
    %4205 = vmatprep.subr.bf16.mxu0 %v3726
    %4206 = vmatpush1.bf16.msra.mxu0 %v3725
    %4207 = vmatprep.subr.bf16.mxu0 %v3786
    %4208 = vmatpush2.bf16.msra.mxu0 %v3785
    %4209 = vmatprep.subr.bf16.mxu0 %v3782
    %4210 = vmatpush2.bf16.msra.mxu0 %v3781
    %4211 = vmatprep.subr.bf16.mxu0 %v3778
    %4212 = vmatpush2.bf16.msra.mxu0 %v3777
    %4213 = vmatprep.subr.bf16.mxu0 %v3774
    %4214 = vmatpush2.bf16.msra.mxu0 %v3773
    %4215 = vmatprep.subr.bf16.mxu0 %v3770
    %4216 = vmatpush2.bf16.msra.mxu0 %v3769
    %4217 = vmatprep.subr.bf16.mxu0 %v3766
    %4218 = vmatpush2.bf16.msra.mxu0 %v3765
    %4219 = vmatprep.subr.bf16.mxu0 %v3762
    %4220 = vmatpush2.bf16.msra.mxu0 %v3761
    %4221 = vmatprep.subr.bf16.mxu0 %v3758
    %4222 = vmatpush2.bf16.msra.mxu0 %v3757
    %4223 = vmatprep.mubr.bf16.mxu0 %v2548
    %4224 = vmatmul.mubr.bf16.gmra.mxu0 %v2547
    %v4225 = vpop.f32.mrf.mxu0
    %v4226 = vadd.f32 %v4185, %v4225
    %v4227 = vpop.f32.mrf.mxu0
    %v4228 = vadd.f32 %v4187, %v4227
    %v4229 = vpop.f32.mrf.mxu0
    %v4230 = vpop.f32.mrf.mxu0
    %4231 = vdwg.mxu0
    %4232 = vmatprep.subr.bf16.mxu0 %v3818
    %4233 = vmatpush1.bf16.msra.mxu0 %v3817
    %4234 = vmatprep.subr.bf16.mxu0 %v3814
    %4235 = vmatpush1.bf16.msra.mxu0 %v3813
    %4236 = vmatprep.subr.bf16.mxu0 %v3810
    %4237 = vmatpush1.bf16.msra.mxu0 %v3809
    %4238 = vmatprep.subr.bf16.mxu0 %v3806
    %4239 = vmatpush1.bf16.msra.mxu0 %v3805
    %4240 = vmatprep.subr.bf16.mxu0 %v3802
    %4241 = vmatpush1.bf16.msra.mxu0 %v3801
    %4242 = vmatprep.subr.bf16.mxu0 %v3798
    %4243 = vmatpush1.bf16.msra.mxu0 %v3797
    %4244 = vmatprep.subr.bf16.mxu0 %v3794
    %4245 = vmatpush1.bf16.msra.mxu0 %v3793
    %4246 = vmatprep.subr.bf16.mxu0 %v3790
    %4247 = vmatpush1.bf16.msra.mxu0 %v3789
    %4248 = vmatprep.subr.bf16.mxu0 %v3850
    %4249 = vmatpush2.bf16.msra.mxu0 %v3849
    %4250 = vmatprep.subr.bf16.mxu0 %v3846
    %4251 = vmatpush2.bf16.msra.mxu0 %v3845
    %4252 = vmatprep.subr.bf16.mxu0 %v3842
    %4253 = vmatpush2.bf16.msra.mxu0 %v3841
    %4254 = vmatprep.subr.bf16.mxu0 %v3838
    %4255 = vmatpush2.bf16.msra.mxu0 %v3837
    %4256 = vmatprep.subr.bf16.mxu0 %v3834
    %4257 = vmatpush2.bf16.msra.mxu0 %v3833
    %4258 = vmatprep.subr.bf16.mxu0 %v3830
    %4259 = vmatpush2.bf16.msra.mxu0 %v3829
    %4260 = vmatprep.subr.bf16.mxu0 %v3826
    %4261 = vmatpush2.bf16.msra.mxu0 %v3825
    %4262 = vmatprep.subr.bf16.mxu0 %v3822
    %4263 = vmatpush2.bf16.msra.mxu0 %v3821
    %4264 = vmatprep.mubr.bf16.mxu0 %v2550
    %4265 = vmatmul.mubr.bf16.gmra.mxu0 %v2549
    %v4266 = vpop.f32.mrf.mxu0
    %v4267 = vadd.f32 %v4226, %v4266
    %v4268 = vpop.f32.mrf.mxu0
    %v4269 = vadd.f32 %v4228, %v4268
    %v4270 = vpop.f32.mrf.mxu0
    %v4271 = vpop.f32.mrf.mxu0
    %4272 = vdwg.mxu0
    %4273 = vmatprep.subr.bf16.mxu0 %v3628
    %4274 = vmatpush1.bf16.msra.mxu0 %v3627
    %4275 = vmatprep.subr.bf16.mxu0 %v3624
    %4276 = vmatpush1.bf16.msra.mxu0 %v3623
    %4277 = vmatprep.subr.bf16.mxu0 %v3620
    %4278 = vmatpush1.bf16.msra.mxu0 %v3619
    %4279 = vmatprep.subr.bf16.mxu0 %v3616
    %4280 = vmatpush1.bf16.msra.mxu0 %v3615
    %4281 = vmatprep.subr.bf16.mxu0 %v3612
    %4282 = vmatpush1.bf16.msra.mxu0 %v3611
    %4283 = vmatprep.subr.bf16.mxu0 %v3608
    %4284 = vmatpush1.bf16.msra.mxu0 %v3607
    %4285 = vmatprep.subr.bf16.mxu0 %v3604
    %4286 = vmatpush1.bf16.msra.mxu0 %v3603
    %4287 = vmatprep.subr.bf16.mxu0 %v3600
    %4288 = vmatpush1.bf16.msra.mxu0 %v3599
    %4289 = vmatprep.subr.bf16.mxu0 %v3660
    %4290 = vmatpush2.bf16.msra.mxu0 %v3659
    %4291 = vmatprep.subr.bf16.mxu0 %v3656
    %4292 = vmatpush2.bf16.msra.mxu0 %v3655
    %4293 = vmatprep.subr.bf16.mxu0 %v3652
    %4294 = vmatpush2.bf16.msra.mxu0 %v3651
    %4295 = vmatprep.subr.bf16.mxu0 %v3648
    %4296 = vmatpush2.bf16.msra.mxu0 %v3647
    %4297 = vmatprep.subr.bf16.mxu0 %v3644
    %4298 = vmatpush2.bf16.msra.mxu0 %v3643
    %4299 = vmatprep.subr.bf16.mxu0 %v3640
    %4300 = vmatpush2.bf16.msra.mxu0 %v3639
    %4301 = vmatprep.subr.bf16.mxu0 %v3636
    %4302 = vmatpush2.bf16.msra.mxu0 %v3635
    %4303 = vmatprep.subr.bf16.mxu0 %v3632
    %4304 = vmatpush2.bf16.msra.mxu0 %v3631
    %4305 = vmatprep.mubr.bf16.mxu0 %v2544
    %4306 = vmatmul.mubr.bf16.gmra.mxu0 %v2543
    %v4307 = vpop.f32.mrf.mxu0
    %v4308 = vadd.f32 %v2820, %v4307
    %v4309 = vpop.f32.mrf.mxu0
    %v4310 = vadd.f32 %v2824, %v4309
    %v4311 = vpop.f32.mrf.mxu0
    %v4312 = vpop.f32.mrf.mxu0
    %4313 = vdwg.mxu0
    %4314 = vmatprep.subr.bf16.mxu0 %v3692
    %4315 = vmatpush1.bf16.msra.mxu0 %v3691
    %4316 = vmatprep.subr.bf16.mxu0 %v3688
    %4317 = vmatpush1.bf16.msra.mxu0 %v3687
    %4318 = vmatprep.subr.bf16.mxu0 %v3684
    %4319 = vmatpush1.bf16.msra.mxu0 %v3683
    %4320 = vmatprep.subr.bf16.mxu0 %v3680
    %4321 = vmatpush1.bf16.msra.mxu0 %v3679
    %4322 = vmatprep.subr.bf16.mxu0 %v3676
    %4323 = vmatpush1.bf16.msra.mxu0 %v3675
    %4324 = vmatprep.subr.bf16.mxu0 %v3672
    %4325 = vmatpush1.bf16.msra.mxu0 %v3671
    %4326 = vmatprep.subr.bf16.mxu0 %v3668
    %4327 = vmatpush1.bf16.msra.mxu0 %v3667
    %4328 = vmatprep.subr.bf16.mxu0 %v3664
    %4329 = vmatpush1.bf16.msra.mxu0 %v3663
    %4330 = vmatprep.subr.bf16.mxu0 %v3724
    %4331 = vmatpush2.bf16.msra.mxu0 %v3723
    %4332 = vmatprep.subr.bf16.mxu0 %v3720
    %4333 = vmatpush2.bf16.msra.mxu0 %v3719
    %4334 = vmatprep.subr.bf16.mxu0 %v3716
    %4335 = vmatpush2.bf16.msra.mxu0 %v3715
    %4336 = vmatprep.subr.bf16.mxu0 %v3712
    %4337 = vmatpush2.bf16.msra.mxu0 %v3711
    %4338 = vmatprep.subr.bf16.mxu0 %v3708
    %4339 = vmatpush2.bf16.msra.mxu0 %v3707
    %4340 = vmatprep.subr.bf16.mxu0 %v3704
    %4341 = vmatpush2.bf16.msra.mxu0 %v3703
    %4342 = vmatprep.subr.bf16.mxu0 %v3700
    %4343 = vmatpush2.bf16.msra.mxu0 %v3699
    %4344 = vmatprep.subr.bf16.mxu0 %v3696
    %4345 = vmatpush2.bf16.msra.mxu0 %v3695
    %4346 = vmatprep.mubr.bf16.mxu0 %v2546
    %4347 = vmatmul.mubr.bf16.gmra.mxu0 %v2545
    %v4348 = vpop.f32.mrf.mxu0
    %v4349 = vadd.f32 %v4308, %v4348
    %v4350 = vpop.f32.mrf.mxu0
    %v4351 = vadd.f32 %v4310, %v4350
    %v4352 = vpop.f32.mrf.mxu0
    %v4353 = vpop.f32.mrf.mxu0
    %4354 = vdwg.mxu0
    %4355 = vmatprep.subr.bf16.mxu0 %v3756
    %4356 = vmatpush1.bf16.msra.mxu0 %v3755
    %4357 = vmatprep.subr.bf16.mxu0 %v3752
    %4358 = vmatpush1.bf16.msra.mxu0 %v3751
    %4359 = vmatprep.subr.bf16.mxu0 %v3748
    %4360 = vmatpush1.bf16.msra.mxu0 %v3747
    %4361 = vmatprep.subr.bf16.mxu0 %v3744
    %4362 = vmatpush1.bf16.msra.mxu0 %v3743
    %4363 = vmatprep.subr.bf16.mxu0 %v3740
    %4364 = vmatpush1.bf16.msra.mxu0 %v3739
    %4365 = vmatprep.subr.bf16.mxu0 %v3736
    %4366 = vmatpush1.bf16.msra.mxu0 %v3735
    %4367 = vmatprep.subr.bf16.mxu0 %v3732
    %4368 = vmatpush1.bf16.msra.mxu0 %v3731
    %4369 = vmatprep.subr.bf16.mxu0 %v3728
    %4370 = vmatpush1.bf16.msra.mxu0 %v3727
    %4371 = vmatprep.subr.bf16.mxu0 %v3788
    %4372 = vmatpush2.bf16.msra.mxu0 %v3787
    %4373 = vmatprep.subr.bf16.mxu0 %v3784
    %4374 = vmatpush2.bf16.msra.mxu0 %v3783
    %4375 = vmatprep.subr.bf16.mxu0 %v3780
    %4376 = vmatpush2.bf16.msra.mxu0 %v3779
    %4377 = vmatprep.subr.bf16.mxu0 %v3776
    %4378 = vmatpush2.bf16.msra.mxu0 %v3775
    %4379 = vmatprep.subr.bf16.mxu0 %v3772
    %4380 = vmatpush2.bf16.msra.mxu0 %v3771
    %4381 = vmatprep.subr.bf16.mxu0 %v3768
    %4382 = vmatpush2.bf16.msra.mxu0 %v3767
    %4383 = vmatprep.subr.bf16.mxu0 %v3764
    %4384 = vmatpush2.bf16.msra.mxu0 %v3763
    %4385 = vmatprep.subr.bf16.mxu0 %v3760
    %4386 = vmatpush2.bf16.msra.mxu0 %v3759
    %4387 = vmatprep.mubr.bf16.mxu0 %v2548
    %4388 = vmatmul.mubr.bf16.gmra.mxu0 %v2547
    %v4389 = vpop.f32.mrf.mxu0
    %v4390 = vadd.f32 %v4349, %v4389
    %v4391 = vpop.f32.mrf.mxu0
    %v4392 = vadd.f32 %v4351, %v4391
    %v4393 = vpop.f32.mrf.mxu0
    %v4394 = vpop.f32.mrf.mxu0
    %4395 = vdwg.mxu0
    %4396 = vmatprep.subr.bf16.mxu0 %v3820
    %4397 = vmatpush1.bf16.msra.mxu0 %v3819
    %4398 = vmatprep.subr.bf16.mxu0 %v3816
    %4399 = vmatpush1.bf16.msra.mxu0 %v3815
    %4400 = vmatprep.subr.bf16.mxu0 %v3812
    %4401 = vmatpush1.bf16.msra.mxu0 %v3811
    %4402 = vmatprep.subr.bf16.mxu0 %v3808
    %4403 = vmatpush1.bf16.msra.mxu0 %v3807
    %4404 = vmatprep.subr.bf16.mxu0 %v3804
    %4405 = vmatpush1.bf16.msra.mxu0 %v3803
    %4406 = vmatprep.subr.bf16.mxu0 %v3800
    %4407 = vmatpush1.bf16.msra.mxu0 %v3799
    %4408 = vmatprep.subr.bf16.mxu0 %v3796
    %4409 = vmatpush1.bf16.msra.mxu0 %v3795
    %4410 = vmatprep.subr.bf16.mxu0 %v3792
    %4411 = vmatpush1.bf16.msra.mxu0 %v3791
    %4412 = vmatprep.subr.bf16.mxu0 %v3852
    %4413 = vmatpush2.bf16.msra.mxu0 %v3851
    %4414 = vmatprep.subr.bf16.mxu0 %v3848
    %4415 = vmatpush2.bf16.msra.mxu0 %v3847
    %4416 = vmatprep.subr.bf16.mxu0 %v3844
    %4417 = vmatpush2.bf16.msra.mxu0 %v3843
    %4418 = vmatprep.subr.bf16.mxu0 %v3840
    %4419 = vmatpush2.bf16.msra.mxu0 %v3839
    %4420 = vmatprep.subr.bf16.mxu0 %v3836
    %4421 = vmatpush2.bf16.msra.mxu0 %v3835
    %4422 = vmatprep.subr.bf16.mxu0 %v3832
    %4423 = vmatpush2.bf16.msra.mxu0 %v3831
    %4424 = vmatprep.subr.bf16.mxu0 %v3828
    %4425 = vmatpush2.bf16.msra.mxu0 %v3827
    %4426 = vmatprep.subr.bf16.mxu0 %v3824
    %4427 = vmatpush2.bf16.msra.mxu0 %v3823
    %4428 = vmatprep.mubr.bf16.mxu0 %v2550
    %4429 = vmatmul.mubr.bf16.gmra.mxu0 %v2549
    %v4430 = vpop.f32.mrf.mxu0
    %v4431 = vadd.f32 %v4390, %v4430
    %v4432 = vpop.f32.mrf.mxu0
    %v4433 = vadd.f32 %v4392, %v4432
    %v4434 = vpop.f32.mrf.mxu0
    %v4435 = vpop.f32.mrf.mxu0
    %4436 = vdwg.mxu0
    %v4437 = vtanh.pop %v4267
    %4439 = vset.pattern.permute.xlu0 0
    %4440 = vperm.xlu0 %4439, %v4437
    %v4441 = vpop.permute.xlu0 %4440
    %4443 = vset.pattern.permute.xlu0 1
    %4444 = vperm.xlu0 %4443, %v4437
    %v4445 = vpop.permute.xlu0 %4444
    %4447 = vset.pattern.permute.xlu0 2
    %4448 = vperm.xlu0 %4447, %v4437
    %v4449 = vpop.permute.xlu0 %4448
    %v4451 = vld [vmem:[%s7] sm:$0x7]
    %v4452 = vld [vmem:[#allocation12] sm:$0x7]
    %v4454 = vlaneseq
    %v4455 = vshrl.u32 %v4454, 7
    %v4456 = vsub.s32 0, %v4455
    %v4457 = vrot.slane %v4452, %v4456
    %v4458 = vlaneseq
    %v4459 = vshrl.u32 %v4458, 7
    %v4460 = vsub.s32 1, %v4459
    %v4461 = vrot.slane %v4452, %v4460
    %v4462 = vlaneseq
    %v4463 = vshrl.u32 %v4462, 7
    %v4464 = vsub.s32 2, %v4463
    %v4465 = vrot.slane %v4452, %v4464
    %v4469 = vadd.f32 %v4457, %v4269
    %v4470 = vadd.f32 %v4461, %v4431
    %v4471 = vadd.f32 %v4465, %v4433
    %v4472 = vxor.u32 %v4469, 2147483648
    %v4473 = vxor.u32 %v4470, 2147483648
    %v4474 = vxor.u32 %v4471, 2147483648
    %v4475 = vmul.f32 %v4472, 1.442695
    %v4476 = vpow.pop %v4475
    %v4477 = vmul.f32 %v4473, 1.442695
    %v4478 = vpow.pop %v4477
    %v4479 = vmul.f32 %v4474, 1.442695
    %v4480 = vpow.pop %v4479
    %v4481 = vadd.f32 %v4476, 1.0
    %v4482 = vadd.f32 %v4478, 1.0
    %v4483 = vadd.f32 %v4480, 1.0
    %v4484 = vrcp.pop %v4481
    %v4485 = vmul.f32 1.0, %v4484
    %v4486 = vrcp.pop %v4482
    %v4487 = vmul.f32 1.0, %v4486
    %v4488 = vrcp.pop %v4483
    %v4489 = vmul.f32 1.0, %v4488
    %v4491 = vlaneseq
    %v4492 = vshrl.u32 %v4491, 7
    %v4493 = vsub.s32 0, %v4492
    %v4494 = vrot.slane %v4451, %v4493
    %v4495 = vlaneseq
    %v4496 = vshrl.u32 %v4495, 7
    %v4497 = vsub.s32 1, %v4496
    %v4498 = vrot.slane %v4451, %v4497
    %v4499 = vlaneseq
    %v4500 = vshrl.u32 %v4499, 7
    %v4501 = vsub.s32 2, %v4500
    %v4502 = vrot.slane %v4451, %v4501
    %v4506 = vmul.f32 %v4485, %v4494
    %v4507 = vmul.f32 %v4487, %v4498
    %v4508 = vmul.f32 %v4489, %v4502
    %v4509 = vmul.f32 %v4494, %v4441
    %v4510 = vmul.f32 %v4498, %v4445
    %v4511 = vmul.f32 %v4502, %v4449
    %v4512 = vsub.f32 1.0, %v4509
    %v4513 = vsub.f32 1.0, %v4510
    %v4514 = vsub.f32 1.0, %v4511
    %v4515 = vmul.f32 %v4506, %v4512
    %v4516 = vmul.f32 %v4507, %v4513
    %v4517 = vmul.f32 %v4508, %v4514
    %v4518 = vadd.f32 %v4515, %v4441
    %v4519 = vadd.f32 %v4516, %v4445
    %v4520 = vadd.f32 %v4517, %v4449
    %v4521 = vmul.f32 %v4518, 0.5
    %v4522 = vmul.f32 %v4519, 0.5
    %v4523 = vmul.f32 %v4520, 0.5
    %v4527 = vcombine.low %v4521, %v4522
    %v4529 = vunpack.c.l.s4 1983009808
    %v4530 = vunpack.c.0.s8 %v4529
    %v4531 = vlaneseq
    %v4532 = vshrl.u32 %v4531, 7
    %v4533 = vsub.s32 %v4530, %v4532
    %v4534 = vrot.slane %v4527, %v4533
    %v4536 = vunpack.c.l.s4 1983009808
    %v4537 = vunpack.c.0.s8 %v4536
    %v4538 = vlaneseq
    %v4539 = vshrl.u32 %v4538, 7
    %v4540 = vsub.s32 %v4537, %v4539
    %v4541 = vrot.slane %v4523, %v4540
    %v4542 = vcombine.low %v4534, %v4541
    %4544 = vst [vmem:[%s9] sm:$0x3f] %v4542
    // Predicated region
    $region66: #{decoder_forward.1} parent=1 // pred_check
      _
    $region67: #{decoder_forward.1} parent=1 // pred_check_branch
      %4546 = sbr.rel (0) target = $region69
    $region68: #{decoder_forward.1} parent=1 // pred_region
      _
    $region69: #{decoder_forward.1} parent=1 // pred_fallthru
      _
    // Predicated region
    $region70: #{decoder_forward.1} parent=1 // pred_check
      _
    $region71: #{decoder_forward.1} parent=1 // pred_check_branch
      %4548 = sbr.rel (0) target = $region73
    $region72: #{decoder_forward.1} parent=1 // pred_region
      _
    $region73: #{decoder_forward.1} parent=1 // pred_fallthru
      _
    %4549 = vsyncpa [#allocation3], 1
    %4550 = vsyncpa [#allocation5], 1
    %4551 = vsyncpa [#allocation8], 1
    %4552 = vsyncpa [#allocation11], 1

</llo_original>
